<compile_context>
chip_gen: v7x
topology: tpu7x:2x2x1
jax: 0.10.0
libtpu: 0.0.40
codegen_flags: <defaults>
</compile_context>

<pallas_src>
import jax
import jax.numpy as jnp
from jax.experimental import pallas as pl
from jax.experimental.pallas import tpu as pltpu


VMEM_LIMIT_BYTES = 32 * 1024 * 1024     # ample + valid on v5e / v6e / v7x

# Shapes implied by fc1 = Linear(16*5*5, 120): 32x32x3 (CIFAR-sized) input.
H_IN, W_IN, C_IN = 32, 32, 3
C1_OUT, C2_OUT = 6, 16
KH, KW = 5, 5
HP1, WP1 = 14, 14            # pooled conv1 spatial
HP2, WP2 = 5, 5              # pooled conv2 spatial
L1 = W_IN * C_IN             # 96  : fused (w, cin) lane dim of conv1 input
L2 = 128                     # conv2 input lane dim (WP1*C1_OUT=84 valid, zero padded)
NCLS = 10


def _round_up(x, m):
    return (x + m - 1) // m * m


# ---------------------------------------------------------------------------
# Kernel
# ---------------------------------------------------------------------------
def _conv_pool(xin, m_ref, b_ref, hp, bt):
    """relu(conv(x)+b) followed by 2x2 max-pool, as banded GEMMs.

    xin:   (2*hp + KH - 1, bt, L) bf16, lanes ordered (w*Cin + ci).
    m_ref: (KH, L, 256) bf16 banded conv weights; pool shift dx=0 lives in
           lanes [0:128), dx=1 in lanes [128:256).
    b_ref: (1, 256) f32 matching bias row (zero in padded lanes).
    Returns (hp*bt, 128) f32 with valid lanes (wp*Cout + co); padded lanes 0.
    """
    h, L = xin.shape[0], xin.shape[2]
    xe = xin.reshape(h // 2, 2, bt, L)
    x_par = (xe[:, 0], xe[:, 1])                     # even / odd input rows
    pooled = None
    for dy in range(2):                              # vertical pool shift
        acc = None
        for kh in range(KH):
            r = dy + kh
            xs = x_par[r % 2][r // 2: r // 2 + hp].reshape(hp * bt, L)
            t = jnp.dot(xs, m_ref[kh], preferred_element_type=jnp.float32)
            acc = t if acc is None else acc + t
        z = jnp.maximum(acc + b_ref[...], 0.0)       # relu(conv + bias)
        zp = jnp.maximum(z[:, 0:128], z[:, 128:256])  # max over horizontal shift
        pooled = zp if pooled is None else jnp.maximum(pooled, zp)
    return pooled


def _net_kernel(x_ref, m1_ref, b1_ref, m2_ref, b2_ref,
                w1_ref, c1_ref, w2_ref, c2_ref, w3_ref, c3_ref, o_ref):
    bt = o_ref.shape[0]

    # conv1 + relu + pool  -> (HP1*bt, 128), lanes (wp1*6 + c) valid in [0:84)
    o1 = _conv_pool(x_ref[...], m1_ref, b1_ref, HP1, bt)
    o1 = o1.astype(jnp.bfloat16).reshape(HP1, bt, 128)

    # conv2 + relu + pool  -> (HP2*bt, 128), lanes (wp2*16 + c) valid in [0:80)
    o2 = _conv_pool(o1, m2_ref, b2_ref, HP2, bt)
    o2 = o2.astype(jnp.bfloat16).reshape(HP2, bt, 128)

    # fc1: PyTorch's NCHW flatten folded into HP2 weight slabs (one per row)
    acc = None
    for j in range(HP2):
        t = jnp.dot(o2[j], w1_ref[j], preferred_element_type=jnp.float32)
        acc = t if acc is None else acc + t
    h1 = jnp.maximum(acc + c1_ref[...], 0.0).astype(jnp.bfloat16)
    h2 = jnp.dot(h1, w2_ref[...], preferred_element_type=jnp.float32) + c2_ref[...]
    h2 = jnp.maximum(h2, 0.0).astype(jnp.bfloat16)
    o = jnp.dot(h2, w3_ref[...], preferred_element_type=jnp.float32) + c3_ref[...]
    o_ref[...] = o.astype(o_ref.dtype)


# ---------------------------------------------------------------------------
# One-time parameter preparation (hoisted out of the jitted forward)
# ---------------------------------------------------------------------------
def _build_conv_weights(w_conv, b_conv, w_in, wp, rows_pad):
    """Fold im2col + the horizontal pool shift into banded GEMM weights.

    M[kh][(w*cin+ci), dx*128 + wp_i*cout + co] = w_conv[co, ci, kh, w-2*wp_i-dx]
    where the tap is zero outside 0 <= w-2*wp_i-dx < KW.
    """
    cout, cin, kh_n, kw_n = (int(d) for d in w_conv.shape)
    w_idx = jnp.arange(w_in)[:, None]
    wp_idx = jnp.arange(wp)[None, :]
    mats = []
    for kh in range(kh_n):
        wk = w_conv[:, :, kh, :]                          # (cout, cin, KW)
        halves = []
        for dx in range(2):
            kd = w_idx - 2 * wp_idx - dx                  # (w_in, wp)
            valid = (kd >= 0) & (kd < kw_n)
            g = wk[:, :, jnp.clip(kd, 0, kw_n - 1)]       # (cout, cin, w_in, wp)
            g = jnp.where(valid[None, None], g, 0.0)
            m = jnp.transpose(g, (2, 1, 3, 0)).reshape(w_in * cin, wp * cout)
            half = jnp.zeros((rows_pad, 128), jnp.float32)
            half = half.at[: w_in * cin, : wp * cout].set(m)
            halves.append(half)
        mats.append(jnp.concatenate(halves, axis=1))      # (rows_pad, 256)
    m_all = jnp.stack(mats, axis=0).astype(jnp.bfloat16)  # (KH, rows_pad, 256)
    b_half = jnp.zeros((128,), jnp.float32).at[: wp * cout].set(jnp.tile(b_conv, wp))
    b_row = jnp.concatenate([b_half, b_half]).reshape(1, 256)
    return m_all, b_row


def _build_fc1_parts(w_fc1):
    """Split fc1 into HP2 slabs matching the kernel's (wp2*16 + c) lane layout,
    folding PyTorch's NCHW flatten order (c, h, w) into the columns."""
    lane = jnp.arange(WP2 * C2_OUT)
    wp_i, co = lane // C2_OUT, lane % C2_OUT
    parts = []
    for hp_i in range(HP2):
        f = co * (HP2 * WP2) + hp_i * WP2 + wp_i          # torch flatten index
        blk = w_fc1[:, f].T                               # (80, 120)
        part = jnp.zeros((128, 128), jnp.float32)
        part = part.at[: WP2 * C2_OUT, : w_fc1.shape[0]].set(blk)
        parts.append(part)
    return jnp.stack(parts, axis=0).astype(jnp.bfloat16)  # (HP2, 128, 128)


def _pad_fc(w, b):
    wpad = jnp.zeros((128, 128), jnp.float32).at[: w.shape[1], : w.shape[0]].set(w.T)
    bpad = jnp.zeros((1, 128), jnp.float32).at[0, : b.shape[0]].set(b)
    return wpad.astype(jnp.bfloat16), bpad


def prepare_params(params):
    """One-time weight folding / padding / bf16 casting."""
    conv1_w, conv1_b, conv2_w, conv2_b, ((w1, b1), (w2, b2), (w3, b3)) = params
    m1, b1r = _build_conv_weights(conv1_w, conv1_b, W_IN, WP1, L1)   # (5, 96, 256)
    m2, b2r = _build_conv_weights(conv2_w, conv2_b, WP1, WP2, L2)    # (5, 128, 256)
    w1p = _build_fc1_parts(w1)                                       # (5, 128, 128)
    c1 = jnp.zeros((1, 128), jnp.float32).at[0, : b1.shape[0]].set(b1)
    w2p, c2 = _pad_fc(w2, b2)
    w3p, c3 = _pad_fc(w3, b3)
    return (m1, b1r, m2, b2r, w1p, c1, w2p, c2, w3p, c3)


# ---------------------------------------------------------------------------
# Forward pass
# ---------------------------------------------------------------------------
def _pick_batch_tile(batch):
    """Batch tile: multiple of 16 (bf16 sublane packing / free reshapes),
    <=64 rows (VMEM), and >=2 grid steps whenever the batch allows it."""
    bp = _round_up(max(batch, 1), 16)
    if bp <= 16:
        return 16, 16
    bt = max(16, min(64, (bp // 2) // 16 * 16))
    return bt, _round_up(bp, bt)


def net_forward(x_nchw, prep):
    m1, b1r, m2, b2r, w1p, c1, w2p, c2, w3p, c3 = prep
    batch = x_nchw.shape[0]
    assert x_nchw.shape[1:] == (C_IN, H_IN, W_IN), x_nchw.shape
    bt, bpad = _pick_batch_tile(batch)

    # NCHW -> (H, B, W*Cin) bf16: the only per-call activation relayout (~6 KB/img).
    x = jnp.transpose(x_nchw, (2, 0, 3, 1)).reshape(H_IN, batch, L1)
    x = jnp.pad(x, ((0, 0), (0, bpad - batch), (0, 0))).astype(jnp.bfloat16)

    pinned3 = lambda i: (0, 0, 0)
    pinned2 = lambda i: (0, 0)
    out = pl.pallas_call(
        _net_kernel,
        out_shape=jax.ShapeDtypeStruct((bpad, 128), jnp.float32),
        grid=(bpad // bt,),
        in_specs=[
            pl.BlockSpec((H_IN, bt, L1), lambda i: (0, i, 0)),   # streamed images
            pl.BlockSpec((KH, L1, 256), pinned3),                # conv1 banded weights
            pl.BlockSpec((1, 256), pinned2),                     # conv1 bias row
            pl.BlockSpec((KH, L2, 256), pinned3),                # conv2 banded weights
            pl.BlockSpec((1, 256), pinned2),                     # conv2 bias row
            pl.BlockSpec((HP2, 128, 128), pinned3),              # fc1 (flatten folded)
            pl.BlockSpec((1, 128), pinned2),
            pl.BlockSpec((128, 128), pinned2),                   # fc2
            pl.BlockSpec((1, 128), pinned2),
            pl.BlockSpec((128, 128), pinned2),                   # fc3
            pl.BlockSpec((1, 128), pinned2),
        ],
        out_specs=pl.BlockSpec((bt, 128), lambda i: (i, 0)),     # lane-dense store
        compiler_params=pltpu.CompilerParams(
            dimension_semantics=("parallel",),
            vmem_limit_bytes=VMEM_LIMIT_BYTES,
        ),
    )(x, m1, b1r, m2, b2r, w1p, c1, w2p, c2, w3p, c3)
    return out[:batch, :NCLS]


# ---------------------------------------------------------------------------
# Pure-JAX reference (for the numerical self-check) and init
# ---------------------------------------------------------------------------
def net_forward_ref(x, params):
    conv1_w, conv1_b, conv2_w, conv2_b, ((w1, b1), (w2, b2), (w3, b3)) = params

    def conv(x, w, b):
        y = jax.lax.conv_general_dilated(
            x, w, (1, 1), "VALID", dimension_numbers=("NCHW", "OIHW", "NCHW"))
        return y + b[None, :, None, None]

    def pool(x):
        return jax.lax.reduce_window(x, -jnp.inf, jax.lax.max,
                                     (1, 1, 2, 2), (1, 1, 2, 2), "VALID")

    x = pool(jax.nn.relu(conv(x, conv1_w, conv1_b)))
    x = pool(jax.nn.relu(conv(x, conv2_w, conv2_b)))
    x = x.reshape(x.shape[0], -1)
    x = jax.nn.relu(x @ w1.T + b1)
    x = jax.nn.relu(x @ w2.T + b2)
    return x @ w3.T + b3


def init_params(key):
    """Deterministic init mimicking PyTorch's default U(-1/sqrt(fan_in), ..)."""
    ks = jax.random.split(key, 10)

    def u(k, shape, fan_in):
        bound = 1.0 / (fan_in ** 0.5)
        return jax.random.uniform(k, shape, jnp.float32, -bound, bound)

    conv1_w = u(ks[0], (6, 3, 5, 5), 3 * 25)
    conv1_b = u(ks[1], (6,), 3 * 25)
    conv2_w = u(ks[2], (16, 6, 5, 5), 6 * 25)
    conv2_b = u(ks[3], (16,), 6 * 25)
    fc1_w = u(ks[4], (120, 400), 400)
    fc1_b = u(ks[5], (120,), 400)
    fc2_w = u(ks[6], (84, 120), 120)
    fc2_b = u(ks[7], (84,), 120)
    fc3_w = u(ks[8], (10, 84), 84)
    fc3_b = u(ks[9], (10,), 84)
    return (conv1_w, conv1_b, conv2_w, conv2_b,
            ((fc1_w, fc1_b), (fc2_w, fc2_b), (fc3_w, fc3_b)))


if __name__ == "__main__":
    key = jax.random.PRNGKey(0)
    pkey, xkey = jax.random.split(key)
    params = init_params(pkey)
    prep = prepare_params(params)          # one-time weight folding (hoisted)

    fwd = jax.jit(net_forward)
    ref_fn = jax.jit(net_forward_ref)

    # Small smoke test (single-step grid).
    x = jax.random.normal(xkey, (2, 3, 32, 32), jnp.float32)
    out = jax.block_until_ready(fwd(x, prep))
    assert out.shape == (2, 10), out.shape
    assert bool(jnp.all(jnp.isfinite(out)))
    ref = jax.block_until_ready(ref_fn(x, params))
    err = float(jnp.max(jnp.abs(out - ref)))
    assert err < 0.1, err

    # Larger, non-multiple-of-tile batch: exercises padding + multi-step
    # parallel grid (megacore sharding / DMA overlap path).
    x2 = jax.random.normal(jax.random.fold_in(xkey, 1), (37, 3, 32, 32), jnp.float32)
    out2 = jax.block_until_ready(fwd(x2, prep))
    ref2 = jax.block_until_ready(ref_fn(x2, params))
    err2 = float(jnp.max(jnp.abs(out2 - ref2)))
    assert out2.shape == (37, 10), out2.shape
    assert err2 < 0.1, err2

    print("KERNEL_OK")
</pallas_src>

<mosaic_0001>
module attributes {stable_mosaic.version = 11 : i64} {
  func.func @_net_kernel(%arg0: i32, %arg1: memref<32x16x96xbf16, #tpu.memory_space<vmem>>, %arg2: memref<5x96x256xbf16, #tpu.memory_space<vmem>>, %arg3: memref<1x256xf32, #tpu.memory_space<vmem>>, %arg4: memref<5x128x256xbf16, #tpu.memory_space<vmem>>, %arg5: memref<1x256xf32, #tpu.memory_space<vmem>>, %arg6: memref<5x128x128xbf16, #tpu.memory_space<vmem>>, %arg7: memref<1x128xf32, #tpu.memory_space<vmem>>, %arg8: memref<128x128xbf16, #tpu.memory_space<vmem>>, %arg9: memref<1x128xf32, #tpu.memory_space<vmem>>, %arg10: memref<128x128xbf16, #tpu.memory_space<vmem>>, %arg11: memref<1x128xf32, #tpu.memory_space<vmem>>, %arg12: memref<16x128xf32, #tpu.memory_space<vmem>>) attributes {dimension_semantics = [#tpu.dimension_semantics<parallel>], iteration_bounds = array<i64: 1>, scalar_prefetch = 0 : i64, scratch_operands = 0 : i64, tpu.core_type = #tpu.core_type<tc>, window_params = [{transform_indices = @transform_0, window_bounds = array<i64: 32, 16, 96>}, {pipeline_mode = #tpu.pipeline_mode<synchronous>, transform_indices = @transform_1, window_bounds = array<i64: 5, 96, 256>}, {pipeline_mode = #tpu.pipeline_mode<synchronous>, transform_indices = @transform_2, window_bounds = array<i64: 1, 256>}, {pipeline_mode = #tpu.pipeline_mode<synchronous>, transform_indices = @transform_3, window_bounds = array<i64: 5, 128, 256>}, {pipeline_mode = #tpu.pipeline_mode<synchronous>, transform_indices = @transform_4, window_bounds = array<i64: 1, 256>}, {pipeline_mode = #tpu.pipeline_mode<synchronous>, transform_indices = @transform_5, window_bounds = array<i64: 5, 128, 128>}, {pipeline_mode = #tpu.pipeline_mode<synchronous>, transform_indices = @transform_6, window_bounds = array<i64: 1, 128>}, {pipeline_mode = #tpu.pipeline_mode<synchronous>, transform_indices = @transform_7, window_bounds = array<i64: 128, 128>}, {pipeline_mode = #tpu.pipeline_mode<synchronous>, transform_indices = @transform_8, window_bounds = array<i64: 1, 128>}, {pipeline_mode = #tpu.pipeline_mode<synchronous>, transform_indices = @transform_9, window_bounds = array<i64: 128, 128>}, {pipeline_mode = #tpu.pipeline_mode<synchronous>, transform_indices = @transform_10, window_bounds = array<i64: 1, 128>}, {transform_indices = @transform_11, window_bounds = array<i64: 16, 128>}]} {
    %c0 = arith.constant 0 : index
    %c0_0 = arith.constant 0 : index
    %c0_1 = arith.constant 0 : index
    %0 = vector.load %arg1[%c0, %c0_0, %c0_1] : memref<32x16x96xbf16, #tpu.memory_space<vmem>>, vector<32x16x96xbf16>
    %1 = vector.shape_cast %0 : vector<32x16x96xbf16> to vector<16x2x16x96xbf16>
    %2 = vector.extract_strided_slice %1 {offsets = [0, 0, 0, 0], sizes = [16, 1, 16, 96], strides = [1, 1, 1, 1]} : vector<16x2x16x96xbf16> to vector<16x1x16x96xbf16>
    %3 = vector.shape_cast %2 : vector<16x1x16x96xbf16> to vector<16x16x96xbf16>
    %4 = vector.extract_strided_slice %1 {offsets = [0, 1, 0, 0], sizes = [16, 1, 16, 96], strides = [1, 1, 1, 1]} : vector<16x2x16x96xbf16> to vector<16x1x16x96xbf16>
    %5 = vector.shape_cast %4 : vector<16x1x16x96xbf16> to vector<16x16x96xbf16>
    %6 = vector.extract_strided_slice %3 {offsets = [0, 0, 0], sizes = [14, 16, 96], strides = [1, 1, 1]} : vector<16x16x96xbf16> to vector<14x16x96xbf16>
    %7 = vector.shape_cast %6 : vector<14x16x96xbf16> to vector<224x96xbf16>
    %c0_2 = arith.constant 0 : index
    %c0_3 = arith.constant 0 : index
    %c0_4 = arith.constant 0 : index
    %8 = vector.load %arg2[%c0_2, %c0_3, %c0_4] : memref<5x96x256xbf16, #tpu.memory_space<vmem>>, vector<1x96x256xbf16>
    %9 = vector.shape_cast %8 : vector<1x96x256xbf16> to vector<96x256xbf16>
    %cst = arith.constant dense<0.000000e+00> : vector<224x256xf32>
    %10 = tpu.matmul %7, %9, %cst {dimension_numbers = #tpu.dot_dimension_numbers<[1], [0], [0], [1], [0, 0, 1, 1], [], []>} : vector<224x96xbf16>, vector<96x256xbf16>, vector<224x256xf32> -> vector<224x256xf32>
    %11 = vector.extract_strided_slice %5 {offsets = [0, 0, 0], sizes = [14, 16, 96], strides = [1, 1, 1]} : vector<16x16x96xbf16> to vector<14x16x96xbf16>
    %12 = vector.shape_cast %11 : vector<14x16x96xbf16> to vector<224x96xbf16>
    %c1 = arith.constant 1 : index
    %c0_5 = arith.constant 0 : index
    %c0_6 = arith.constant 0 : index
    %13 = vector.load %arg2[%c1, %c0_5, %c0_6] : memref<5x96x256xbf16, #tpu.memory_space<vmem>>, vector<1x96x256xbf16>
    %14 = vector.shape_cast %13 : vector<1x96x256xbf16> to vector<96x256xbf16>
    %cst_7 = arith.constant dense<0.000000e+00> : vector<224x256xf32>
    %15 = tpu.matmul %12, %14, %cst_7 {dimension_numbers = #tpu.dot_dimension_numbers<[1], [0], [0], [1], [0, 0, 1, 1], [], []>} : vector<224x96xbf16>, vector<96x256xbf16>, vector<224x256xf32> -> vector<224x256xf32>
    %16 = arith.addf %10, %15 : vector<224x256xf32>
    %17 = vector.extract_strided_slice %3 {offsets = [1, 0, 0], sizes = [14, 16, 96], strides = [1, 1, 1]} : vector<16x16x96xbf16> to vector<14x16x96xbf16>
    %18 = vector.shape_cast %17 : vector<14x16x96xbf16> to vector<224x96xbf16>
    %c2 = arith.constant 2 : index
    %c0_8 = arith.constant 0 : index
    %c0_9 = arith.constant 0 : index
    %19 = vector.load %arg2[%c2, %c0_8, %c0_9] : memref<5x96x256xbf16, #tpu.memory_space<vmem>>, vector<1x96x256xbf16>
    %20 = vector.shape_cast %19 : vector<1x96x256xbf16> to vector<96x256xbf16>
    %cst_10 = arith.constant dense<0.000000e+00> : vector<224x256xf32>
    %21 = tpu.matmul %18, %20, %cst_10 {dimension_numbers = #tpu.dot_dimension_numbers<[1], [0], [0], [1], [0, 0, 1, 1], [], []>} : vector<224x96xbf16>, vector<96x256xbf16>, vector<224x256xf32> -> vector<224x256xf32>
    %22 = arith.addf %16, %21 : vector<224x256xf32>
    %23 = vector.extract_strided_slice %5 {offsets = [1, 0, 0], sizes = [14, 16, 96], strides = [1, 1, 1]} : vector<16x16x96xbf16> to vector<14x16x96xbf16>
    %24 = vector.shape_cast %23 : vector<14x16x96xbf16> to vector<224x96xbf16>
    %c3 = arith.constant 3 : index
    %c0_11 = arith.constant 0 : index
    %c0_12 = arith.constant 0 : index
    %25 = vector.load %arg2[%c3, %c0_11, %c0_12] : memref<5x96x256xbf16, #tpu.memory_space<vmem>>, vector<1x96x256xbf16>
    %26 = vector.shape_cast %25 : vector<1x96x256xbf16> to vector<96x256xbf16>
    %cst_13 = arith.constant dense<0.000000e+00> : vector<224x256xf32>
    %27 = tpu.matmul %24, %26, %cst_13 {dimension_numbers = #tpu.dot_dimension_numbers<[1], [0], [0], [1], [0, 0, 1, 1], [], []>} : vector<224x96xbf16>, vector<96x256xbf16>, vector<224x256xf32> -> vector<224x256xf32>
    %28 = arith.addf %22, %27 : vector<224x256xf32>
    %29 = vector.extract_strided_slice %3 {offsets = [2, 0, 0], sizes = [14, 16, 96], strides = [1, 1, 1]} : vector<16x16x96xbf16> to vector<14x16x96xbf16>
    %30 = vector.shape_cast %29 : vector<14x16x96xbf16> to vector<224x96xbf16>
    %c4 = arith.constant 4 : index
    %c0_14 = arith.constant 0 : index
    %c0_15 = arith.constant 0 : index
    %31 = vector.load %arg2[%c4, %c0_14, %c0_15] : memref<5x96x256xbf16, #tpu.memory_space<vmem>>, vector<1x96x256xbf16>
    %32 = vector.shape_cast %31 : vector<1x96x256xbf16> to vector<96x256xbf16>
    %cst_16 = arith.constant dense<0.000000e+00> : vector<224x256xf32>
    %33 = tpu.matmul %30, %32, %cst_16 {dimension_numbers = #tpu.dot_dimension_numbers<[1], [0], [0], [1], [0, 0, 1, 1], [], []>} : vector<224x96xbf16>, vector<96x256xbf16>, vector<224x256xf32> -> vector<224x256xf32>
    %34 = arith.addf %28, %33 : vector<224x256xf32>
    %c0_17 = arith.constant 0 : index
    %c0_18 = arith.constant 0 : index
    %35 = vector.load %arg3[%c0_17, %c0_18] : memref<1x256xf32, #tpu.memory_space<vmem>>, vector<1x256xf32>
    %36 = vector.broadcast %35 : vector<1x256xf32> to vector<224x256xf32>
    %37 = arith.addf %34, %36 : vector<224x256xf32>
    %cst_19 = arith.constant 0.000000e+00 : f32
    %38 = vector.broadcast %cst_19 : f32 to vector<224x256xf32>
    %39 = arith.maximumf %37, %38 : vector<224x256xf32>
    %40 = vector.extract_strided_slice %39 {offsets = [0, 0], sizes = [224, 128], strides = [1, 1]} : vector<224x256xf32> to vector<224x128xf32>
    %41 = vector.extract_strided_slice %39 {offsets = [0, 128], sizes = [224, 128], strides = [1, 1]} : vector<224x256xf32> to vector<224x128xf32>
    %42 = arith.maximumf %40, %41 : vector<224x128xf32>
    %43 = vector.extract_strided_slice %5 {offsets = [0, 0, 0], sizes = [14, 16, 96], strides = [1, 1, 1]} : vector<16x16x96xbf16> to vector<14x16x96xbf16>
    %44 = vector.shape_cast %43 : vector<14x16x96xbf16> to vector<224x96xbf16>
    %c0_20 = arith.constant 0 : index
    %c0_21 = arith.constant 0 : index
    %c0_22 = arith.constant 0 : index
    %45 = vector.load %arg2[%c0_20, %c0_21, %c0_22] : memref<5x96x256xbf16, #tpu.memory_space<vmem>>, vector<1x96x256xbf16>
    %46 = vector.shape_cast %45 : vector<1x96x256xbf16> to vector<96x256xbf16>
    %cst_23 = arith.constant dense<0.000000e+00> : vector<224x256xf32>
    %47 = tpu.matmul %44, %46, %cst_23 {dimension_numbers = #tpu.dot_dimension_numbers<[1], [0], [0], [1], [0, 0, 1, 1], [], []>} : vector<224x96xbf16>, vector<96x256xbf16>, vector<224x256xf32> -> vector<224x256xf32>
    %48 = vector.extract_strided_slice %3 {offsets = [1, 0, 0], sizes = [14, 16, 96], strides = [1, 1, 1]} : vector<16x16x96xbf16> to vector<14x16x96xbf16>
    %49 = vector.shape_cast %48 : vector<14x16x96xbf16> to vector<224x96xbf16>
    %c1_24 = arith.constant 1 : index
    %c0_25 = arith.constant 0 : index
    %c0_26 = arith.constant 0 : index
    %50 = vector.load %arg2[%c1_24, %c0_25, %c0_26] : memref<5x96x256xbf16, #tpu.memory_space<vmem>>, vector<1x96x256xbf16>
    %51 = vector.shape_cast %50 : vector<1x96x256xbf16> to vector<96x256xbf16>
    %cst_27 = arith.constant dense<0.000000e+00> : vector<224x256xf32>
    %52 = tpu.matmul %49, %51, %cst_27 {dimension_numbers = #tpu.dot_dimension_numbers<[1], [0], [0], [1], [0, 0, 1, 1], [], []>} : vector<224x96xbf16>, vector<96x256xbf16>, vector<224x256xf32> -> vector<224x256xf32>
    %53 = arith.addf %47, %52 : vector<224x256xf32>
    %54 = vector.extract_strided_slice %5 {offsets = [1, 0, 0], sizes = [14, 16, 96], strides = [1, 1, 1]} : vector<16x16x96xbf16> to vector<14x16x96xbf16>
    %55 = vector.shape_cast %54 : vector<14x16x96xbf16> to vector<224x96xbf16>
    %c2_28 = arith.constant 2 : index
    %c0_29 = arith.constant 0 : index
    %c0_30 = arith.constant 0 : index
    %56 = vector.load %arg2[%c2_28, %c0_29, %c0_30] : memref<5x96x256xbf16, #tpu.memory_space<vmem>>, vector<1x96x256xbf16>
    %57 = vector.shape_cast %56 : vector<1x96x256xbf16> to vector<96x256xbf16>
    %cst_31 = arith.constant dense<0.000000e+00> : vector<224x256xf32>
    %58 = tpu.matmul %55, %57, %cst_31 {dimension_numbers = #tpu.dot_dimension_numbers<[1], [0], [0], [1], [0, 0, 1, 1], [], []>} : vector<224x96xbf16>, vector<96x256xbf16>, vector<224x256xf32> -> vector<224x256xf32>
    %59 = arith.addf %53, %58 : vector<224x256xf32>
    %60 = vector.extract_strided_slice %3 {offsets = [2, 0, 0], sizes = [14, 16, 96], strides = [1, 1, 1]} : vector<16x16x96xbf16> to vector<14x16x96xbf16>
    %61 = vector.shape_cast %60 : vector<14x16x96xbf16> to vector<224x96xbf16>
    %c3_32 = arith.constant 3 : index
    %c0_33 = arith.constant 0 : index
    %c0_34 = arith.constant 0 : index
    %62 = vector.load %arg2[%c3_32, %c0_33, %c0_34] : memref<5x96x256xbf16, #tpu.memory_space<vmem>>, vector<1x96x256xbf16>
    %63 = vector.shape_cast %62 : vector<1x96x256xbf16> to vector<96x256xbf16>
    %cst_35 = arith.constant dense<0.000000e+00> : vector<224x256xf32>
    %64 = tpu.matmul %61, %63, %cst_35 {dimension_numbers = #tpu.dot_dimension_numbers<[1], [0], [0], [1], [0, 0, 1, 1], [], []>} : vector<224x96xbf16>, vector<96x256xbf16>, vector<224x256xf32> -> vector<224x256xf32>
    %65 = arith.addf %59, %64 : vector<224x256xf32>
    %66 = vector.extract_strided_slice %5 {offsets = [2, 0, 0], sizes = [14, 16, 96], strides = [1, 1, 1]} : vector<16x16x96xbf16> to vector<14x16x96xbf16>
    %67 = vector.shape_cast %66 : vector<14x16x96xbf16> to vector<224x96xbf16>
    %c4_36 = arith.constant 4 : index
    %c0_37 = arith.constant 0 : index
    %c0_38 = arith.constant 0 : index
    %68 = vector.load %arg2[%c4_36, %c0_37, %c0_38] : memref<5x96x256xbf16, #tpu.memory_space<vmem>>, vector<1x96x256xbf16>
    %69 = vector.shape_cast %68 : vector<1x96x256xbf16> to vector<96x256xbf16>
    %cst_39 = arith.constant dense<0.000000e+00> : vector<224x256xf32>
    %70 = tpu.matmul %67, %69, %cst_39 {dimension_numbers = #tpu.dot_dimension_numbers<[1], [0], [0], [1], [0, 0, 1, 1], [], []>} : vector<224x96xbf16>, vector<96x256xbf16>, vector<224x256xf32> -> vector<224x256xf32>
    %71 = arith.addf %65, %70 : vector<224x256xf32>
    %c0_40 = arith.constant 0 : index
    %c0_41 = arith.constant 0 : index
    %72 = vector.load %arg3[%c0_40, %c0_41] : memref<1x256xf32, #tpu.memory_space<vmem>>, vector<1x256xf32>
    %73 = vector.broadcast %72 : vector<1x256xf32> to vector<224x256xf32>
    %74 = arith.addf %71, %73 : vector<224x256xf32>
    %cst_42 = arith.constant 0.000000e+00 : f32
    %75 = vector.broadcast %cst_42 : f32 to vector<224x256xf32>
    %76 = arith.maximumf %74, %75 : vector<224x256xf32>
    %77 = vector.extract_strided_slice %76 {offsets = [0, 0], sizes = [224, 128], strides = [1, 1]} : vector<224x256xf32> to vector<224x128xf32>
    %78 = vector.extract_strided_slice %76 {offsets = [0, 128], sizes = [224, 128], strides = [1, 1]} : vector<224x256xf32> to vector<224x128xf32>
    %79 = arith.maximumf %77, %78 : vector<224x128xf32>
    %80 = arith.maximumf %42, %79 : vector<224x128xf32>
    %81 = arith.truncf %80 : vector<224x128xf32> to vector<224x128xbf16>
    %82 = vector.shape_cast %81 : vector<224x128xbf16> to vector<14x16x128xbf16>
    %83 = vector.shape_cast %82 : vector<14x16x128xbf16> to vector<7x2x16x128xbf16>
    %84 = vector.extract_strided_slice %83 {offsets = [0, 0, 0, 0], sizes = [7, 1, 16, 128], strides = [1, 1, 1, 1]} : vector<7x2x16x128xbf16> to vector<7x1x16x128xbf16>
    %85 = vector.shape_cast %84 : vector<7x1x16x128xbf16> to vector<7x16x128xbf16>
    %86 = vector.extract_strided_slice %83 {offsets = [0, 1, 0, 0], sizes = [7, 1, 16, 128], strides = [1, 1, 1, 1]} : vector<7x2x16x128xbf16> to vector<7x1x16x128xbf16>
    %87 = vector.shape_cast %86 : vector<7x1x16x128xbf16> to vector<7x16x128xbf16>
    %88 = vector.extract_strided_slice %85 {offsets = [0, 0, 0], sizes = [5, 16, 128], strides = [1, 1, 1]} : vector<7x16x128xbf16> to vector<5x16x128xbf16>
    %89 = vector.shape_cast %88 : vector<5x16x128xbf16> to vector<80x128xbf16>
    %c0_43 = arith.constant 0 : index
    %c0_44 = arith.constant 0 : index
    %c0_45 = arith.constant 0 : index
    %90 = vector.load %arg4[%c0_43, %c0_44, %c0_45] : memref<5x128x256xbf16, #tpu.memory_space<vmem>>, vector<1x128x256xbf16>
    %91 = vector.shape_cast %90 : vector<1x128x256xbf16> to vector<128x256xbf16>
    %cst_46 = arith.constant dense<0.000000e+00> : vector<80x256xf32>
    %92 = tpu.matmul %89, %91, %cst_46 {dimension_numbers = #tpu.dot_dimension_numbers<[1], [0], [0], [1], [0, 0, 1, 1], [], []>} : vector<80x128xbf16>, vector<128x256xbf16>, vector<80x256xf32> -> vector<80x256xf32>
    %93 = vector.extract_strided_slice %87 {offsets = [0, 0, 0], sizes = [5, 16, 128], strides = [1, 1, 1]} : vector<7x16x128xbf16> to vector<5x16x128xbf16>
    %94 = vector.shape_cast %93 : vector<5x16x128xbf16> to vector<80x128xbf16>
    %c1_47 = arith.constant 1 : index
    %c0_48 = arith.constant 0 : index
    %c0_49 = arith.constant 0 : index
    %95 = vector.load %arg4[%c1_47, %c0_48, %c0_49] : memref<5x128x256xbf16, #tpu.memory_space<vmem>>, vector<1x128x256xbf16>
    %96 = vector.shape_cast %95 : vector<1x128x256xbf16> to vector<128x256xbf16>
    %cst_50 = arith.constant dense<0.000000e+00> : vector<80x256xf32>
    %97 = tpu.matmul %94, %96, %cst_50 {dimension_numbers = #tpu.dot_dimension_numbers<[1], [0], [0], [1], [0, 0, 1, 1], [], []>} : vector<80x128xbf16>, vector<128x256xbf16>, vector<80x256xf32> -> vector<80x256xf32>
    %98 = arith.addf %92, %97 : vector<80x256xf32>
    %99 = vector.extract_strided_slice %85 {offsets = [1, 0, 0], sizes = [5, 16, 128], strides = [1, 1, 1]} : vector<7x16x128xbf16> to vector<5x16x128xbf16>
    %100 = vector.shape_cast %99 : vector<5x16x128xbf16> to vector<80x128xbf16>
    %c2_51 = arith.constant 2 : index
    %c0_52 = arith.constant 0 : index
    %c0_53 = arith.constant 0 : index
    %101 = vector.load %arg4[%c2_51, %c0_52, %c0_53] : memref<5x128x256xbf16, #tpu.memory_space<vmem>>, vector<1x128x256xbf16>
    %102 = vector.shape_cast %101 : vector<1x128x256xbf16> to vector<128x256xbf16>
    %cst_54 = arith.constant dense<0.000000e+00> : vector<80x256xf32>
    %103 = tpu.matmul %100, %102, %cst_54 {dimension_numbers = #tpu.dot_dimension_numbers<[1], [0], [0], [1], [0, 0, 1, 1], [], []>} : vector<80x128xbf16>, vector<128x256xbf16>, vector<80x256xf32> -> vector<80x256xf32>
    %104 = arith.addf %98, %103 : vector<80x256xf32>
    %105 = vector.extract_strided_slice %87 {offsets = [1, 0, 0], sizes = [5, 16, 128], strides = [1, 1, 1]} : vector<7x16x128xbf16> to vector<5x16x128xbf16>
    %106 = vector.shape_cast %105 : vector<5x16x128xbf16> to vector<80x128xbf16>
    %c3_55 = arith.constant 3 : index
    %c0_56 = arith.constant 0 : index
    %c0_57 = arith.constant 0 : index
    %107 = vector.load %arg4[%c3_55, %c0_56, %c0_57] : memref<5x128x256xbf16, #tpu.memory_space<vmem>>, vector<1x128x256xbf16>
    %108 = vector.shape_cast %107 : vector<1x128x256xbf16> to vector<128x256xbf16>
    %cst_58 = arith.constant dense<0.000000e+00> : vector<80x256xf32>
    %109 = tpu.matmul %106, %108, %cst_58 {dimension_numbers = #tpu.dot_dimension_numbers<[1], [0], [0], [1], [0, 0, 1, 1], [], []>} : vector<80x128xbf16>, vector<128x256xbf16>, vector<80x256xf32> -> vector<80x256xf32>
    %110 = arith.addf %104, %109 : vector<80x256xf32>
    %111 = vector.extract_strided_slice %85 {offsets = [2, 0, 0], sizes = [5, 16, 128], strides = [1, 1, 1]} : vector<7x16x128xbf16> to vector<5x16x128xbf16>
    %112 = vector.shape_cast %111 : vector<5x16x128xbf16> to vector<80x128xbf16>
    %c4_59 = arith.constant 4 : index
    %c0_60 = arith.constant 0 : index
    %c0_61 = arith.constant 0 : index
    %113 = vector.load %arg4[%c4_59, %c0_60, %c0_61] : memref<5x128x256xbf16, #tpu.memory_space<vmem>>, vector<1x128x256xbf16>
    %114 = vector.shape_cast %113 : vector<1x128x256xbf16> to vector<128x256xbf16>
    %cst_62 = arith.constant dense<0.000000e+00> : vector<80x256xf32>
    %115 = tpu.matmul %112, %114, %cst_62 {dimension_numbers = #tpu.dot_dimension_numbers<[1], [0], [0], [1], [0, 0, 1, 1], [], []>} : vector<80x128xbf16>, vector<128x256xbf16>, vector<80x256xf32> -> vector<80x256xf32>
    %116 = arith.addf %110, %115 : vector<80x256xf32>
    %c0_63 = arith.constant 0 : index
    %c0_64 = arith.constant 0 : index
    %117 = vector.load %arg5[%c0_63, %c0_64] : memref<1x256xf32, #tpu.memory_space<vmem>>, vector<1x256xf32>
    %118 = vector.broadcast %117 : vector<1x256xf32> to vector<80x256xf32>
    %119 = arith.addf %116, %118 : vector<80x256xf32>
    %cst_65 = arith.constant 0.000000e+00 : f32
    %120 = vector.broadcast %cst_65 : f32 to vector<80x256xf32>
    %121 = arith.maximumf %119, %120 : vector<80x256xf32>
    %122 = vector.extract_strided_slice %121 {offsets = [0, 0], sizes = [80, 128], strides = [1, 1]} : vector<80x256xf32> to vector<80x128xf32>
    %123 = vector.extract_strided_slice %121 {offsets = [0, 128], sizes = [80, 128], strides = [1, 1]} : vector<80x256xf32> to vector<80x128xf32>
    %124 = arith.maximumf %122, %123 : vector<80x128xf32>
    %125 = vector.extract_strided_slice %87 {offsets = [0, 0, 0], sizes = [5, 16, 128], strides = [1, 1, 1]} : vector<7x16x128xbf16> to vector<5x16x128xbf16>
    %126 = vector.shape_cast %125 : vector<5x16x128xbf16> to vector<80x128xbf16>
    %c0_66 = arith.constant 0 : index
    %c0_67 = arith.constant 0 : index
    %c0_68 = arith.constant 0 : index
    %127 = vector.load %arg4[%c0_66, %c0_67, %c0_68] : memref<5x128x256xbf16, #tpu.memory_space<vmem>>, vector<1x128x256xbf16>
    %128 = vector.shape_cast %127 : vector<1x128x256xbf16> to vector<128x256xbf16>
    %cst_69 = arith.constant dense<0.000000e+00> : vector<80x256xf32>
    %129 = tpu.matmul %126, %128, %cst_69 {dimension_numbers = #tpu.dot_dimension_numbers<[1], [0], [0], [1], [0, 0, 1, 1], [], []>} : vector<80x128xbf16>, vector<128x256xbf16>, vector<80x256xf32> -> vector<80x256xf32>
    %130 = vector.extract_strided_slice %85 {offsets = [1, 0, 0], sizes = [5, 16, 128], strides = [1, 1, 1]} : vector<7x16x128xbf16> to vector<5x16x128xbf16>
    %131 = vector.shape_cast %130 : vector<5x16x128xbf16> to vector<80x128xbf16>
    %c1_70 = arith.constant 1 : index
    %c0_71 = arith.constant 0 : index
    %c0_72 = arith.constant 0 : index
    %132 = vector.load %arg4[%c1_70, %c0_71, %c0_72] : memref<5x128x256xbf16, #tpu.memory_space<vmem>>, vector<1x128x256xbf16>
    %133 = vector.shape_cast %132 : vector<1x128x256xbf16> to vector<128x256xbf16>
    %cst_73 = arith.constant dense<0.000000e+00> : vector<80x256xf32>
    %134 = tpu.matmul %131, %133, %cst_73 {dimension_numbers = #tpu.dot_dimension_numbers<[1], [0], [0], [1], [0, 0, 1, 1], [], []>} : vector<80x128xbf16>, vector<128x256xbf16>, vector<80x256xf32> -> vector<80x256xf32>
    %135 = arith.addf %129, %134 : vector<80x256xf32>
    %136 = vector.extract_strided_slice %87 {offsets = [1, 0, 0], sizes = [5, 16, 128], strides = [1, 1, 1]} : vector<7x16x128xbf16> to vector<5x16x128xbf16>
    %137 = vector.shape_cast %136 : vector<5x16x128xbf16> to vector<80x128xbf16>
    %c2_74 = arith.constant 2 : index
    %c0_75 = arith.constant 0 : index
    %c0_76 = arith.constant 0 : index
    %138 = vector.load %arg4[%c2_74, %c0_75, %c0_76] : memref<5x128x256xbf16, #tpu.memory_space<vmem>>, vector<1x128x256xbf16>
    %139 = vector.shape_cast %138 : vector<1x128x256xbf16> to vector<128x256xbf16>
    %cst_77 = arith.constant dense<0.000000e+00> : vector<80x256xf32>
    %140 = tpu.matmul %137, %139, %cst_77 {dimension_numbers = #tpu.dot_dimension_numbers<[1], [0], [0], [1], [0, 0, 1, 1], [], []>} : vector<80x128xbf16>, vector<128x256xbf16>, vector<80x256xf32> -> vector<80x256xf32>
    %141 = arith.addf %135, %140 : vector<80x256xf32>
    %142 = vector.extract_strided_slice %85 {offsets = [2, 0, 0], sizes = [5, 16, 128], strides = [1, 1, 1]} : vector<7x16x128xbf16> to vector<5x16x128xbf16>
    %143 = vector.shape_cast %142 : vector<5x16x128xbf16> to vector<80x128xbf16>
    %c3_78 = arith.constant 3 : index
    %c0_79 = arith.constant 0 : index
    %c0_80 = arith.constant 0 : index
    %144 = vector.load %arg4[%c3_78, %c0_79, %c0_80] : memref<5x128x256xbf16, #tpu.memory_space<vmem>>, vector<1x128x256xbf16>
    %145 = vector.shape_cast %144 : vector<1x128x256xbf16> to vector<128x256xbf16>
    %cst_81 = arith.constant dense<0.000000e+00> : vector<80x256xf32>
    %146 = tpu.matmul %143, %145, %cst_81 {dimension_numbers = #tpu.dot_dimension_numbers<[1], [0], [0], [1], [0, 0, 1, 1], [], []>} : vector<80x128xbf16>, vector<128x256xbf16>, vector<80x256xf32> -> vector<80x256xf32>
    %147 = arith.addf %141, %146 : vector<80x256xf32>
    %148 = vector.extract_strided_slice %87 {offsets = [2, 0, 0], sizes = [5, 16, 128], strides = [1, 1, 1]} : vector<7x16x128xbf16> to vector<5x16x128xbf16>
    %149 = vector.shape_cast %148 : vector<5x16x128xbf16> to vector<80x128xbf16>
    %c4_82 = arith.constant 4 : index
    %c0_83 = arith.constant 0 : index
    %c0_84 = arith.constant 0 : index
    %150 = vector.load %arg4[%c4_82, %c0_83, %c0_84] : memref<5x128x256xbf16, #tpu.memory_space<vmem>>, vector<1x128x256xbf16>
    %151 = vector.shape_cast %150 : vector<1x128x256xbf16> to vector<128x256xbf16>
    %cst_85 = arith.constant dense<0.000000e+00> : vector<80x256xf32>
    %152 = tpu.matmul %149, %151, %cst_85 {dimension_numbers = #tpu.dot_dimension_numbers<[1], [0], [0], [1], [0, 0, 1, 1], [], []>} : vector<80x128xbf16>, vector<128x256xbf16>, vector<80x256xf32> -> vector<80x256xf32>
    %153 = arith.addf %147, %152 : vector<80x256xf32>
    %c0_86 = arith.constant 0 : index
    %c0_87 = arith.constant 0 : index
    %154 = vector.load %arg5[%c0_86, %c0_87] : memref<1x256xf32, #tpu.memory_space<vmem>>, vector<1x256xf32>
    %155 = vector.broadcast %154 : vector<1x256xf32> to vector<80x256xf32>
    %156 = arith.addf %153, %155 : vector<80x256xf32>
    %cst_88 = arith.constant 0.000000e+00 : f32
    %157 = vector.broadcast %cst_88 : f32 to vector<80x256xf32>
    %158 = arith.maximumf %156, %157 : vector<80x256xf32>
    %159 = vector.extract_strided_slice %158 {offsets = [0, 0], sizes = [80, 128], strides = [1, 1]} : vector<80x256xf32> to vector<80x128xf32>
    %160 = vector.extract_strided_slice %158 {offsets = [0, 128], sizes = [80, 128], strides = [1, 1]} : vector<80x256xf32> to vector<80x128xf32>
    %161 = arith.maximumf %159, %160 : vector<80x128xf32>
    %162 = arith.maximumf %124, %161 : vector<80x128xf32>
    %163 = arith.truncf %162 : vector<80x128xf32> to vector<80x128xbf16>
    %164 = vector.shape_cast %163 : vector<80x128xbf16> to vector<5x16x128xbf16>
    %165 = vector.extract_strided_slice %164 {offsets = [0, 0, 0], sizes = [1, 16, 128], strides = [1, 1, 1]} : vector<5x16x128xbf16> to vector<1x16x128xbf16>
    %166 = vector.shape_cast %165 : vector<1x16x128xbf16> to vector<16x128xbf16>
    %c0_89 = arith.constant 0 : index
    %c0_90 = arith.constant 0 : index
    %c0_91 = arith.constant 0 : index
    %167 = vector.load %arg6[%c0_89, %c0_90, %c0_91] : memref<5x128x128xbf16, #tpu.memory_space<vmem>>, vector<1x128x128xbf16>
    %168 = vector.shape_cast %167 : vector<1x128x128xbf16> to vector<128x128xbf16>
    %cst_92 = arith.constant dense<0.000000e+00> : vector<16x128xf32>
    %169 = tpu.matmul %166, %168, %cst_92 {dimension_numbers = #tpu.dot_dimension_numbers<[1], [0], [0], [1], [0, 0, 1, 1], [], []>} : vector<16x128xbf16>, vector<128x128xbf16>, vector<16x128xf32> -> vector<16x128xf32>
    %170 = vector.extract_strided_slice %164 {offsets = [1, 0, 0], sizes = [1, 16, 128], strides = [1, 1, 1]} : vector<5x16x128xbf16> to vector<1x16x128xbf16>
    %171 = vector.shape_cast %170 : vector<1x16x128xbf16> to vector<16x128xbf16>
    %c1_93 = arith.constant 1 : index
    %c0_94 = arith.constant 0 : index
    %c0_95 = arith.constant 0 : index
    %172 = vector.load %arg6[%c1_93, %c0_94, %c0_95] : memref<5x128x128xbf16, #tpu.memory_space<vmem>>, vector<1x128x128xbf16>
    %173 = vector.shape_cast %172 : vector<1x128x128xbf16> to vector<128x128xbf16>
    %cst_96 = arith.constant dense<0.000000e+00> : vector<16x128xf32>
    %174 = tpu.matmul %171, %173, %cst_96 {dimension_numbers = #tpu.dot_dimension_numbers<[1], [0], [0], [1], [0, 0, 1, 1], [], []>} : vector<16x128xbf16>, vector<128x128xbf16>, vector<16x128xf32> -> vector<16x128xf32>
    %175 = arith.addf %169, %174 : vector<16x128xf32>
    %176 = vector.extract_strided_slice %164 {offsets = [2, 0, 0], sizes = [1, 16, 128], strides = [1, 1, 1]} : vector<5x16x128xbf16> to vector<1x16x128xbf16>
    %177 = vector.shape_cast %176 : vector<1x16x128xbf16> to vector<16x128xbf16>
    %c2_97 = arith.constant 2 : index
    %c0_98 = arith.constant 0 : index
    %c0_99 = arith.constant 0 : index
    %178 = vector.load %arg6[%c2_97, %c0_98, %c0_99] : memref<5x128x128xbf16, #tpu.memory_space<vmem>>, vector<1x128x128xbf16>
    %179 = vector.shape_cast %178 : vector<1x128x128xbf16> to vector<128x128xbf16>
    %cst_100 = arith.constant dense<0.000000e+00> : vector<16x128xf32>
    %180 = tpu.matmul %177, %179, %cst_100 {dimension_numbers = #tpu.dot_dimension_numbers<[1], [0], [0], [1], [0, 0, 1, 1], [], []>} : vector<16x128xbf16>, vector<128x128xbf16>, vector<16x128xf32> -> vector<16x128xf32>
    %181 = arith.addf %175, %180 : vector<16x128xf32>
    %182 = vector.extract_strided_slice %164 {offsets = [3, 0, 0], sizes = [1, 16, 128], strides = [1, 1, 1]} : vector<5x16x128xbf16> to vector<1x16x128xbf16>
    %183 = vector.shape_cast %182 : vector<1x16x128xbf16> to vector<16x128xbf16>
    %c3_101 = arith.constant 3 : index
    %c0_102 = arith.constant 0 : index
    %c0_103 = arith.constant 0 : index
    %184 = vector.load %arg6[%c3_101, %c0_102, %c0_103] : memref<5x128x128xbf16, #tpu.memory_space<vmem>>, vector<1x128x128xbf16>
    %185 = vector.shape_cast %184 : vector<1x128x128xbf16> to vector<128x128xbf16>
    %cst_104 = arith.constant dense<0.000000e+00> : vector<16x128xf32>
    %186 = tpu.matmul %183, %185, %cst_104 {dimension_numbers = #tpu.dot_dimension_numbers<[1], [0], [0], [1], [0, 0, 1, 1], [], []>} : vector<16x128xbf16>, vector<128x128xbf16>, vector<16x128xf32> -> vector<16x128xf32>
    %187 = arith.addf %181, %186 : vector<16x128xf32>
    %188 = vector.extract_strided_slice %164 {offsets = [4, 0, 0], sizes = [1, 16, 128], strides = [1, 1, 1]} : vector<5x16x128xbf16> to vector<1x16x128xbf16>
    %189 = vector.shape_cast %188 : vector<1x16x128xbf16> to vector<16x128xbf16>
    %c4_105 = arith.constant 4 : index
    %c0_106 = arith.constant 0 : index
    %c0_107 = arith.constant 0 : index
    %190 = vector.load %arg6[%c4_105, %c0_106, %c0_107] : memref<5x128x128xbf16, #tpu.memory_space<vmem>>, vector<1x128x128xbf16>
    %191 = vector.shape_cast %190 : vector<1x128x128xbf16> to vector<128x128xbf16>
    %cst_108 = arith.constant dense<0.000000e+00> : vector<16x128xf32>
    %192 = tpu.matmul %189, %191, %cst_108 {dimension_numbers = #tpu.dot_dimension_numbers<[1], [0], [0], [1], [0, 0, 1, 1], [], []>} : vector<16x128xbf16>, vector<128x128xbf16>, vector<16x128xf32> -> vector<16x128xf32>
    %193 = arith.addf %187, %192 : vector<16x128xf32>
    %c0_109 = arith.constant 0 : index
    %c0_110 = arith.constant 0 : index
    %194 = vector.load %arg7[%c0_109, %c0_110] : memref<1x128xf32, #tpu.memory_space<vmem>>, vector<1x128xf32>
    %195 = vector.broadcast %194 : vector<1x128xf32> to vector<16x128xf32>
    %196 = arith.addf %193, %195 : vector<16x128xf32>
    %cst_111 = arith.constant 0.000000e+00 : f32
    %197 = vector.broadcast %cst_111 : f32 to vector<16x128xf32>
    %198 = arith.maximumf %196, %197 : vector<16x128xf32>
    %199 = arith.truncf %198 : vector<16x128xf32> to vector<16x128xbf16>
    %c0_112 = arith.constant 0 : index
    %c0_113 = arith.constant 0 : index
    %200 = vector.load %arg8[%c0_112, %c0_113] : memref<128x128xbf16, #tpu.memory_space<vmem>>, vector<128x128xbf16>
    %cst_114 = arith.constant dense<0.000000e+00> : vector<16x128xf32>
    %201 = tpu.matmul %199, %200, %cst_114 {dimension_numbers = #tpu.dot_dimension_numbers<[1], [0], [0], [1], [0, 0, 1, 1], [], []>} : vector<16x128xbf16>, vector<128x128xbf16>, vector<16x128xf32> -> vector<16x128xf32>
    %c0_115 = arith.constant 0 : index
    %c0_116 = arith.constant 0 : index
    %202 = vector.load %arg9[%c0_115, %c0_116] : memref<1x128xf32, #tpu.memory_space<vmem>>, vector<1x128xf32>
    %203 = vector.broadcast %202 : vector<1x128xf32> to vector<16x128xf32>
    %204 = arith.addf %201, %203 : vector<16x128xf32>
    %cst_117 = arith.constant 0.000000e+00 : f32
    %205 = vector.broadcast %cst_117 : f32 to vector<16x128xf32>
    %206 = arith.maximumf %204, %205 : vector<16x128xf32>
    %207 = arith.truncf %206 : vector<16x128xf32> to vector<16x128xbf16>
    %c0_118 = arith.constant 0 : index
    %c0_119 = arith.constant 0 : index
    %208 = vector.load %arg10[%c0_118, %c0_119] : memref<128x128xbf16, #tpu.memory_space<vmem>>, vector<128x128xbf16>
    %cst_120 = arith.constant dense<0.000000e+00> : vector<16x128xf32>
    %209 = tpu.matmul %207, %208, %cst_120 {dimension_numbers = #tpu.dot_dimension_numbers<[1], [0], [0], [1], [0, 0, 1, 1], [], []>} : vector<16x128xbf16>, vector<128x128xbf16>, vector<16x128xf32> -> vector<16x128xf32>
    %c0_121 = arith.constant 0 : index
    %c0_122 = arith.constant 0 : index
    %210 = vector.load %arg11[%c0_121, %c0_122] : memref<1x128xf32, #tpu.memory_space<vmem>>, vector<1x128xf32>
    %211 = vector.broadcast %210 : vector<1x128xf32> to vector<16x128xf32>
    %212 = arith.addf %209, %211 : vector<16x128xf32>
    %c0_123 = arith.constant 0 : index
    %c0_124 = arith.constant 0 : index
    %213 = vector.load %arg12[%c0_123, %c0_124] : memref<16x128xf32, #tpu.memory_space<vmem>>, vector<16x128xf32>
    tpu.vector_store %arg12[%c0_123, %c0_124], %212 {strides = array<i32>} : memref<16x128xf32, #tpu.memory_space<vmem>>, vector<16x128xf32>,
    return
  }
  func.func @transform_0(%arg0: i32) -> (i32, i32, i32) {
    %c0_i32 = arith.constant 0 : i32
    %c0_i32_0 = arith.constant 0 : i32
    %c0_i32_1 = arith.constant 0 : i32
    return %c0_i32, %arg0, %c0_i32_0 : i32, i32, i32
  }
  func.func @transform_1(%arg0: i32) -> (i32, i32, i32) {
    %c0_i32 = arith.constant 0 : i32
    %c0_i32_0 = arith.constant 0 : i32
    %c0_i32_1 = arith.constant 0 : i32
    %c0_i32_2 = arith.constant 0 : i32
    return %c0_i32, %c0_i32_0, %c0_i32_1 : i32, i32, i32
  }
  func.func @transform_2(%arg0: i32) -> (i32, i32) {
    %c0_i32 = arith.constant 0 : i32
    %c0_i32_0 = arith.constant 0 : i32
    %c0_i32_1 = arith.constant 0 : i32
    return %c0_i32, %c0_i32_0 : i32, i32
  }
  func.func @transform_3(%arg0: i32) -> (i32, i32, i32) {
    %c0_i32 = arith.constant 0 : i32
    %c0_i32_0 = arith.constant 0 : i32
    %c0_i32_1 = arith.constant 0 : i32
    %c0_i32_2 = arith.constant 0 : i32
    return %c0_i32, %c0_i32_0, %c0_i32_1 : i32, i32, i32
  }
  func.func @transform_4(%arg0: i32) -> (i32, i32) {
    %c0_i32 = arith.constant 0 : i32
    %c0_i32_0 = arith.constant 0 : i32
    %c0_i32_1 = arith.constant 0 : i32
    return %c0_i32, %c0_i32_0 : i32, i32
  }
  func.func @transform_5(%arg0: i32) -> (i32, i32, i32) {
    %c0_i32 = arith.constant 0 : i32
    %c0_i32_0 = arith.constant 0 : i32
    %c0_i32_1 = arith.constant 0 : i32
    %c0_i32_2 = arith.constant 0 : i32
    return %c0_i32, %c0_i32_0, %c0_i32_1 : i32, i32, i32
  }
  func.func @transform_6(%arg0: i32) -> (i32, i32) {
    %c0_i32 = arith.constant 0 : i32
    %c0_i32_0 = arith.constant 0 : i32
    %c0_i32_1 = arith.constant 0 : i32
    return %c0_i32, %c0_i32_0 : i32, i32
  }
  func.func @transform_7(%arg0: i32) -> (i32, i32) {
    %c0_i32 = arith.constant 0 : i32
    %c0_i32_0 = arith.constant 0 : i32
    %c0_i32_1 = arith.constant 0 : i32
    return %c0_i32, %c0_i32_0 : i32, i32
  }
  func.func @transform_8(%arg0: i32) -> (i32, i32) {
    %c0_i32 = arith.constant 0 : i32
    %c0_i32_0 = arith.constant 0 : i32
    %c0_i32_1 = arith.constant 0 : i32
    return %c0_i32, %c0_i32_0 : i32, i32
  }
  func.func @transform_9(%arg0: i32) -> (i32, i32) {
    %c0_i32 = arith.constant 0 : i32
    %c0_i32_0 = arith.constant 0 : i32
    %c0_i32_1 = arith.constant 0 : i32
    return %c0_i32, %c0_i32_0 : i32, i32
  }
  func.func @transform_10(%arg0: i32) -> (i32, i32) {
    %c0_i32 = arith.constant 0 : i32
    %c0_i32_0 = arith.constant 0 : i32
    %c0_i32_1 = arith.constant 0 : i32
    return %c0_i32, %c0_i32_0 : i32, i32
  }
  func.func @transform_11(%arg0: i32) -> (i32, i32) {
    %c0_i32 = arith.constant 0 : i32
    %c0_i32_0 = arith.constant 0 : i32
    return %arg0, %c0_i32 : i32, i32
  }
}

</mosaic_0001>

<llo_original>
// kernel: net_forward.1
$region0: #{net_forward.1}
  #allocation0 [shape = 'u32[]', space=smem, size = 0x4, offset = 0x4, fixed_abs, tag = 'smem constant byte address 0x4 - core index']
  #allocation1 [shape = 'u32[144,128]{1,0:T(1,128)}', space=vmem, size = 0x12000, scoped, tag = 'internal scratch']
  %s0 = inlined_call_operand.vmem [shape: bf16[32,16,96], index: 0, kind: input, shape index: {}]
  %s1 = inlined_call_operand.hbm [shape: bf16[5,96,256], index: 1, kind: input, shape index: {}]
  %s2 = inlined_call_operand.vmem [shape: f32[1,256], index: 2, kind: input, shape index: {}]
  %s3 = inlined_call_operand.vmem [shape: bf16[5,128,256], index: 3, kind: input, shape index: {}]
  %s4 = inlined_call_operand.vmem [shape: f32[1,256], index: 4, kind: input, shape index: {}]
  %s5 = inlined_call_operand.hbm [shape: bf16[5,128,128], index: 5, kind: input, shape index: {}]
  %s6 = inlined_call_operand.vmem [shape: f32[1,128], index: 6, kind: input, shape index: {}]
  %s7 = inlined_call_operand.vmem [shape: bf16[128,128], index: 7, kind: input, shape index: {}]
  %s8 = inlined_call_operand.vmem [shape: f32[1,128], index: 8, kind: input, shape index: {}]
  %s9 = inlined_call_operand.vmem [shape: bf16[128,128], index: 9, kind: input, shape index: {}]
  %s10 = inlined_call_operand.vmem [shape: f32[1,128], index: 10, kind: input, shape index: {}]
  %s11 = inlined_call_operand.vmem [shape: f32[16,128], index: 11, kind: output, shape index: {}]
  %s12 = sld [smem:[#allocation0]]
  $region62: #{net_forward.1} parent=0
    _
  %s14 = ssub.s32 1, %s12
  %s15 = scalar_select 0, %s14, %s12
  $region1: #{net_forward.1} parent=0
    #allocation2 [shape = 'u8[245760]{0}', space=vmem, size = 0x3c000, scoped, tag = 'input window, operand 1, single buffered']
    #allocation3 [shape = 's32[1]{0}', space=sflag, size = 0x4, scoped, tag = 'scoped memory for net_forward.1']
    #allocation4 [shape = 'u8[163840]{0}', space=vmem, size = 0x28000, scoped, tag = 'input window, operand 5, single buffered']
    #allocation5 [shape = 's32[1]{0}', space=sflag, size = 0x4, scoped, tag = 'scoped memory for net_forward.1']
    %16 = vsyncpa [#allocation3], 0
    %17 = vsyncpa [#allocation5], 0
    // Predicated region
    $region2: #{net_forward.1} parent=1 // pred_check
      _
    $region3: #{net_forward.1} parent=1 // pred_check_branch
      %19 = sbr.rel (0) target = $region5
    $region4: #{net_forward.1} parent=1 // pred_region
      _
    $region5: #{net_forward.1} parent=1 // pred_fallthru
      _
    // Predicated region
    $region6: #{net_forward.1} parent=1 // pred_check
      _
    $region7: #{net_forward.1} parent=1 // pred_check_branch
      %21 = sbr.rel (0) target = $region9
    $region8: #{net_forward.1} parent=1 // pred_region
      %s23 = ssub.s32 7680, 7680
      %24 = vsyncadd [#allocation3], %s23
      %s25 = sshll.u32 [#allocation2], 4
      %s26 = int_to_ptr.vmem [resolvable:$true] %s25
      %31 = dma.hbm_to_vmem [thread:$0]  %s1, 7680, %s26, [#allocation3], 128, 128, 8
    $region9: #{net_forward.1} parent=1 // pred_fallthru
      _
    // Predicated region
    $region10: #{net_forward.1} parent=1 // pred_check
      _
    $region11: #{net_forward.1} parent=1 // pred_check_branch
      %33 = sbr.rel (0) target = $region13
    $region12: #{net_forward.1} parent=1 // pred_region
      _
    $region13: #{net_forward.1} parent=1 // pred_fallthru
      _
    // Predicated region
    $region14: #{net_forward.1} parent=1 // pred_check
      _
    $region15: #{net_forward.1} parent=1 // pred_check_branch
      %35 = sbr.rel (0) target = $region17
    $region16: #{net_forward.1} parent=1 // pred_region
      _
    $region17: #{net_forward.1} parent=1 // pred_fallthru
      _
    // Predicated region
    $region18: #{net_forward.1} parent=1 // pred_check
      _
    $region19: #{net_forward.1} parent=1 // pred_check_branch
      %37 = sbr.rel (0) target = $region21
    $region20: #{net_forward.1} parent=1 // pred_region
      _
    $region21: #{net_forward.1} parent=1 // pred_fallthru
      _
    // Predicated region
    $region22: #{net_forward.1} parent=1 // pred_check
      _
    $region23: #{net_forward.1} parent=1 // pred_check_branch
      %39 = sbr.rel (0) target = $region25
    $region24: #{net_forward.1} parent=1 // pred_region
      %s41 = ssub.s32 5120, 5120
      %42 = vsyncadd [#allocation5], %s41
      %s43 = sshll.u32 [#allocation4], 4
      %s44 = int_to_ptr.vmem [resolvable:$true] %s43
      %49 = dma.hbm_to_vmem [thread:$0]  %s5, 5120, %s44, [#allocation5], 64, 64, 4
    $region25: #{net_forward.1} parent=1 // pred_fallthru
      _
    // Predicated region
    $region26: #{net_forward.1} parent=1 // pred_check
      _
    $region27: #{net_forward.1} parent=1 // pred_check_branch
      %51 = sbr.rel (0) target = $region29
    $region28: #{net_forward.1} parent=1 // pred_region
      _
    $region29: #{net_forward.1} parent=1 // pred_fallthru
      _
    // Predicated region
    $region30: #{net_forward.1} parent=1 // pred_check
      _
    $region31: #{net_forward.1} parent=1 // pred_check_branch
      %53 = sbr.rel (0) target = $region33
    $region32: #{net_forward.1} parent=1 // pred_region
      _
    $region33: #{net_forward.1} parent=1 // pred_fallthru
      _
    // Predicated region
    $region34: #{net_forward.1} parent=1 // pred_check
      _
    $region35: #{net_forward.1} parent=1 // pred_check_branch
      %55 = sbr.rel (0) target = $region37
    $region36: #{net_forward.1} parent=1 // pred_region
      _
    $region37: #{net_forward.1} parent=1 // pred_fallthru
      _
    // Predicated region
    $region38: #{net_forward.1} parent=1 // pred_check
      _
    $region39: #{net_forward.1} parent=1 // pred_check_branch
      %57 = sbr.rel (0) target = $region41
    $region40: #{net_forward.1} parent=1 // pred_region
      _
    $region41: #{net_forward.1} parent=1 // pred_fallthru
      _
    // Predicated region
    $region42: #{net_forward.1} parent=1 // pred_check
      _
    $region43: #{net_forward.1} parent=1 // pred_check_branch
      %59 = sbr.rel (0) target = $region45
    $region44: #{net_forward.1} parent=1 // pred_region
      _
    $region45: #{net_forward.1} parent=1 // pred_fallthru
      _
    // Predicated region
    $region46: #{net_forward.1} parent=1 // pred_check
      _
    $region47: #{net_forward.1} parent=1 // pred_check_branch
      %61 = sbr.rel (0) target = $region49
    $region48: #{net_forward.1} parent=1 // pred_region
      %62 = dma.done [#allocation3], 7680
    $region49: #{net_forward.1} parent=1 // pred_fallthru
      _
    // Predicated region
    $region50: #{net_forward.1} parent=1 // pred_check
      _
    $region51: #{net_forward.1} parent=1 // pred_check_branch
      %64 = sbr.rel (0) target = $region53
    $region52: #{net_forward.1} parent=1 // pred_region
      %65 = dma.done [#allocation5], 5120
    $region53: #{net_forward.1} parent=1 // pred_fallthru
      _
    %v67 = vld [vmem:[%s0] sm:$0xf]
    %v68 = vld [vmem:[%s0 + $0x4] sm:$0xf]
    %v69 = vld [vmem:[%s0 + $0x8] sm:$0xf]
    %v70 = vld [vmem:[%s0 + $0xc] sm:$0xf]
    %v71 = vld [vmem:[%s0 + $0x10] sm:$0xf]
    %v72 = vld [vmem:[%s0 + $0x14] sm:$0xf]
    %v73 = vld [vmem:[%s0 + $0x18] sm:$0xf]
    %v74 = vld [vmem:[%s0 + $0x1c] sm:$0xf]
    %v75 = vld [vmem:[%s0 + $0x20] sm:$0xf]
    %v76 = vld [vmem:[%s0 + $0x24] sm:$0xf]
    %v77 = vld [vmem:[%s0 + $0x28] sm:$0xf]
    %v78 = vld [vmem:[%s0 + $0x2c] sm:$0xf]
    %v79 = vld [vmem:[%s0 + $0x30] sm:$0xf]
    %v80 = vld [vmem:[%s0 + $0x34] sm:$0xf]
    %v81 = vld [vmem:[%s0 + $0x38] sm:$0xf]
    %v82 = vld [vmem:[%s0 + $0x3c] sm:$0xf]
    %v83 = vld [vmem:[%s0 + $0x40] sm:$0xf]
    %v84 = vld [vmem:[%s0 + $0x44] sm:$0xf]
    %v85 = vld [vmem:[%s0 + $0x48] sm:$0xf]
    %v86 = vld [vmem:[%s0 + $0x4c] sm:$0xf]
    %v87 = vld [vmem:[%s0 + $0x50] sm:$0xf]
    %v88 = vld [vmem:[%s0 + $0x54] sm:$0xf]
    %v89 = vld [vmem:[%s0 + $0x58] sm:$0xf]
    %v90 = vld [vmem:[%s0 + $0x5c] sm:$0xf]
    %v91 = vld [vmem:[%s0 + $0x60] sm:$0xf]
    %v92 = vld [vmem:[%s0 + $0x64] sm:$0xf]
    %v93 = vld [vmem:[%s0 + $0x68] sm:$0xf]
    %v94 = vld [vmem:[%s0 + $0x6c] sm:$0xf]
    %v95 = vld [vmem:[%s0 + $0x70] sm:$0xf]
    %v96 = vld [vmem:[%s0 + $0x74] sm:$0xf]
    %v97 = vld [vmem:[%s0 + $0x78] sm:$0xf]
    %v98 = vld [vmem:[%s0 + $0x7c] sm:$0xf]
    %v99 = vld [vmem:[%s0 + $0x80] sm:$0xf]
    %v100 = vld [vmem:[%s0 + $0x84] sm:$0xf]
    %v101 = vld [vmem:[%s0 + $0x88] sm:$0xf]
    %v102 = vld [vmem:[%s0 + $0x8c] sm:$0xf]
    %v103 = vld [vmem:[%s0 + $0x90] sm:$0xf]
    %v104 = vld [vmem:[%s0 + $0x94] sm:$0xf]
    %v105 = vld [vmem:[%s0 + $0x98] sm:$0xf]
    %v106 = vld [vmem:[%s0 + $0x9c] sm:$0xf]
    %v107 = vld [vmem:[%s0 + $0xa0] sm:$0xf]
    %v108 = vld [vmem:[%s0 + $0xa4] sm:$0xf]
    %v109 = vld [vmem:[%s0 + $0xa8] sm:$0xf]
    %v110 = vld [vmem:[%s0 + $0xac] sm:$0xf]
    %v111 = vld [vmem:[%s0 + $0xb0] sm:$0xf]
    %v112 = vld [vmem:[%s0 + $0xb4] sm:$0xf]
    %v113 = vld [vmem:[%s0 + $0xb8] sm:$0xf]
    %v114 = vld [vmem:[%s0 + $0xbc] sm:$0xf]
    %v115 = vld [vmem:[%s0 + $0xc0] sm:$0xf]
    %v116 = vld [vmem:[%s0 + $0xc4] sm:$0xf]
    %v117 = vld [vmem:[%s0 + $0xc8] sm:$0xf]
    %v118 = vld [vmem:[%s0 + $0xcc] sm:$0xf]
    %v119 = vld [vmem:[%s0 + $0xd0] sm:$0xf]
    %v120 = vld [vmem:[%s0 + $0xd4] sm:$0xf]
    %v121 = vld [vmem:[%s0 + $0xd8] sm:$0xf]
    %v122 = vld [vmem:[%s0 + $0xdc] sm:$0xf]
    %v123 = vld [vmem:[%s0 + $0xe0] sm:$0xf]
    %v124 = vld [vmem:[%s0 + $0xe4] sm:$0xf]
    %v125 = vld [vmem:[%s0 + $0xe8] sm:$0xf]
    %v126 = vld [vmem:[%s0 + $0xec] sm:$0xf]
    %v127 = vld [vmem:[%s0 + $0xf0] sm:$0xf]
    %v128 = vld [vmem:[%s0 + $0xf4] sm:$0xf]
    %v129 = vld [vmem:[%s0 + $0xf8] sm:$0xf]
    %v130 = vld [vmem:[%s0 + $0xfc] sm:$0xf]
    %v131 = vld [vmem:[#allocation2] sm:$0xff]
    %v132 = vld [vmem:[#allocation2 + $0x8] sm:$0xff]
    %v133 = vld [vmem:[#allocation2 + $0x10] sm:$0xff]
    %v134 = vld [vmem:[#allocation2 + $0x18] sm:$0xff]
    %v135 = vld [vmem:[#allocation2 + $0x20] sm:$0xff]
    %v136 = vld [vmem:[#allocation2 + $0x28] sm:$0xff]
    %v137 = vld [vmem:[#allocation2 + $0x30] sm:$0xff]
    %v138 = vld [vmem:[#allocation2 + $0x38] sm:$0xff]
    %v139 = vld [vmem:[#allocation2 + $0x40] sm:$0xff]
    %v140 = vld [vmem:[#allocation2 + $0x48] sm:$0xff]
    %v141 = vld [vmem:[#allocation2 + $0x50] sm:$0xff]
    %v142 = vld [vmem:[#allocation2 + $0x58] sm:$0xff]
    %s143 = scalar_lea.vmem [#allocation2], 96
    %v144 = vld [vmem:[%s143] sm:$0xff]
    %v145 = vld [vmem:[%s143 + $0x8] sm:$0xff]
    %v146 = vld [vmem:[%s143 + $0x10] sm:$0xff]
    %v147 = vld [vmem:[%s143 + $0x18] sm:$0xff]
    %v148 = vld [vmem:[%s143 + $0x20] sm:$0xff]
    %v149 = vld [vmem:[%s143 + $0x28] sm:$0xff]
    %v150 = vld [vmem:[%s143 + $0x30] sm:$0xff]
    %v151 = vld [vmem:[%s143 + $0x38] sm:$0xff]
    %v152 = vld [vmem:[%s143 + $0x40] sm:$0xff]
    %v153 = vld [vmem:[%s143 + $0x48] sm:$0xff]
    %v154 = vld [vmem:[%s143 + $0x50] sm:$0xff]
    %v155 = vld [vmem:[%s143 + $0x58] sm:$0xff]
    %v184 = vunpack.c.l.b16 %v69
    %v185 = vunpack.c.l.b16 %v70
    %v186 = vunpack.c.l.b16 %v73
    %v187 = vunpack.c.l.b16 %v74
    %v188 = vunpack.c.l.b16 %v77
    %v189 = vunpack.c.l.b16 %v78
    %v190 = vunpack.c.l.b16 %v81
    %v191 = vunpack.c.l.b16 %v82
    %v192 = vunpack.c.l.b16 %v85
    %v193 = vunpack.c.l.b16 %v86
    %v194 = vunpack.c.l.b16 %v89
    %v195 = vunpack.c.l.b16 %v90
    %v196 = vunpack.c.l.b16 %v93
    %v197 = vunpack.c.l.b16 %v94
    %v198 = vunpack.c.l.b16 %v97
    %v199 = vunpack.c.l.b16 %v98
    %v200 = vunpack.c.l.b16 %v101
    %v201 = vunpack.c.l.b16 %v102
    %v202 = vunpack.c.l.b16 %v105
    %v203 = vunpack.c.l.b16 %v106
    %v204 = vunpack.c.l.b16 %v109
    %v205 = vunpack.c.l.b16 %v110
    %v206 = vunpack.c.l.b16 %v113
    %v207 = vunpack.c.l.b16 %v114
    %v208 = vunpack.c.l.b16 %v117
    %v209 = vunpack.c.l.b16 %v118
    %v210 = vunpack.c.l.b16 %v121
    %v211 = vunpack.c.l.b16 %v122
    %v212 = vpack.c.b16 %v185, %v184
    %v213 = vpack.c.b16 %v187, %v186
    %v214 = vpack.c.b16 %v189, %v188
    %v215 = vpack.c.b16 %v191, %v190
    %v216 = vpack.c.b16 %v193, %v192
    %v217 = vpack.c.b16 %v195, %v194
    %v218 = vpack.c.b16 %v197, %v196
    %v219 = vpack.c.b16 %v199, %v198
    %v220 = vpack.c.b16 %v201, %v200
    %v221 = vpack.c.b16 %v203, %v202
    %v222 = vpack.c.b16 %v205, %v204
    %v223 = vpack.c.b16 %v207, %v206
    %v224 = vpack.c.b16 %v209, %v208
    %v225 = vpack.c.b16 %v211, %v210
    %v238 = vunpack.c.l.b16 %v144
    %v239 = vunpack.c.h.b16 %v144
    %v240 = vunpack.c.l.b16 %v145
    %v241 = vunpack.c.h.b16 %v145
    %v242 = vunpack.c.l.b16 %v146
    %v243 = vunpack.c.h.b16 %v146
    %v244 = vunpack.c.l.b16 %v147
    %v245 = vunpack.c.h.b16 %v147
    %v246 = vunpack.c.l.b16 %v148
    %v247 = vunpack.c.h.b16 %v148
    %v248 = vunpack.c.l.b16 %v149
    %v249 = vunpack.c.h.b16 %v149
    %v250 = vunpack.c.l.b16 %v150
    %v251 = vunpack.c.h.b16 %v150
    %v252 = vunpack.c.l.b16 %v151
    %v253 = vunpack.c.h.b16 %v151
    %v254 = vunpack.c.l.b16 %v152
    %v255 = vunpack.c.h.b16 %v152
    %v256 = vunpack.c.l.b16 %v153
    %v257 = vunpack.c.h.b16 %v153
    %v258 = vunpack.c.l.b16 %v154
    %v259 = vunpack.c.h.b16 %v154
    %v260 = vunpack.c.l.b16 %v155
    %v261 = vunpack.c.h.b16 %v155
    %v262 = vpack.c.b16 %v240, %v238
    %v263 = vpack.c.b16 %v241, %v239
    %v264 = vpack.c.b16 %v244, %v242
    %v265 = vpack.c.b16 %v245, %v243
    %v266 = vpack.c.b16 %v248, %v246
    %v267 = vpack.c.b16 %v249, %v247
    %v268 = vpack.c.b16 %v252, %v250
    %v269 = vpack.c.b16 %v253, %v251
    %v270 = vpack.c.b16 %v256, %v254
    %v271 = vpack.c.b16 %v257, %v255
    %v272 = vpack.c.b16 %v260, %v258
    %v273 = vpack.c.b16 %v261, %v259
    %vm286 = vcmask 785408
    %v288 = vsel %vm286, %v212, 0
    %v291 = vsel %vm286, %v213, 0
    %v294 = vsel %vm286, %v214, 0
    %v297 = vsel %vm286, %v215, 0
    %v300 = vsel %vm286, %v216, 0
    %v303 = vsel %vm286, %v217, 0
    %v306 = vsel %vm286, %v218, 0
    %v309 = vsel %vm286, %v219, 0
    %v312 = vsel %vm286, %v220, 0
    %v315 = vsel %vm286, %v221, 0
    %v318 = vsel %vm286, %v222, 0
    %v321 = vsel %vm286, %v223, 0
    %v324 = vsel %vm286, %v224, 0
    %v327 = vsel %vm286, %v225, 0
    %329 = vmatprep.subr.bf16.mxu0 %v263
    %330 = vmatpush1.bf16.msra.mxu0 %v262
    %331 = vmatprep.subr.bf16.mxu0 %v265
    %332 = vmatpush1.bf16.msra.mxu0 %v264
    %333 = vmatprep.subr.bf16.mxu0 %v267
    %334 = vmatpush1.bf16.msra.mxu0 %v266
    %335 = vmatprep.subr.bf16.mxu0 %v269
    %336 = vmatpush1.bf16.msra.mxu0 %v268
    %337 = vmatprep.subr.bf16.mxu0 %v271
    %338 = vmatpush1.bf16.msra.mxu0 %v270
    %339 = vmatprep.subr.bf16.mxu0 %v273
    %340 = vmatpush1.bf16.msra.mxu0 %v272
    %341 = vmatprep.subr.bf16.mxu0 0
    %342 = vmatpush1.bf16.msra.mxu0 0
    %343 = vmatprep.subr.bf16.mxu0 0
    %344 = vmatpush1.bf16.msra.mxu0 0
    %345 = vmatprep.subr.bf16.mxu0 0
    %346 = vmatpush1.bf16.msra.mxu0 0
    %347 = vmatprep.subr.bf16.mxu0 0
    %348 = vmatpush1.bf16.msra.mxu0 0
    %349 = vmatprep.subr.bf16.mxu0 0
    %350 = vmatpush1.bf16.msra.mxu0 0
    %351 = vmatprep.subr.bf16.mxu0 0
    %352 = vmatpush1.bf16.msra.mxu0 0
    %353 = vmatprep.subr.bf16.mxu0 0
    %354 = vmatpush1.bf16.msra.mxu0 0
    %355 = vmatprep.subr.bf16.mxu0 0
    %356 = vmatpush1.bf16.msra.mxu0 0
    %357 = vmatprep.subr.bf16.mxu0 0
    %358 = vmatpush1.bf16.msra.mxu0 0
    %359 = vmatprep.subr.bf16.mxu0 0
    %360 = vmatpush1.bf16.msra.mxu0 0
    %361 = vmatprep.mubr.bf16.mxu0 0
    %362 = vmatmul.mubr.bf16.gmra.mrb[0].mxu0 %v288
    %v363 = vpop.f32.mrb[0].mxu0
    %v364 = vadd.f32 0.0, %v363
    %v365 = vpop.f32.mrb[0].mxu0
    %v366 = vadd.f32 0.0, %v365
    %v367 = vpop.f32.mrb[0].mxu0
    %v368 = vadd.f32 0.0, %v367
    %v369 = vpop.f32.mrb[0].mxu0
    %v370 = vadd.f32 0.0, %v369
    %371 = vmatprep.mubr.bf16.mxu0 0
    %372 = vmatmul.mubr.bf16.gmra.mrb[0].mxu0 %v291
    %v373 = vpop.f32.mrb[0].mxu0
    %v374 = vadd.f32 0.0, %v373
    %v375 = vpop.f32.mrb[0].mxu0
    %v376 = vadd.f32 0.0, %v375
    %v377 = vpop.f32.mrb[0].mxu0
    %v378 = vadd.f32 0.0, %v377
    %v379 = vpop.f32.mrb[0].mxu0
    %v380 = vadd.f32 0.0, %v379
    %381 = vmatprep.mubr.bf16.mxu0 0
    %382 = vmatmul.mubr.bf16.gmra.mrb[0].mxu0 %v294
    %v383 = vpop.f32.mrb[0].mxu0
    %v384 = vadd.f32 0.0, %v383
    %v385 = vpop.f32.mrb[0].mxu0
    %v386 = vadd.f32 0.0, %v385
    %v387 = vpop.f32.mrb[0].mxu0
    %v388 = vadd.f32 0.0, %v387
    %v389 = vpop.f32.mrb[0].mxu0
    %v390 = vadd.f32 0.0, %v389
    %391 = vmatprep.mubr.bf16.mxu0 0
    %392 = vmatmul.mubr.bf16.gmra.mrb[0].mxu0 %v297
    %v393 = vpop.f32.mrb[0].mxu0
    %v394 = vadd.f32 0.0, %v393
    %v395 = vpop.f32.mrb[0].mxu0
    %v396 = vadd.f32 0.0, %v395
    %v397 = vpop.f32.mrb[0].mxu0
    %v398 = vadd.f32 0.0, %v397
    %v399 = vpop.f32.mrb[0].mxu0
    %v400 = vadd.f32 0.0, %v399
    %401 = vmatprep.mubr.bf16.mxu0 0
    %402 = vmatmul.mubr.bf16.gmra.mrb[0].mxu0 %v300
    %v403 = vpop.f32.mrb[0].mxu0
    %v404 = vadd.f32 0.0, %v403
    %v405 = vpop.f32.mrb[0].mxu0
    %v406 = vadd.f32 0.0, %v405
    %v407 = vpop.f32.mrb[0].mxu0
    %v408 = vadd.f32 0.0, %v407
    %v409 = vpop.f32.mrb[0].mxu0
    %v410 = vadd.f32 0.0, %v409
    %411 = vmatprep.mubr.bf16.mxu0 0
    %412 = vmatmul.mubr.bf16.gmra.mrb[0].mxu0 %v303
    %v413 = vpop.f32.mrb[0].mxu0
    %v414 = vadd.f32 0.0, %v413
    %v415 = vpop.f32.mrb[0].mxu0
    %v416 = vadd.f32 0.0, %v415
    %v417 = vpop.f32.mrb[0].mxu0
    %v418 = vadd.f32 0.0, %v417
    %v419 = vpop.f32.mrb[0].mxu0
    %v420 = vadd.f32 0.0, %v419
    %421 = vmatprep.mubr.bf16.mxu0 0
    %422 = vmatmul.mubr.bf16.gmra.mrb[0].mxu0 %v306
    %v423 = vpop.f32.mrb[0].mxu0
    %v424 = vadd.f32 0.0, %v423
    %v425 = vpop.f32.mrb[0].mxu0
    %v426 = vadd.f32 0.0, %v425
    %v427 = vpop.f32.mrb[0].mxu0
    %v428 = vadd.f32 0.0, %v427
    %v429 = vpop.f32.mrb[0].mxu0
    %v430 = vadd.f32 0.0, %v429
    %431 = vmatprep.mubr.bf16.mxu0 0
    %432 = vmatmul.mubr.bf16.gmra.mrb[0].mxu0 %v309
    %v433 = vpop.f32.mrb[0].mxu0
    %v434 = vadd.f32 0.0, %v433
    %v435 = vpop.f32.mrb[0].mxu0
    %v436 = vadd.f32 0.0, %v435
    %v437 = vpop.f32.mrb[0].mxu0
    %v438 = vadd.f32 0.0, %v437
    %v439 = vpop.f32.mrb[0].mxu0
    %v440 = vadd.f32 0.0, %v439
    %441 = vmatprep.mubr.bf16.mxu0 0
    %442 = vmatmul.mubr.bf16.gmra.mrb[0].mxu0 %v312
    %v443 = vpop.f32.mrb[0].mxu0
    %v444 = vadd.f32 0.0, %v443
    %v445 = vpop.f32.mrb[0].mxu0
    %v446 = vadd.f32 0.0, %v445
    %v447 = vpop.f32.mrb[0].mxu0
    %v448 = vadd.f32 0.0, %v447
    %v449 = vpop.f32.mrb[0].mxu0
    %v450 = vadd.f32 0.0, %v449
    %451 = vmatprep.mubr.bf16.mxu0 0
    %452 = vmatmul.mubr.bf16.gmra.mrb[0].mxu0 %v315
    %v453 = vpop.f32.mrb[0].mxu0
    %v454 = vadd.f32 0.0, %v453
    %v455 = vpop.f32.mrb[0].mxu0
    %v456 = vadd.f32 0.0, %v455
    %v457 = vpop.f32.mrb[0].mxu0
    %v458 = vadd.f32 0.0, %v457
    %v459 = vpop.f32.mrb[0].mxu0
    %v460 = vadd.f32 0.0, %v459
    %461 = vmatprep.mubr.bf16.mxu0 0
    %462 = vmatmul.mubr.bf16.gmra.mrb[0].mxu0 %v318
    %v463 = vpop.f32.mrb[0].mxu0
    %v464 = vadd.f32 0.0, %v463
    %v465 = vpop.f32.mrb[0].mxu0
    %v466 = vadd.f32 0.0, %v465
    %v467 = vpop.f32.mrb[0].mxu0
    %v468 = vadd.f32 0.0, %v467
    %v469 = vpop.f32.mrb[0].mxu0
    %v470 = vadd.f32 0.0, %v469
    %471 = vmatprep.mubr.bf16.mxu0 0
    %472 = vmatmul.mubr.bf16.gmra.mrb[0].mxu0 %v321
    %v473 = vpop.f32.mrb[0].mxu0
    %v474 = vadd.f32 0.0, %v473
    %v475 = vpop.f32.mrb[0].mxu0
    %v476 = vadd.f32 0.0, %v475
    %v477 = vpop.f32.mrb[0].mxu0
    %v478 = vadd.f32 0.0, %v477
    %v479 = vpop.f32.mrb[0].mxu0
    %v480 = vadd.f32 0.0, %v479
    %481 = vmatprep.mubr.bf16.mxu0 0
    %482 = vmatmul.mubr.bf16.gmra.mrb[0].mxu0 %v324
    %v483 = vpop.f32.mrb[0].mxu0
    %v484 = vadd.f32 0.0, %v483
    %v485 = vpop.f32.mrb[0].mxu0
    %v486 = vadd.f32 0.0, %v485
    %v487 = vpop.f32.mrb[0].mxu0
    %v488 = vadd.f32 0.0, %v487
    %v489 = vpop.f32.mrb[0].mxu0
    %v490 = vadd.f32 0.0, %v489
    %491 = vmatprep.mubr.bf16.mxu0 0
    %492 = vmatmul.mubr.bf16.gmra.mrb[0].mxu0 %v327
    %v493 = vpop.f32.mrb[0].mxu0
    %v494 = vadd.f32 0.0, %v493
    %v495 = vpop.f32.mrb[0].mxu0
    %v496 = vadd.f32 0.0, %v495
    %v497 = vpop.f32.mrb[0].mxu0
    %v498 = vadd.f32 0.0, %v497
    %v499 = vpop.f32.mrb[0].mxu0
    %v500 = vadd.f32 0.0, %v499
    %501 = vdwg.mxu0
    %v530 = vunpack.c.l.b16 %v67
    %v531 = vunpack.c.l.b16 %v68
    %v532 = vunpack.c.l.b16 %v71
    %v533 = vunpack.c.l.b16 %v72
    %v534 = vunpack.c.l.b16 %v75
    %v535 = vunpack.c.l.b16 %v76
    %v536 = vunpack.c.l.b16 %v79
    %v537 = vunpack.c.l.b16 %v80
    %v538 = vunpack.c.l.b16 %v83
    %v539 = vunpack.c.l.b16 %v84
    %v540 = vunpack.c.l.b16 %v87
    %v541 = vunpack.c.l.b16 %v88
    %v542 = vunpack.c.l.b16 %v91
    %v543 = vunpack.c.l.b16 %v92
    %v544 = vunpack.c.l.b16 %v95
    %v545 = vunpack.c.l.b16 %v96
    %v546 = vunpack.c.l.b16 %v99
    %v547 = vunpack.c.l.b16 %v100
    %v548 = vunpack.c.l.b16 %v103
    %v549 = vunpack.c.l.b16 %v104
    %v550 = vunpack.c.l.b16 %v107
    %v551 = vunpack.c.l.b16 %v108
    %v552 = vunpack.c.l.b16 %v111
    %v553 = vunpack.c.l.b16 %v112
    %v554 = vunpack.c.l.b16 %v115
    %v555 = vunpack.c.l.b16 %v116
    %v556 = vunpack.c.l.b16 %v119
    %v557 = vunpack.c.l.b16 %v120
    %v558 = vpack.c.b16 %v531, %v530
    %v559 = vpack.c.b16 %v533, %v532
    %v560 = vpack.c.b16 %v535, %v534
    %v561 = vpack.c.b16 %v537, %v536
    %v562 = vpack.c.b16 %v539, %v538
    %v563 = vpack.c.b16 %v541, %v540
    %v564 = vpack.c.b16 %v543, %v542
    %v565 = vpack.c.b16 %v545, %v544
    %v566 = vpack.c.b16 %v547, %v546
    %v567 = vpack.c.b16 %v549, %v548
    %v568 = vpack.c.b16 %v551, %v550
    %v569 = vpack.c.b16 %v553, %v552
    %v570 = vpack.c.b16 %v555, %v554
    %v571 = vpack.c.b16 %v557, %v556
    %v584 = vunpack.c.l.b16 %v131
    %v585 = vunpack.c.h.b16 %v131
    %v586 = vunpack.c.l.b16 %v132
    %v587 = vunpack.c.h.b16 %v132
    %v588 = vunpack.c.l.b16 %v133
    %v589 = vunpack.c.h.b16 %v133
    %v590 = vunpack.c.l.b16 %v134
    %v591 = vunpack.c.h.b16 %v134
    %v592 = vunpack.c.l.b16 %v135
    %v593 = vunpack.c.h.b16 %v135
    %v594 = vunpack.c.l.b16 %v136
    %v595 = vunpack.c.h.b16 %v136
    %v596 = vunpack.c.l.b16 %v137
    %v597 = vunpack.c.h.b16 %v137
    %v598 = vunpack.c.l.b16 %v138
    %v599 = vunpack.c.h.b16 %v138
    %v600 = vunpack.c.l.b16 %v139
    %v601 = vunpack.c.h.b16 %v139
    %v602 = vunpack.c.l.b16 %v140
    %v603 = vunpack.c.h.b16 %v140
    %v604 = vunpack.c.l.b16 %v141
    %v605 = vunpack.c.h.b16 %v141
    %v606 = vunpack.c.l.b16 %v142
    %v607 = vunpack.c.h.b16 %v142
    %v608 = vpack.c.b16 %v586, %v584
    %v609 = vpack.c.b16 %v587, %v585
    %v610 = vpack.c.b16 %v590, %v588
    %v611 = vpack.c.b16 %v591, %v589
    %v612 = vpack.c.b16 %v594, %v592
    %v613 = vpack.c.b16 %v595, %v593
    %v614 = vpack.c.b16 %v598, %v596
    %v615 = vpack.c.b16 %v599, %v597
    %v616 = vpack.c.b16 %v602, %v600
    %v617 = vpack.c.b16 %v603, %v601
    %v618 = vpack.c.b16 %v606, %v604
    %v619 = vpack.c.b16 %v607, %v605
    %v633 = vsel %vm286, %v558, 0
    %v636 = vsel %vm286, %v559, 0
    %v639 = vsel %vm286, %v560, 0
    %v642 = vsel %vm286, %v561, 0
    %v645 = vsel %vm286, %v562, 0
    %v648 = vsel %vm286, %v563, 0
    %v651 = vsel %vm286, %v564, 0
    %v654 = vsel %vm286, %v565, 0
    %v657 = vsel %vm286, %v566, 0
    %v660 = vsel %vm286, %v567, 0
    %v663 = vsel %vm286, %v568, 0
    %v666 = vsel %vm286, %v569, 0
    %v669 = vsel %vm286, %v570, 0
    %v672 = vsel %vm286, %v571, 0
    %674 = vmatprep.subr.bf16.mxu0 %v609
    %675 = vmatpush1.bf16.msra.mxu0 %v608
    %676 = vmatprep.subr.bf16.mxu0 %v611
    %677 = vmatpush1.bf16.msra.mxu0 %v610
    %678 = vmatprep.subr.bf16.mxu0 %v613
    %679 = vmatpush1.bf16.msra.mxu0 %v612
    %680 = vmatprep.subr.bf16.mxu0 %v615
    %681 = vmatpush1.bf16.msra.mxu0 %v614
    %682 = vmatprep.subr.bf16.mxu0 %v617
    %683 = vmatpush1.bf16.msra.mxu0 %v616
    %684 = vmatprep.subr.bf16.mxu0 %v619
    %685 = vmatpush1.bf16.msra.mxu0 %v618
    %686 = vmatprep.subr.bf16.mxu0 0
    %687 = vmatpush1.bf16.msra.mxu0 0
    %688 = vmatprep.subr.bf16.mxu0 0
    %689 = vmatpush1.bf16.msra.mxu0 0
    %690 = vmatprep.subr.bf16.mxu0 0
    %691 = vmatpush1.bf16.msra.mxu0 0
    %692 = vmatprep.subr.bf16.mxu0 0
    %693 = vmatpush1.bf16.msra.mxu0 0
    %694 = vmatprep.subr.bf16.mxu0 0
    %695 = vmatpush1.bf16.msra.mxu0 0
    %696 = vmatprep.subr.bf16.mxu0 0
    %697 = vmatpush1.bf16.msra.mxu0 0
    %698 = vmatprep.subr.bf16.mxu0 0
    %699 = vmatpush1.bf16.msra.mxu0 0
    %700 = vmatprep.subr.bf16.mxu0 0
    %701 = vmatpush1.bf16.msra.mxu0 0
    %702 = vmatprep.subr.bf16.mxu0 0
    %703 = vmatpush1.bf16.msra.mxu0 0
    %704 = vmatprep.subr.bf16.mxu0 0
    %705 = vmatpush1.bf16.msra.mxu0 0
    %706 = vmatprep.mubr.bf16.mxu0 0
    %707 = vmatmul.mubr.bf16.gmra.mrb[0].mxu0 %v633
    %v708 = vpop.f32.mrb[0].mxu0
    %v709 = vadd.f32 %v364, %v708
    %v710 = vpop.f32.mrb[0].mxu0
    %v711 = vadd.f32 %v366, %v710
    %v712 = vpop.f32.mrb[0].mxu0
    %v713 = vadd.f32 %v368, %v712
    %v714 = vpop.f32.mrb[0].mxu0
    %v715 = vadd.f32 %v370, %v714
    %716 = vmatprep.mubr.bf16.mxu0 0
    %717 = vmatmul.mubr.bf16.gmra.mrb[0].mxu0 %v636
    %v718 = vpop.f32.mrb[0].mxu0
    %v719 = vadd.f32 %v374, %v718
    %v720 = vpop.f32.mrb[0].mxu0
    %v721 = vadd.f32 %v376, %v720
    %v722 = vpop.f32.mrb[0].mxu0
    %v723 = vadd.f32 %v378, %v722
    %v724 = vpop.f32.mrb[0].mxu0
    %v725 = vadd.f32 %v380, %v724
    %726 = vmatprep.mubr.bf16.mxu0 0
    %727 = vmatmul.mubr.bf16.gmra.mrb[0].mxu0 %v639
    %v728 = vpop.f32.mrb[0].mxu0
    %v729 = vadd.f32 %v384, %v728
    %v730 = vpop.f32.mrb[0].mxu0
    %v731 = vadd.f32 %v386, %v730
    %v732 = vpop.f32.mrb[0].mxu0
    %v733 = vadd.f32 %v388, %v732
    %v734 = vpop.f32.mrb[0].mxu0
    %v735 = vadd.f32 %v390, %v734
    %736 = vmatprep.mubr.bf16.mxu0 0
    %737 = vmatmul.mubr.bf16.gmra.mrb[0].mxu0 %v642
    %v738 = vpop.f32.mrb[0].mxu0
    %v739 = vadd.f32 %v394, %v738
    %v740 = vpop.f32.mrb[0].mxu0
    %v741 = vadd.f32 %v396, %v740
    %v742 = vpop.f32.mrb[0].mxu0
    %v743 = vadd.f32 %v398, %v742
    %v744 = vpop.f32.mrb[0].mxu0
    %v745 = vadd.f32 %v400, %v744
    %746 = vmatprep.mubr.bf16.mxu0 0
    %747 = vmatmul.mubr.bf16.gmra.mrb[0].mxu0 %v645
    %v748 = vpop.f32.mrb[0].mxu0
    %v749 = vadd.f32 %v404, %v748
    %v750 = vpop.f32.mrb[0].mxu0
    %v751 = vadd.f32 %v406, %v750
    %v752 = vpop.f32.mrb[0].mxu0
    %v753 = vadd.f32 %v408, %v752
    %v754 = vpop.f32.mrb[0].mxu0
    %v755 = vadd.f32 %v410, %v754
    %756 = vmatprep.mubr.bf16.mxu0 0
    %757 = vmatmul.mubr.bf16.gmra.mrb[0].mxu0 %v648
    %v758 = vpop.f32.mrb[0].mxu0
    %v759 = vadd.f32 %v414, %v758
    %v760 = vpop.f32.mrb[0].mxu0
    %v761 = vadd.f32 %v416, %v760
    %v762 = vpop.f32.mrb[0].mxu0
    %v763 = vadd.f32 %v418, %v762
    %v764 = vpop.f32.mrb[0].mxu0
    %v765 = vadd.f32 %v420, %v764
    %766 = vmatprep.mubr.bf16.mxu0 0
    %767 = vmatmul.mubr.bf16.gmra.mrb[0].mxu0 %v651
    %v768 = vpop.f32.mrb[0].mxu0
    %v769 = vadd.f32 %v424, %v768
    %v770 = vpop.f32.mrb[0].mxu0
    %v771 = vadd.f32 %v426, %v770
    %v772 = vpop.f32.mrb[0].mxu0
    %v773 = vadd.f32 %v428, %v772
    %v774 = vpop.f32.mrb[0].mxu0
    %v775 = vadd.f32 %v430, %v774
    %776 = vmatprep.mubr.bf16.mxu0 0
    %777 = vmatmul.mubr.bf16.gmra.mrb[0].mxu0 %v654
    %v778 = vpop.f32.mrb[0].mxu0
    %v779 = vadd.f32 %v434, %v778
    %v780 = vpop.f32.mrb[0].mxu0
    %v781 = vadd.f32 %v436, %v780
    %v782 = vpop.f32.mrb[0].mxu0
    %v783 = vadd.f32 %v438, %v782
    %v784 = vpop.f32.mrb[0].mxu0
    %v785 = vadd.f32 %v440, %v784
    %786 = vmatprep.mubr.bf16.mxu0 0
    %787 = vmatmul.mubr.bf16.gmra.mrb[0].mxu0 %v657
    %v788 = vpop.f32.mrb[0].mxu0
    %v789 = vadd.f32 %v444, %v788
    %v790 = vpop.f32.mrb[0].mxu0
    %v791 = vadd.f32 %v446, %v790
    %v792 = vpop.f32.mrb[0].mxu0
    %v793 = vadd.f32 %v448, %v792
    %v794 = vpop.f32.mrb[0].mxu0
    %v795 = vadd.f32 %v450, %v794
    %796 = vmatprep.mubr.bf16.mxu0 0
    %797 = vmatmul.mubr.bf16.gmra.mrb[0].mxu0 %v660
    %v798 = vpop.f32.mrb[0].mxu0
    %v799 = vadd.f32 %v454, %v798
    %v800 = vpop.f32.mrb[0].mxu0
    %v801 = vadd.f32 %v456, %v800
    %v802 = vpop.f32.mrb[0].mxu0
    %v803 = vadd.f32 %v458, %v802
    %v804 = vpop.f32.mrb[0].mxu0
    %v805 = vadd.f32 %v460, %v804
    %806 = vmatprep.mubr.bf16.mxu0 0
    %807 = vmatmul.mubr.bf16.gmra.mrb[0].mxu0 %v663
    %v808 = vpop.f32.mrb[0].mxu0
    %v809 = vadd.f32 %v464, %v808
    %v810 = vpop.f32.mrb[0].mxu0
    %v811 = vadd.f32 %v466, %v810
    %v812 = vpop.f32.mrb[0].mxu0
    %v813 = vadd.f32 %v468, %v812
    %v814 = vpop.f32.mrb[0].mxu0
    %v815 = vadd.f32 %v470, %v814
    %816 = vmatprep.mubr.bf16.mxu0 0
    %817 = vmatmul.mubr.bf16.gmra.mrb[0].mxu0 %v666
    %v818 = vpop.f32.mrb[0].mxu0
    %v819 = vadd.f32 %v474, %v818
    %v820 = vpop.f32.mrb[0].mxu0
    %v821 = vadd.f32 %v476, %v820
    %v822 = vpop.f32.mrb[0].mxu0
    %v823 = vadd.f32 %v478, %v822
    %v824 = vpop.f32.mrb[0].mxu0
    %v825 = vadd.f32 %v480, %v824
    %826 = vmatprep.mubr.bf16.mxu0 0
    %827 = vmatmul.mubr.bf16.gmra.mrb[0].mxu0 %v669
    %v828 = vpop.f32.mrb[0].mxu0
    %v829 = vadd.f32 %v484, %v828
    %v830 = vpop.f32.mrb[0].mxu0
    %v831 = vadd.f32 %v486, %v830
    %v832 = vpop.f32.mrb[0].mxu0
    %v833 = vadd.f32 %v488, %v832
    %v834 = vpop.f32.mrb[0].mxu0
    %v835 = vadd.f32 %v490, %v834
    %836 = vmatprep.mubr.bf16.mxu0 0
    %837 = vmatmul.mubr.bf16.gmra.mrb[0].mxu0 %v672
    %v838 = vpop.f32.mrb[0].mxu0
    %v839 = vadd.f32 %v494, %v838
    %v840 = vpop.f32.mrb[0].mxu0
    %v841 = vadd.f32 %v496, %v840
    %v842 = vpop.f32.mrb[0].mxu0
    %v843 = vadd.f32 %v498, %v842
    %v844 = vpop.f32.mrb[0].mxu0
    %v845 = vadd.f32 %v500, %v844
    %846 = vdwg.mxu0
    %s847 = scalar_lea.vmem [#allocation2], 192
    %v848 = vld [vmem:[%s847] sm:$0xff]
    %v849 = vld [vmem:[%s847 + $0x8] sm:$0xff]
    %v850 = vld [vmem:[%s847 + $0x10] sm:$0xff]
    %v851 = vld [vmem:[%s847 + $0x18] sm:$0xff]
    %v852 = vld [vmem:[%s847 + $0x20] sm:$0xff]
    %v853 = vld [vmem:[%s847 + $0x28] sm:$0xff]
    %v854 = vld [vmem:[%s847 + $0x30] sm:$0xff]
    %v855 = vld [vmem:[%s847 + $0x38] sm:$0xff]
    %v856 = vld [vmem:[%s847 + $0x40] sm:$0xff]
    %v857 = vld [vmem:[%s847 + $0x48] sm:$0xff]
    %v858 = vld [vmem:[%s847 + $0x50] sm:$0xff]
    %v859 = vld [vmem:[%s847 + $0x58] sm:$0xff]
    %v862 = vunpack.c.l.b16 %v123
    %v863 = vunpack.c.l.b16 %v124
    %v864 = vpack.c.b16 %v863, %v862
    %v877 = vunpack.c.l.b16 %v848
    %v878 = vunpack.c.h.b16 %v848
    %v879 = vunpack.c.l.b16 %v849
    %v880 = vunpack.c.h.b16 %v849
    %v881 = vunpack.c.l.b16 %v850
    %v882 = vunpack.c.h.b16 %v850
    %v883 = vunpack.c.l.b16 %v851
    %v884 = vunpack.c.h.b16 %v851
    %v885 = vunpack.c.l.b16 %v852
    %v886 = vunpack.c.h.b16 %v852
    %v887 = vunpack.c.l.b16 %v853
    %v888 = vunpack.c.h.b16 %v853
    %v889 = vunpack.c.l.b16 %v854
    %v890 = vunpack.c.h.b16 %v854
    %v891 = vunpack.c.l.b16 %v855
    %v892 = vunpack.c.h.b16 %v855
    %v893 = vunpack.c.l.b16 %v856
    %v894 = vunpack.c.h.b16 %v856
    %v895 = vunpack.c.l.b16 %v857
    %v896 = vunpack.c.h.b16 %v857
    %v897 = vunpack.c.l.b16 %v858
    %v898 = vunpack.c.h.b16 %v858
    %v899 = vunpack.c.l.b16 %v859
    %v900 = vunpack.c.h.b16 %v859
    %v901 = vpack.c.b16 %v879, %v877
    %v902 = vpack.c.b16 %v880, %v878
    %v903 = vpack.c.b16 %v883, %v881
    %v904 = vpack.c.b16 %v884, %v882
    %v905 = vpack.c.b16 %v887, %v885
    %v906 = vpack.c.b16 %v888, %v886
    %v907 = vpack.c.b16 %v891, %v889
    %v908 = vpack.c.b16 %v892, %v890
    %v909 = vpack.c.b16 %v895, %v893
    %v910 = vpack.c.b16 %v896, %v894
    %v911 = vpack.c.b16 %v899, %v897
    %v912 = vpack.c.b16 %v900, %v898
    %v926 = vsel %vm286, %v864, 0
    %928 = vmatprep.subr.bf16.mxu0 %v902
    %929 = vmatpush1.bf16.msra.mxu0 %v901
    %930 = vmatprep.subr.bf16.mxu0 %v904
    %931 = vmatpush1.bf16.msra.mxu0 %v903
    %932 = vmatprep.subr.bf16.mxu0 %v906
    %933 = vmatpush1.bf16.msra.mxu0 %v905
    %934 = vmatprep.subr.bf16.mxu0 %v908
    %935 = vmatpush1.bf16.msra.mxu0 %v907
    %936 = vmatprep.subr.bf16.mxu0 %v910
    %937 = vmatpush1.bf16.msra.mxu0 %v909
    %938 = vmatprep.subr.bf16.mxu0 %v912
    %939 = vmatpush1.bf16.msra.mxu0 %v911
    %940 = vmatprep.subr.bf16.mxu0 0
    %941 = vmatpush1.bf16.msra.mxu0 0
    %942 = vmatprep.subr.bf16.mxu0 0
    %943 = vmatpush1.bf16.msra.mxu0 0
    %944 = vmatprep.subr.bf16.mxu0 0
    %945 = vmatpush1.bf16.msra.mxu0 0
    %946 = vmatprep.subr.bf16.mxu0 0
    %947 = vmatpush1.bf16.msra.mxu0 0
    %948 = vmatprep.subr.bf16.mxu0 0
    %949 = vmatpush1.bf16.msra.mxu0 0
    %950 = vmatprep.subr.bf16.mxu0 0
    %951 = vmatpush1.bf16.msra.mxu0 0
    %952 = vmatprep.subr.bf16.mxu0 0
    %953 = vmatpush1.bf16.msra.mxu0 0
    %954 = vmatprep.subr.bf16.mxu0 0
    %955 = vmatpush1.bf16.msra.mxu0 0
    %956 = vmatprep.subr.bf16.mxu0 0
    %957 = vmatpush1.bf16.msra.mxu0 0
    %958 = vmatprep.subr.bf16.mxu0 0
    %959 = vmatpush1.bf16.msra.mxu0 0
    %960 = vmatprep.mubr.bf16.mxu0 0
    %961 = vmatmul.mubr.bf16.gmra.mrb[0].mxu0 %v636
    %v962 = vpop.f32.mrb[0].mxu0
    %v963 = vadd.f32 0.0, %v962
    %v964 = vpop.f32.mrb[0].mxu0
    %v965 = vadd.f32 0.0, %v964
    %v966 = vpop.f32.mrb[0].mxu0
    %v967 = vadd.f32 0.0, %v966
    %v968 = vpop.f32.mrb[0].mxu0
    %v969 = vadd.f32 0.0, %v968
    %970 = vmatprep.mubr.bf16.mxu0 0
    %971 = vmatmul.mubr.bf16.gmra.mrb[0].mxu0 %v639
    %v972 = vpop.f32.mrb[0].mxu0
    %v973 = vadd.f32 0.0, %v972
    %v974 = vpop.f32.mrb[0].mxu0
    %v975 = vadd.f32 0.0, %v974
    %v976 = vpop.f32.mrb[0].mxu0
    %v977 = vadd.f32 0.0, %v976
    %v978 = vpop.f32.mrb[0].mxu0
    %v979 = vadd.f32 0.0, %v978
    %980 = vmatprep.mubr.bf16.mxu0 0
    %981 = vmatmul.mubr.bf16.gmra.mrb[0].mxu0 %v642
    %v982 = vpop.f32.mrb[0].mxu0
    %v983 = vadd.f32 0.0, %v982
    %v984 = vpop.f32.mrb[0].mxu0
    %v985 = vadd.f32 0.0, %v984
    %v986 = vpop.f32.mrb[0].mxu0
    %v987 = vadd.f32 0.0, %v986
    %v988 = vpop.f32.mrb[0].mxu0
    %v989 = vadd.f32 0.0, %v988
    %990 = vmatprep.mubr.bf16.mxu0 0
    %991 = vmatmul.mubr.bf16.gmra.mrb[0].mxu0 %v645
    %v992 = vpop.f32.mrb[0].mxu0
    %v993 = vadd.f32 0.0, %v992
    %v994 = vpop.f32.mrb[0].mxu0
    %v995 = vadd.f32 0.0, %v994
    %v996 = vpop.f32.mrb[0].mxu0
    %v997 = vadd.f32 0.0, %v996
    %v998 = vpop.f32.mrb[0].mxu0
    %v999 = vadd.f32 0.0, %v998
    %1000 = vmatprep.mubr.bf16.mxu0 0
    %1001 = vmatmul.mubr.bf16.gmra.mrb[0].mxu0 %v648
    %v1002 = vpop.f32.mrb[0].mxu0
    %v1003 = vadd.f32 0.0, %v1002
    %v1004 = vpop.f32.mrb[0].mxu0
    %v1005 = vadd.f32 0.0, %v1004
    %v1006 = vpop.f32.mrb[0].mxu0
    %v1007 = vadd.f32 0.0, %v1006
    %v1008 = vpop.f32.mrb[0].mxu0
    %v1009 = vadd.f32 0.0, %v1008
    %1010 = vmatprep.mubr.bf16.mxu0 0
    %1011 = vmatmul.mubr.bf16.gmra.mrb[0].mxu0 %v651
    %v1012 = vpop.f32.mrb[0].mxu0
    %v1013 = vadd.f32 0.0, %v1012
    %v1014 = vpop.f32.mrb[0].mxu0
    %v1015 = vadd.f32 0.0, %v1014
    %v1016 = vpop.f32.mrb[0].mxu0
    %v1017 = vadd.f32 0.0, %v1016
    %v1018 = vpop.f32.mrb[0].mxu0
    %v1019 = vadd.f32 0.0, %v1018
    %1020 = vmatprep.mubr.bf16.mxu0 0
    %1021 = vmatmul.mubr.bf16.gmra.mrb[0].mxu0 %v654
    %v1022 = vpop.f32.mrb[0].mxu0
    %v1023 = vadd.f32 0.0, %v1022
    %v1024 = vpop.f32.mrb[0].mxu0
    %v1025 = vadd.f32 0.0, %v1024
    %v1026 = vpop.f32.mrb[0].mxu0
    %v1027 = vadd.f32 0.0, %v1026
    %v1028 = vpop.f32.mrb[0].mxu0
    %v1029 = vadd.f32 0.0, %v1028
    %1030 = vmatprep.mubr.bf16.mxu0 0
    %1031 = vmatmul.mubr.bf16.gmra.mrb[0].mxu0 %v657
    %v1032 = vpop.f32.mrb[0].mxu0
    %v1033 = vadd.f32 0.0, %v1032
    %v1034 = vpop.f32.mrb[0].mxu0
    %v1035 = vadd.f32 0.0, %v1034
    %v1036 = vpop.f32.mrb[0].mxu0
    %v1037 = vadd.f32 0.0, %v1036
    %v1038 = vpop.f32.mrb[0].mxu0
    %v1039 = vadd.f32 0.0, %v1038
    %1040 = vmatprep.mubr.bf16.mxu0 0
    %1041 = vmatmul.mubr.bf16.gmra.mrb[0].mxu0 %v660
    %v1042 = vpop.f32.mrb[0].mxu0
    %v1043 = vadd.f32 0.0, %v1042
    %v1044 = vpop.f32.mrb[0].mxu0
    %v1045 = vadd.f32 0.0, %v1044
    %v1046 = vpop.f32.mrb[0].mxu0
    %v1047 = vadd.f32 0.0, %v1046
    %v1048 = vpop.f32.mrb[0].mxu0
    %v1049 = vadd.f32 0.0, %v1048
    %1050 = vmatprep.mubr.bf16.mxu0 0
    %1051 = vmatmul.mubr.bf16.gmra.mrb[0].mxu0 %v663
    %v1052 = vpop.f32.mrb[0].mxu0
    %v1053 = vadd.f32 0.0, %v1052
    %v1054 = vpop.f32.mrb[0].mxu0
    %v1055 = vadd.f32 0.0, %v1054
    %v1056 = vpop.f32.mrb[0].mxu0
    %v1057 = vadd.f32 0.0, %v1056
    %v1058 = vpop.f32.mrb[0].mxu0
    %v1059 = vadd.f32 0.0, %v1058
    %1060 = vmatprep.mubr.bf16.mxu0 0
    %1061 = vmatmul.mubr.bf16.gmra.mrb[0].mxu0 %v666
    %v1062 = vpop.f32.mrb[0].mxu0
    %v1063 = vadd.f32 0.0, %v1062
    %v1064 = vpop.f32.mrb[0].mxu0
    %v1065 = vadd.f32 0.0, %v1064
    %v1066 = vpop.f32.mrb[0].mxu0
    %v1067 = vadd.f32 0.0, %v1066
    %v1068 = vpop.f32.mrb[0].mxu0
    %v1069 = vadd.f32 0.0, %v1068
    %1070 = vmatprep.mubr.bf16.mxu0 0
    %1071 = vmatmul.mubr.bf16.gmra.mrb[0].mxu0 %v669
    %v1072 = vpop.f32.mrb[0].mxu0
    %v1073 = vadd.f32 0.0, %v1072
    %v1074 = vpop.f32.mrb[0].mxu0
    %v1075 = vadd.f32 0.0, %v1074
    %v1076 = vpop.f32.mrb[0].mxu0
    %v1077 = vadd.f32 0.0, %v1076
    %v1078 = vpop.f32.mrb[0].mxu0
    %v1079 = vadd.f32 0.0, %v1078
    %1080 = vmatprep.mubr.bf16.mxu0 0
    %1081 = vmatmul.mubr.bf16.gmra.mrb[0].mxu0 %v672
    %v1082 = vpop.f32.mrb[0].mxu0
    %v1083 = vadd.f32 0.0, %v1082
    %v1084 = vpop.f32.mrb[0].mxu0
    %v1085 = vadd.f32 0.0, %v1084
    %v1086 = vpop.f32.mrb[0].mxu0
    %v1087 = vadd.f32 0.0, %v1086
    %v1088 = vpop.f32.mrb[0].mxu0
    %v1089 = vadd.f32 0.0, %v1088
    %1090 = vmatprep.mubr.bf16.mxu0 0
    %1091 = vmatmul.mubr.bf16.gmra.mrb[0].mxu0 %v926
    %v1092 = vpop.f32.mrb[0].mxu0
    %v1093 = vadd.f32 0.0, %v1092
    %v1094 = vpop.f32.mrb[0].mxu0
    %v1095 = vadd.f32 0.0, %v1094
    %v1096 = vpop.f32.mrb[0].mxu0
    %v1097 = vadd.f32 0.0, %v1096
    %v1098 = vpop.f32.mrb[0].mxu0
    %v1099 = vadd.f32 0.0, %v1098
    %1100 = vdwg.mxu0
    %v1101 = vadd.f32 %v709, %v963
    %v1102 = vadd.f32 %v711, %v965
    %v1103 = vadd.f32 %v713, %v967
    %v1104 = vadd.f32 %v715, %v969
    %v1105 = vadd.f32 %v719, %v973
    %v1106 = vadd.f32 %v721, %v975
    %v1107 = vadd.f32 %v723, %v977
    %v1108 = vadd.f32 %v725, %v979
    %v1109 = vadd.f32 %v729, %v983
    %v1110 = vadd.f32 %v731, %v985
    %v1111 = vadd.f32 %v733, %v987
    %v1112 = vadd.f32 %v735, %v989
    %v1113 = vadd.f32 %v739, %v993
    %v1114 = vadd.f32 %v741, %v995
    %v1115 = vadd.f32 %v743, %v997
    %v1116 = vadd.f32 %v745, %v999
    %v1117 = vadd.f32 %v749, %v1003
    %v1118 = vadd.f32 %v751, %v1005
    %v1119 = vadd.f32 %v753, %v1007
    %v1120 = vadd.f32 %v755, %v1009
    %v1121 = vadd.f32 %v759, %v1013
    %v1122 = vadd.f32 %v761, %v1015
    %v1123 = vadd.f32 %v763, %v1017
    %v1124 = vadd.f32 %v765, %v1019
    %v1125 = vadd.f32 %v769, %v1023
    %v1126 = vadd.f32 %v771, %v1025
    %v1127 = vadd.f32 %v773, %v1027
    %v1128 = vadd.f32 %v775, %v1029
    %v1129 = vadd.f32 %v779, %v1033
    %v1130 = vadd.f32 %v781, %v1035
    %v1131 = vadd.f32 %v783, %v1037
    %v1132 = vadd.f32 %v785, %v1039
    %v1133 = vadd.f32 %v789, %v1043
    %v1134 = vadd.f32 %v791, %v1045
    %v1135 = vadd.f32 %v793, %v1047
    %v1136 = vadd.f32 %v795, %v1049
    %v1137 = vadd.f32 %v799, %v1053
    %v1138 = vadd.f32 %v801, %v1055
    %v1139 = vadd.f32 %v803, %v1057
    %v1140 = vadd.f32 %v805, %v1059
    %v1141 = vadd.f32 %v809, %v1063
    %v1142 = vadd.f32 %v811, %v1065
    %v1143 = vadd.f32 %v813, %v1067
    %v1144 = vadd.f32 %v815, %v1069
    %v1145 = vadd.f32 %v819, %v1073
    %v1146 = vadd.f32 %v821, %v1075
    %v1147 = vadd.f32 %v823, %v1077
    %v1148 = vadd.f32 %v825, %v1079
    %v1149 = vadd.f32 %v829, %v1083
    %v1150 = vadd.f32 %v831, %v1085
    %v1151 = vadd.f32 %v833, %v1087
    %v1152 = vadd.f32 %v835, %v1089
    %v1153 = vadd.f32 %v839, %v1093
    %v1154 = vadd.f32 %v841, %v1095
    %v1155 = vadd.f32 %v843, %v1097
    %v1156 = vadd.f32 %v845, %v1099
    %s1157 = scalar_lea.vmem [#allocation2], 288
    %v1158 = vld [vmem:[%s1157] sm:$0xff]
    %v1159 = vld [vmem:[%s1157 + $0x8] sm:$0xff]
    %v1160 = vld [vmem:[%s1157 + $0x10] sm:$0xff]
    %v1161 = vld [vmem:[%s1157 + $0x18] sm:$0xff]
    %v1162 = vld [vmem:[%s1157 + $0x20] sm:$0xff]
    %v1163 = vld [vmem:[%s1157 + $0x28] sm:$0xff]
    %v1164 = vld [vmem:[%s1157 + $0x30] sm:$0xff]
    %v1165 = vld [vmem:[%s1157 + $0x38] sm:$0xff]
    %v1166 = vld [vmem:[%s1157 + $0x40] sm:$0xff]
    %v1167 = vld [vmem:[%s1157 + $0x48] sm:$0xff]
    %v1168 = vld [vmem:[%s1157 + $0x50] sm:$0xff]
    %v1169 = vld [vmem:[%s1157 + $0x58] sm:$0xff]
    %v1172 = vunpack.c.l.b16 %v125
    %v1173 = vunpack.c.l.b16 %v126
    %v1174 = vpack.c.b16 %v1173, %v1172
    %v1187 = vunpack.c.l.b16 %v1158
    %v1188 = vunpack.c.h.b16 %v1158
    %v1189 = vunpack.c.l.b16 %v1159
    %v1190 = vunpack.c.h.b16 %v1159
    %v1191 = vunpack.c.l.b16 %v1160
    %v1192 = vunpack.c.h.b16 %v1160
    %v1193 = vunpack.c.l.b16 %v1161
    %v1194 = vunpack.c.h.b16 %v1161
    %v1195 = vunpack.c.l.b16 %v1162
    %v1196 = vunpack.c.h.b16 %v1162
    %v1197 = vunpack.c.l.b16 %v1163
    %v1198 = vunpack.c.h.b16 %v1163
    %v1199 = vunpack.c.l.b16 %v1164
    %v1200 = vunpack.c.h.b16 %v1164
    %v1201 = vunpack.c.l.b16 %v1165
    %v1202 = vunpack.c.h.b16 %v1165
    %v1203 = vunpack.c.l.b16 %v1166
    %v1204 = vunpack.c.h.b16 %v1166
    %v1205 = vunpack.c.l.b16 %v1167
    %v1206 = vunpack.c.h.b16 %v1167
    %v1207 = vunpack.c.l.b16 %v1168
    %v1208 = vunpack.c.h.b16 %v1168
    %v1209 = vunpack.c.l.b16 %v1169
    %v1210 = vunpack.c.h.b16 %v1169
    %v1211 = vpack.c.b16 %v1189, %v1187
    %v1212 = vpack.c.b16 %v1190, %v1188
    %v1213 = vpack.c.b16 %v1193, %v1191
    %v1214 = vpack.c.b16 %v1194, %v1192
    %v1215 = vpack.c.b16 %v1197, %v1195
    %v1216 = vpack.c.b16 %v1198, %v1196
    %v1217 = vpack.c.b16 %v1201, %v1199
    %v1218 = vpack.c.b16 %v1202, %v1200
    %v1219 = vpack.c.b16 %v1205, %v1203
    %v1220 = vpack.c.b16 %v1206, %v1204
    %v1221 = vpack.c.b16 %v1209, %v1207
    %v1222 = vpack.c.b16 %v1210, %v1208
    %v1236 = vsel %vm286, %v1174, 0
    %1238 = vmatprep.subr.bf16.mxu0 %v1212
    %1239 = vmatpush1.bf16.msra.mxu0 %v1211
    %1240 = vmatprep.subr.bf16.mxu0 %v1214
    %1241 = vmatpush1.bf16.msra.mxu0 %v1213
    %1242 = vmatprep.subr.bf16.mxu0 %v1216
    %1243 = vmatpush1.bf16.msra.mxu0 %v1215
    %1244 = vmatprep.subr.bf16.mxu0 %v1218
    %1245 = vmatpush1.bf16.msra.mxu0 %v1217
    %1246 = vmatprep.subr.bf16.mxu0 %v1220
    %1247 = vmatpush1.bf16.msra.mxu0 %v1219
    %1248 = vmatprep.subr.bf16.mxu0 %v1222
    %1249 = vmatpush1.bf16.msra.mxu0 %v1221
    %1250 = vmatprep.subr.bf16.mxu0 0
    %1251 = vmatpush1.bf16.msra.mxu0 0
    %1252 = vmatprep.subr.bf16.mxu0 0
    %1253 = vmatpush1.bf16.msra.mxu0 0
    %1254 = vmatprep.subr.bf16.mxu0 0
    %1255 = vmatpush1.bf16.msra.mxu0 0
    %1256 = vmatprep.subr.bf16.mxu0 0
    %1257 = vmatpush1.bf16.msra.mxu0 0
    %1258 = vmatprep.subr.bf16.mxu0 0
    %1259 = vmatpush1.bf16.msra.mxu0 0
    %1260 = vmatprep.subr.bf16.mxu0 0
    %1261 = vmatpush1.bf16.msra.mxu0 0
    %1262 = vmatprep.subr.bf16.mxu0 0
    %1263 = vmatpush1.bf16.msra.mxu0 0
    %1264 = vmatprep.subr.bf16.mxu0 0
    %1265 = vmatpush1.bf16.msra.mxu0 0
    %1266 = vmatprep.subr.bf16.mxu0 0
    %1267 = vmatpush1.bf16.msra.mxu0 0
    %1268 = vmatprep.subr.bf16.mxu0 0
    %1269 = vmatpush1.bf16.msra.mxu0 0
    %1270 = vmatprep.mubr.bf16.mxu0 0
    %1271 = vmatmul.mubr.bf16.gmra.mrb[0].mxu0 %v291
    %v1272 = vpop.f32.mrb[0].mxu0
    %v1273 = vadd.f32 0.0, %v1272
    %v1274 = vpop.f32.mrb[0].mxu0
    %v1275 = vadd.f32 0.0, %v1274
    %v1276 = vpop.f32.mrb[0].mxu0
    %v1277 = vadd.f32 0.0, %v1276
    %v1278 = vpop.f32.mrb[0].mxu0
    %v1279 = vadd.f32 0.0, %v1278
    %1280 = vmatprep.mubr.bf16.mxu0 0
    %1281 = vmatmul.mubr.bf16.gmra.mrb[0].mxu0 %v294
    %v1282 = vpop.f32.mrb[0].mxu0
    %v1283 = vadd.f32 0.0, %v1282
    %v1284 = vpop.f32.mrb[0].mxu0
    %v1285 = vadd.f32 0.0, %v1284
    %v1286 = vpop.f32.mrb[0].mxu0
    %v1287 = vadd.f32 0.0, %v1286
    %v1288 = vpop.f32.mrb[0].mxu0
    %v1289 = vadd.f32 0.0, %v1288
    %1290 = vmatprep.mubr.bf16.mxu0 0
    %1291 = vmatmul.mubr.bf16.gmra.mrb[0].mxu0 %v297
    %v1292 = vpop.f32.mrb[0].mxu0
    %v1293 = vadd.f32 0.0, %v1292
    %v1294 = vpop.f32.mrb[0].mxu0
    %v1295 = vadd.f32 0.0, %v1294
    %v1296 = vpop.f32.mrb[0].mxu0
    %v1297 = vadd.f32 0.0, %v1296
    %v1298 = vpop.f32.mrb[0].mxu0
    %v1299 = vadd.f32 0.0, %v1298
    %1300 = vmatprep.mubr.bf16.mxu0 0
    %1301 = vmatmul.mubr.bf16.gmra.mrb[0].mxu0 %v300
    %v1302 = vpop.f32.mrb[0].mxu0
    %v1303 = vadd.f32 0.0, %v1302
    %v1304 = vpop.f32.mrb[0].mxu0
    %v1305 = vadd.f32 0.0, %v1304
    %v1306 = vpop.f32.mrb[0].mxu0
    %v1307 = vadd.f32 0.0, %v1306
    %v1308 = vpop.f32.mrb[0].mxu0
    %v1309 = vadd.f32 0.0, %v1308
    %1310 = vmatprep.mubr.bf16.mxu0 0
    %1311 = vmatmul.mubr.bf16.gmra.mrb[0].mxu0 %v303
    %v1312 = vpop.f32.mrb[0].mxu0
    %v1313 = vadd.f32 0.0, %v1312
    %v1314 = vpop.f32.mrb[0].mxu0
    %v1315 = vadd.f32 0.0, %v1314
    %v1316 = vpop.f32.mrb[0].mxu0
    %v1317 = vadd.f32 0.0, %v1316
    %v1318 = vpop.f32.mrb[0].mxu0
    %v1319 = vadd.f32 0.0, %v1318
    %1320 = vmatprep.mubr.bf16.mxu0 0
    %1321 = vmatmul.mubr.bf16.gmra.mrb[0].mxu0 %v306
    %v1322 = vpop.f32.mrb[0].mxu0
    %v1323 = vadd.f32 0.0, %v1322
    %v1324 = vpop.f32.mrb[0].mxu0
    %v1325 = vadd.f32 0.0, %v1324
    %v1326 = vpop.f32.mrb[0].mxu0
    %v1327 = vadd.f32 0.0, %v1326
    %v1328 = vpop.f32.mrb[0].mxu0
    %v1329 = vadd.f32 0.0, %v1328
    %1330 = vmatprep.mubr.bf16.mxu0 0
    %1331 = vmatmul.mubr.bf16.gmra.mrb[0].mxu0 %v309
    %v1332 = vpop.f32.mrb[0].mxu0
    %v1333 = vadd.f32 0.0, %v1332
    %v1334 = vpop.f32.mrb[0].mxu0
    %v1335 = vadd.f32 0.0, %v1334
    %v1336 = vpop.f32.mrb[0].mxu0
    %v1337 = vadd.f32 0.0, %v1336
    %v1338 = vpop.f32.mrb[0].mxu0
    %v1339 = vadd.f32 0.0, %v1338
    %1340 = vmatprep.mubr.bf16.mxu0 0
    %1341 = vmatmul.mubr.bf16.gmra.mrb[0].mxu0 %v312
    %v1342 = vpop.f32.mrb[0].mxu0
    %v1343 = vadd.f32 0.0, %v1342
    %v1344 = vpop.f32.mrb[0].mxu0
    %v1345 = vadd.f32 0.0, %v1344
    %v1346 = vpop.f32.mrb[0].mxu0
    %v1347 = vadd.f32 0.0, %v1346
    %v1348 = vpop.f32.mrb[0].mxu0
    %v1349 = vadd.f32 0.0, %v1348
    %1350 = vmatprep.mubr.bf16.mxu0 0
    %1351 = vmatmul.mubr.bf16.gmra.mrb[0].mxu0 %v315
    %v1352 = vpop.f32.mrb[0].mxu0
    %v1353 = vadd.f32 0.0, %v1352
    %v1354 = vpop.f32.mrb[0].mxu0
    %v1355 = vadd.f32 0.0, %v1354
    %v1356 = vpop.f32.mrb[0].mxu0
    %v1357 = vadd.f32 0.0, %v1356
    %v1358 = vpop.f32.mrb[0].mxu0
    %v1359 = vadd.f32 0.0, %v1358
    %1360 = vmatprep.mubr.bf16.mxu0 0
    %1361 = vmatmul.mubr.bf16.gmra.mrb[0].mxu0 %v318
    %v1362 = vpop.f32.mrb[0].mxu0
    %v1363 = vadd.f32 0.0, %v1362
    %v1364 = vpop.f32.mrb[0].mxu0
    %v1365 = vadd.f32 0.0, %v1364
    %v1366 = vpop.f32.mrb[0].mxu0
    %v1367 = vadd.f32 0.0, %v1366
    %v1368 = vpop.f32.mrb[0].mxu0
    %v1369 = vadd.f32 0.0, %v1368
    %1370 = vmatprep.mubr.bf16.mxu0 0
    %1371 = vmatmul.mubr.bf16.gmra.mrb[0].mxu0 %v321
    %v1372 = vpop.f32.mrb[0].mxu0
    %v1373 = vadd.f32 0.0, %v1372
    %v1374 = vpop.f32.mrb[0].mxu0
    %v1375 = vadd.f32 0.0, %v1374
    %v1376 = vpop.f32.mrb[0].mxu0
    %v1377 = vadd.f32 0.0, %v1376
    %v1378 = vpop.f32.mrb[0].mxu0
    %v1379 = vadd.f32 0.0, %v1378
    %1380 = vmatprep.mubr.bf16.mxu0 0
    %1381 = vmatmul.mubr.bf16.gmra.mrb[0].mxu0 %v324
    %v1382 = vpop.f32.mrb[0].mxu0
    %v1383 = vadd.f32 0.0, %v1382
    %v1384 = vpop.f32.mrb[0].mxu0
    %v1385 = vadd.f32 0.0, %v1384
    %v1386 = vpop.f32.mrb[0].mxu0
    %v1387 = vadd.f32 0.0, %v1386
    %v1388 = vpop.f32.mrb[0].mxu0
    %v1389 = vadd.f32 0.0, %v1388
    %1390 = vmatprep.mubr.bf16.mxu0 0
    %1391 = vmatmul.mubr.bf16.gmra.mrb[0].mxu0 %v327
    %v1392 = vpop.f32.mrb[0].mxu0
    %v1393 = vadd.f32 0.0, %v1392
    %v1394 = vpop.f32.mrb[0].mxu0
    %v1395 = vadd.f32 0.0, %v1394
    %v1396 = vpop.f32.mrb[0].mxu0
    %v1397 = vadd.f32 0.0, %v1396
    %v1398 = vpop.f32.mrb[0].mxu0
    %v1399 = vadd.f32 0.0, %v1398
    %1400 = vmatprep.mubr.bf16.mxu0 0
    %1401 = vmatmul.mubr.bf16.gmra.mrb[0].mxu0 %v1236
    %v1402 = vpop.f32.mrb[0].mxu0
    %v1403 = vadd.f32 0.0, %v1402
    %v1404 = vpop.f32.mrb[0].mxu0
    %v1405 = vadd.f32 0.0, %v1404
    %v1406 = vpop.f32.mrb[0].mxu0
    %v1407 = vadd.f32 0.0, %v1406
    %v1408 = vpop.f32.mrb[0].mxu0
    %v1409 = vadd.f32 0.0, %v1408
    %1410 = vdwg.mxu0
    %v1411 = vadd.f32 %v1101, %v1273
    %v1412 = vadd.f32 %v1102, %v1275
    %v1413 = vadd.f32 %v1103, %v1277
    %v1414 = vadd.f32 %v1104, %v1279
    %v1415 = vadd.f32 %v1105, %v1283
    %v1416 = vadd.f32 %v1106, %v1285
    %v1417 = vadd.f32 %v1107, %v1287
    %v1418 = vadd.f32 %v1108, %v1289
    %v1419 = vadd.f32 %v1109, %v1293
    %v1420 = vadd.f32 %v1110, %v1295
    %v1421 = vadd.f32 %v1111, %v1297
    %v1422 = vadd.f32 %v1112, %v1299
    %v1423 = vadd.f32 %v1113, %v1303
    %v1424 = vadd.f32 %v1114, %v1305
    %v1425 = vadd.f32 %v1115, %v1307
    %v1426 = vadd.f32 %v1116, %v1309
    %v1427 = vadd.f32 %v1117, %v1313
    %v1428 = vadd.f32 %v1118, %v1315
    %v1429 = vadd.f32 %v1119, %v1317
    %v1430 = vadd.f32 %v1120, %v1319
    %v1431 = vadd.f32 %v1121, %v1323
    %v1432 = vadd.f32 %v1122, %v1325
    %v1433 = vadd.f32 %v1123, %v1327
    %v1434 = vadd.f32 %v1124, %v1329
    %v1435 = vadd.f32 %v1125, %v1333
    %v1436 = vadd.f32 %v1126, %v1335
    %v1437 = vadd.f32 %v1127, %v1337
    %v1438 = vadd.f32 %v1128, %v1339
    %v1439 = vadd.f32 %v1129, %v1343
    %v1440 = vadd.f32 %v1130, %v1345
    %v1441 = vadd.f32 %v1131, %v1347
    %v1442 = vadd.f32 %v1132, %v1349
    %v1443 = vadd.f32 %v1133, %v1353
    %v1444 = vadd.f32 %v1134, %v1355
    %v1445 = vadd.f32 %v1135, %v1357
    %v1446 = vadd.f32 %v1136, %v1359
    %v1447 = vadd.f32 %v1137, %v1363
    %v1448 = vadd.f32 %v1138, %v1365
    %v1449 = vadd.f32 %v1139, %v1367
    %v1450 = vadd.f32 %v1140, %v1369
    %v1451 = vadd.f32 %v1141, %v1373
    %v1452 = vadd.f32 %v1142, %v1375
    %v1453 = vadd.f32 %v1143, %v1377
    %v1454 = vadd.f32 %v1144, %v1379
    %v1455 = vadd.f32 %v1145, %v1383
    %v1456 = vadd.f32 %v1146, %v1385
    %v1457 = vadd.f32 %v1147, %v1387
    %v1458 = vadd.f32 %v1148, %v1389
    %v1459 = vadd.f32 %v1149, %v1393
    %v1460 = vadd.f32 %v1150, %v1395
    %v1461 = vadd.f32 %v1151, %v1397
    %v1462 = vadd.f32 %v1152, %v1399
    %v1463 = vadd.f32 %v1153, %v1403
    %v1464 = vadd.f32 %v1154, %v1405
    %v1465 = vadd.f32 %v1155, %v1407
    %v1466 = vadd.f32 %v1156, %v1409
    %s1467 = scalar_lea.vmem [#allocation2], 384
    %v1468 = vld [vmem:[%s1467] sm:$0xff]
    %v1469 = vld [vmem:[%s1467 + $0x8] sm:$0xff]
    %v1470 = vld [vmem:[%s1467 + $0x10] sm:$0xff]
    %v1471 = vld [vmem:[%s1467 + $0x18] sm:$0xff]
    %v1472 = vld [vmem:[%s1467 + $0x20] sm:$0xff]
    %v1473 = vld [vmem:[%s1467 + $0x28] sm:$0xff]
    %v1474 = vld [vmem:[%s1467 + $0x30] sm:$0xff]
    %v1475 = vld [vmem:[%s1467 + $0x38] sm:$0xff]
    %v1476 = vld [vmem:[%s1467 + $0x40] sm:$0xff]
    %v1477 = vld [vmem:[%s1467 + $0x48] sm:$0xff]
    %v1478 = vld [vmem:[%s1467 + $0x50] sm:$0xff]
    %v1479 = vld [vmem:[%s1467 + $0x58] sm:$0xff]
    %v1482 = vunpack.c.l.b16 %v127
    %v1483 = vunpack.c.l.b16 %v128
    %v1484 = vpack.c.b16 %v1483, %v1482
    %v1497 = vunpack.c.l.b16 %v1468
    %v1498 = vunpack.c.h.b16 %v1468
    %v1499 = vunpack.c.l.b16 %v1469
    %v1500 = vunpack.c.h.b16 %v1469
    %v1501 = vunpack.c.l.b16 %v1470
    %v1502 = vunpack.c.h.b16 %v1470
    %v1503 = vunpack.c.l.b16 %v1471
    %v1504 = vunpack.c.h.b16 %v1471
    %v1505 = vunpack.c.l.b16 %v1472
    %v1506 = vunpack.c.h.b16 %v1472
    %v1507 = vunpack.c.l.b16 %v1473
    %v1508 = vunpack.c.h.b16 %v1473
    %v1509 = vunpack.c.l.b16 %v1474
    %v1510 = vunpack.c.h.b16 %v1474
    %v1511 = vunpack.c.l.b16 %v1475
    %v1512 = vunpack.c.h.b16 %v1475
    %v1513 = vunpack.c.l.b16 %v1476
    %v1514 = vunpack.c.h.b16 %v1476
    %v1515 = vunpack.c.l.b16 %v1477
    %v1516 = vunpack.c.h.b16 %v1477
    %v1517 = vunpack.c.l.b16 %v1478
    %v1518 = vunpack.c.h.b16 %v1478
    %v1519 = vunpack.c.l.b16 %v1479
    %v1520 = vunpack.c.h.b16 %v1479
    %v1521 = vpack.c.b16 %v1499, %v1497
    %v1522 = vpack.c.b16 %v1500, %v1498
    %v1523 = vpack.c.b16 %v1503, %v1501
    %v1524 = vpack.c.b16 %v1504, %v1502
    %v1525 = vpack.c.b16 %v1507, %v1505
    %v1526 = vpack.c.b16 %v1508, %v1506
    %v1527 = vpack.c.b16 %v1511, %v1509
    %v1528 = vpack.c.b16 %v1512, %v1510
    %v1529 = vpack.c.b16 %v1515, %v1513
    %v1530 = vpack.c.b16 %v1516, %v1514
    %v1531 = vpack.c.b16 %v1519, %v1517
    %v1532 = vpack.c.b16 %v1520, %v1518
    %v1546 = vsel %vm286, %v1484, 0
    %1548 = vmatprep.subr.bf16.mxu0 %v1522
    %1549 = vmatpush1.bf16.msra.mxu0 %v1521
    %1550 = vmatprep.subr.bf16.mxu0 %v1524
    %1551 = vmatpush1.bf16.msra.mxu0 %v1523
    %1552 = vmatprep.subr.bf16.mxu0 %v1526
    %1553 = vmatpush1.bf16.msra.mxu0 %v1525
    %1554 = vmatprep.subr.bf16.mxu0 %v1528
    %1555 = vmatpush1.bf16.msra.mxu0 %v1527
    %1556 = vmatprep.subr.bf16.mxu0 %v1530
    %1557 = vmatpush1.bf16.msra.mxu0 %v1529
    %1558 = vmatprep.subr.bf16.mxu0 %v1532
    %1559 = vmatpush1.bf16.msra.mxu0 %v1531
    %1560 = vmatprep.subr.bf16.mxu0 0
    %1561 = vmatpush1.bf16.msra.mxu0 0
    %1562 = vmatprep.subr.bf16.mxu0 0
    %1563 = vmatpush1.bf16.msra.mxu0 0
    %1564 = vmatprep.subr.bf16.mxu0 0
    %1565 = vmatpush1.bf16.msra.mxu0 0
    %1566 = vmatprep.subr.bf16.mxu0 0
    %1567 = vmatpush1.bf16.msra.mxu0 0
    %1568 = vmatprep.subr.bf16.mxu0 0
    %1569 = vmatpush1.bf16.msra.mxu0 0
    %1570 = vmatprep.subr.bf16.mxu0 0
    %1571 = vmatpush1.bf16.msra.mxu0 0
    %1572 = vmatprep.subr.bf16.mxu0 0
    %1573 = vmatpush1.bf16.msra.mxu0 0
    %1574 = vmatprep.subr.bf16.mxu0 0
    %1575 = vmatpush1.bf16.msra.mxu0 0
    %1576 = vmatprep.subr.bf16.mxu0 0
    %1577 = vmatpush1.bf16.msra.mxu0 0
    %1578 = vmatprep.subr.bf16.mxu0 0
    %1579 = vmatpush1.bf16.msra.mxu0 0
    %1580 = vmatprep.mubr.bf16.mxu0 0
    %1581 = vmatmul.mubr.bf16.gmra.mrb[0].mxu0 %v639
    %v1582 = vpop.f32.mrb[0].mxu0
    %v1583 = vadd.f32 0.0, %v1582
    %v1584 = vpop.f32.mrb[0].mxu0
    %v1585 = vadd.f32 0.0, %v1584
    %v1586 = vpop.f32.mrb[0].mxu0
    %v1587 = vadd.f32 0.0, %v1586
    %v1588 = vpop.f32.mrb[0].mxu0
    %v1589 = vadd.f32 0.0, %v1588
    %1590 = vmatprep.mubr.bf16.mxu0 0
    %1591 = vmatmul.mubr.bf16.gmra.mrb[0].mxu0 %v642
    %v1592 = vpop.f32.mrb[0].mxu0
    %v1593 = vadd.f32 0.0, %v1592
    %v1594 = vpop.f32.mrb[0].mxu0
    %v1595 = vadd.f32 0.0, %v1594
    %v1596 = vpop.f32.mrb[0].mxu0
    %v1597 = vadd.f32 0.0, %v1596
    %v1598 = vpop.f32.mrb[0].mxu0
    %v1599 = vadd.f32 0.0, %v1598
    %1600 = vmatprep.mubr.bf16.mxu0 0
    %1601 = vmatmul.mubr.bf16.gmra.mrb[0].mxu0 %v645
    %v1602 = vpop.f32.mrb[0].mxu0
    %v1603 = vadd.f32 0.0, %v1602
    %v1604 = vpop.f32.mrb[0].mxu0
    %v1605 = vadd.f32 0.0, %v1604
    %v1606 = vpop.f32.mrb[0].mxu0
    %v1607 = vadd.f32 0.0, %v1606
    %v1608 = vpop.f32.mrb[0].mxu0
    %v1609 = vadd.f32 0.0, %v1608
    %1610 = vmatprep.mubr.bf16.mxu0 0
    %1611 = vmatmul.mubr.bf16.gmra.mrb[0].mxu0 %v648
    %v1612 = vpop.f32.mrb[0].mxu0
    %v1613 = vadd.f32 0.0, %v1612
    %v1614 = vpop.f32.mrb[0].mxu0
    %v1615 = vadd.f32 0.0, %v1614
    %v1616 = vpop.f32.mrb[0].mxu0
    %v1617 = vadd.f32 0.0, %v1616
    %v1618 = vpop.f32.mrb[0].mxu0
    %v1619 = vadd.f32 0.0, %v1618
    %1620 = vmatprep.mubr.bf16.mxu0 0
    %1621 = vmatmul.mubr.bf16.gmra.mrb[0].mxu0 %v651
    %v1622 = vpop.f32.mrb[0].mxu0
    %v1623 = vadd.f32 0.0, %v1622
    %v1624 = vpop.f32.mrb[0].mxu0
    %v1625 = vadd.f32 0.0, %v1624
    %v1626 = vpop.f32.mrb[0].mxu0
    %v1627 = vadd.f32 0.0, %v1626
    %v1628 = vpop.f32.mrb[0].mxu0
    %v1629 = vadd.f32 0.0, %v1628
    %1630 = vmatprep.mubr.bf16.mxu0 0
    %1631 = vmatmul.mubr.bf16.gmra.mrb[0].mxu0 %v654
    %v1632 = vpop.f32.mrb[0].mxu0
    %v1633 = vadd.f32 0.0, %v1632
    %v1634 = vpop.f32.mrb[0].mxu0
    %v1635 = vadd.f32 0.0, %v1634
    %v1636 = vpop.f32.mrb[0].mxu0
    %v1637 = vadd.f32 0.0, %v1636
    %v1638 = vpop.f32.mrb[0].mxu0
    %v1639 = vadd.f32 0.0, %v1638
    %1640 = vmatprep.mubr.bf16.mxu0 0
    %1641 = vmatmul.mubr.bf16.gmra.mrb[0].mxu0 %v657
    %v1642 = vpop.f32.mrb[0].mxu0
    %v1643 = vadd.f32 0.0, %v1642
    %v1644 = vpop.f32.mrb[0].mxu0
    %v1645 = vadd.f32 0.0, %v1644
    %v1646 = vpop.f32.mrb[0].mxu0
    %v1647 = vadd.f32 0.0, %v1646
    %v1648 = vpop.f32.mrb[0].mxu0
    %v1649 = vadd.f32 0.0, %v1648
    %1650 = vmatprep.mubr.bf16.mxu0 0
    %1651 = vmatmul.mubr.bf16.gmra.mrb[0].mxu0 %v660
    %v1652 = vpop.f32.mrb[0].mxu0
    %v1653 = vadd.f32 0.0, %v1652
    %v1654 = vpop.f32.mrb[0].mxu0
    %v1655 = vadd.f32 0.0, %v1654
    %v1656 = vpop.f32.mrb[0].mxu0
    %v1657 = vadd.f32 0.0, %v1656
    %v1658 = vpop.f32.mrb[0].mxu0
    %v1659 = vadd.f32 0.0, %v1658
    %1660 = vmatprep.mubr.bf16.mxu0 0
    %1661 = vmatmul.mubr.bf16.gmra.mrb[0].mxu0 %v663
    %v1662 = vpop.f32.mrb[0].mxu0
    %v1663 = vadd.f32 0.0, %v1662
    %v1664 = vpop.f32.mrb[0].mxu0
    %v1665 = vadd.f32 0.0, %v1664
    %v1666 = vpop.f32.mrb[0].mxu0
    %v1667 = vadd.f32 0.0, %v1666
    %v1668 = vpop.f32.mrb[0].mxu0
    %v1669 = vadd.f32 0.0, %v1668
    %1670 = vmatprep.mubr.bf16.mxu0 0
    %1671 = vmatmul.mubr.bf16.gmra.mrb[0].mxu0 %v666
    %v1672 = vpop.f32.mrb[0].mxu0
    %v1673 = vadd.f32 0.0, %v1672
    %v1674 = vpop.f32.mrb[0].mxu0
    %v1675 = vadd.f32 0.0, %v1674
    %v1676 = vpop.f32.mrb[0].mxu0
    %v1677 = vadd.f32 0.0, %v1676
    %v1678 = vpop.f32.mrb[0].mxu0
    %v1679 = vadd.f32 0.0, %v1678
    %1680 = vmatprep.mubr.bf16.mxu0 0
    %1681 = vmatmul.mubr.bf16.gmra.mrb[0].mxu0 %v669
    %v1682 = vpop.f32.mrb[0].mxu0
    %v1683 = vadd.f32 0.0, %v1682
    %v1684 = vpop.f32.mrb[0].mxu0
    %v1685 = vadd.f32 0.0, %v1684
    %v1686 = vpop.f32.mrb[0].mxu0
    %v1687 = vadd.f32 0.0, %v1686
    %v1688 = vpop.f32.mrb[0].mxu0
    %v1689 = vadd.f32 0.0, %v1688
    %1690 = vmatprep.mubr.bf16.mxu0 0
    %1691 = vmatmul.mubr.bf16.gmra.mrb[0].mxu0 %v672
    %v1692 = vpop.f32.mrb[0].mxu0
    %v1693 = vadd.f32 0.0, %v1692
    %v1694 = vpop.f32.mrb[0].mxu0
    %v1695 = vadd.f32 0.0, %v1694
    %v1696 = vpop.f32.mrb[0].mxu0
    %v1697 = vadd.f32 0.0, %v1696
    %v1698 = vpop.f32.mrb[0].mxu0
    %v1699 = vadd.f32 0.0, %v1698
    %1700 = vmatprep.mubr.bf16.mxu0 0
    %1701 = vmatmul.mubr.bf16.gmra.mrb[0].mxu0 %v926
    %v1702 = vpop.f32.mrb[0].mxu0
    %v1703 = vadd.f32 0.0, %v1702
    %v1704 = vpop.f32.mrb[0].mxu0
    %v1705 = vadd.f32 0.0, %v1704
    %v1706 = vpop.f32.mrb[0].mxu0
    %v1707 = vadd.f32 0.0, %v1706
    %v1708 = vpop.f32.mrb[0].mxu0
    %v1709 = vadd.f32 0.0, %v1708
    %1710 = vmatprep.mubr.bf16.mxu0 0
    %1711 = vmatmul.mubr.bf16.gmra.mrb[0].mxu0 %v1546
    %v1712 = vpop.f32.mrb[0].mxu0
    %v1713 = vadd.f32 0.0, %v1712
    %v1714 = vpop.f32.mrb[0].mxu0
    %v1715 = vadd.f32 0.0, %v1714
    %v1716 = vpop.f32.mrb[0].mxu0
    %v1717 = vadd.f32 0.0, %v1716
    %v1718 = vpop.f32.mrb[0].mxu0
    %v1719 = vadd.f32 0.0, %v1718
    %1720 = vdwg.mxu0
    %v1721 = vadd.f32 %v1411, %v1583
    %v1722 = vadd.f32 %v1412, %v1585
    %v1723 = vadd.f32 %v1413, %v1587
    %v1724 = vadd.f32 %v1414, %v1589
    %v1725 = vadd.f32 %v1415, %v1593
    %v1726 = vadd.f32 %v1416, %v1595
    %v1727 = vadd.f32 %v1417, %v1597
    %v1728 = vadd.f32 %v1418, %v1599
    %v1729 = vadd.f32 %v1419, %v1603
    %v1730 = vadd.f32 %v1420, %v1605
    %v1731 = vadd.f32 %v1421, %v1607
    %v1732 = vadd.f32 %v1422, %v1609
    %v1733 = vadd.f32 %v1423, %v1613
    %v1734 = vadd.f32 %v1424, %v1615
    %v1735 = vadd.f32 %v1425, %v1617
    %v1736 = vadd.f32 %v1426, %v1619
    %v1737 = vadd.f32 %v1427, %v1623
    %v1738 = vadd.f32 %v1428, %v1625
    %v1739 = vadd.f32 %v1429, %v1627
    %v1740 = vadd.f32 %v1430, %v1629
    %v1741 = vadd.f32 %v1431, %v1633
    %v1742 = vadd.f32 %v1432, %v1635
    %v1743 = vadd.f32 %v1433, %v1637
    %v1744 = vadd.f32 %v1434, %v1639
    %v1745 = vadd.f32 %v1435, %v1643
    %v1746 = vadd.f32 %v1436, %v1645
    %v1747 = vadd.f32 %v1437, %v1647
    %v1748 = vadd.f32 %v1438, %v1649
    %v1749 = vadd.f32 %v1439, %v1653
    %v1750 = vadd.f32 %v1440, %v1655
    %v1751 = vadd.f32 %v1441, %v1657
    %v1752 = vadd.f32 %v1442, %v1659
    %v1753 = vadd.f32 %v1443, %v1663
    %v1754 = vadd.f32 %v1444, %v1665
    %v1755 = vadd.f32 %v1445, %v1667
    %v1756 = vadd.f32 %v1446, %v1669
    %v1757 = vadd.f32 %v1447, %v1673
    %v1758 = vadd.f32 %v1448, %v1675
    %v1759 = vadd.f32 %v1449, %v1677
    %v1760 = vadd.f32 %v1450, %v1679
    %v1761 = vadd.f32 %v1451, %v1683
    %v1762 = vadd.f32 %v1452, %v1685
    %v1763 = vadd.f32 %v1453, %v1687
    %v1764 = vadd.f32 %v1454, %v1689
    %v1765 = vadd.f32 %v1455, %v1693
    %v1766 = vadd.f32 %v1456, %v1695
    %v1767 = vadd.f32 %v1457, %v1697
    %v1768 = vadd.f32 %v1458, %v1699
    %v1769 = vadd.f32 %v1459, %v1703
    %v1770 = vadd.f32 %v1460, %v1705
    %v1771 = vadd.f32 %v1461, %v1707
    %v1772 = vadd.f32 %v1462, %v1709
    %v1773 = vadd.f32 %v1463, %v1713
    %v1774 = vadd.f32 %v1464, %v1715
    %v1775 = vadd.f32 %v1465, %v1717
    %v1776 = vadd.f32 %v1466, %v1719
    %v1777 = vld [vmem:[%s2] sm:$0x3]
    %v1779 = vlaneseq
    %v1780 = vshrl.u32 %v1779, 7
    %v1781 = vsub.s32 0, %v1780
    %v1782 = vrot.slane %v1777, %v1781
    %v1783 = vlaneseq
    %v1784 = vshrl.u32 %v1783, 7
    %v1785 = vsub.s32 1, %v1784
    %v1786 = vrot.slane %v1777, %v1785
    %v1789 = vadd.f32 %v1721, %v1782
    %v1790 = vadd.f32 %v1722, %v1786
    %v1791 = vadd.f32 %v1723, %v1782
    %v1792 = vadd.f32 %v1724, %v1786
    %v1793 = vadd.f32 %v1725, %v1782
    %v1794 = vadd.f32 %v1726, %v1786
    %v1795 = vadd.f32 %v1727, %v1782
    %v1796 = vadd.f32 %v1728, %v1786
    %v1797 = vadd.f32 %v1729, %v1782
    %v1798 = vadd.f32 %v1730, %v1786
    %v1799 = vadd.f32 %v1731, %v1782
    %v1800 = vadd.f32 %v1732, %v1786
    %v1801 = vadd.f32 %v1733, %v1782
    %v1802 = vadd.f32 %v1734, %v1786
    %v1803 = vadd.f32 %v1735, %v1782
    %v1804 = vadd.f32 %v1736, %v1786
    %v1805 = vadd.f32 %v1737, %v1782
    %v1806 = vadd.f32 %v1738, %v1786
    %v1807 = vadd.f32 %v1739, %v1782
    %v1808 = vadd.f32 %v1740, %v1786
    %v1809 = vadd.f32 %v1741, %v1782
    %v1810 = vadd.f32 %v1742, %v1786
    %v1811 = vadd.f32 %v1743, %v1782
    %v1812 = vadd.f32 %v1744, %v1786
    %v1813 = vadd.f32 %v1745, %v1782
    %v1814 = vadd.f32 %v1746, %v1786
    %v1815 = vadd.f32 %v1747, %v1782
    %v1816 = vadd.f32 %v1748, %v1786
    %v1817 = vadd.f32 %v1749, %v1782
    %v1818 = vadd.f32 %v1750, %v1786
    %v1819 = vadd.f32 %v1751, %v1782
    %v1820 = vadd.f32 %v1752, %v1786
    %v1821 = vadd.f32 %v1753, %v1782
    %v1822 = vadd.f32 %v1754, %v1786
    %v1823 = vadd.f32 %v1755, %v1782
    %v1824 = vadd.f32 %v1756, %v1786
    %v1825 = vadd.f32 %v1757, %v1782
    %v1826 = vadd.f32 %v1758, %v1786
    %v1827 = vadd.f32 %v1759, %v1782
    %v1828 = vadd.f32 %v1760, %v1786
    %v1829 = vadd.f32 %v1761, %v1782
    %v1830 = vadd.f32 %v1762, %v1786
    %v1831 = vadd.f32 %v1763, %v1782
    %v1832 = vadd.f32 %v1764, %v1786
    %v1833 = vadd.f32 %v1765, %v1782
    %v1834 = vadd.f32 %v1766, %v1786
    %v1835 = vadd.f32 %v1767, %v1782
    %v1836 = vadd.f32 %v1768, %v1786
    %v1837 = vadd.f32 %v1769, %v1782
    %v1838 = vadd.f32 %v1770, %v1786
    %v1839 = vadd.f32 %v1771, %v1782
    %v1840 = vadd.f32 %v1772, %v1786
    %v1841 = vadd.f32 %v1773, %v1782
    %v1842 = vadd.f32 %v1774, %v1786
    %v1843 = vadd.f32 %v1775, %v1782
    %v1844 = vadd.f32 %v1776, %v1786
    %v1845 = vmax.f32 %v1789, 0.0
    %v1846 = vmax.f32 %v1790, 0.0
    %v1847 = vmax.f32 %v1791, 0.0
    %v1848 = vmax.f32 %v1792, 0.0
    %v1849 = vmax.f32 %v1793, 0.0
    %v1850 = vmax.f32 %v1794, 0.0
    %v1851 = vmax.f32 %v1795, 0.0
    %v1852 = vmax.f32 %v1796, 0.0
    %v1853 = vmax.f32 %v1797, 0.0
    %v1854 = vmax.f32 %v1798, 0.0
    %v1855 = vmax.f32 %v1799, 0.0
    %v1856 = vmax.f32 %v1800, 0.0
    %v1857 = vmax.f32 %v1801, 0.0
    %v1858 = vmax.f32 %v1802, 0.0
    %v1859 = vmax.f32 %v1803, 0.0
    %v1860 = vmax.f32 %v1804, 0.0
    %v1861 = vmax.f32 %v1805, 0.0
    %v1862 = vmax.f32 %v1806, 0.0
    %v1863 = vmax.f32 %v1807, 0.0
    %v1864 = vmax.f32 %v1808, 0.0
    %v1865 = vmax.f32 %v1809, 0.0
    %v1866 = vmax.f32 %v1810, 0.0
    %v1867 = vmax.f32 %v1811, 0.0
    %v1868 = vmax.f32 %v1812, 0.0
    %v1869 = vmax.f32 %v1813, 0.0
    %v1870 = vmax.f32 %v1814, 0.0
    %v1871 = vmax.f32 %v1815, 0.0
    %v1872 = vmax.f32 %v1816, 0.0
    %v1873 = vmax.f32 %v1817, 0.0
    %v1874 = vmax.f32 %v1818, 0.0
    %v1875 = vmax.f32 %v1819, 0.0
    %v1876 = vmax.f32 %v1820, 0.0
    %v1877 = vmax.f32 %v1821, 0.0
    %v1878 = vmax.f32 %v1822, 0.0
    %v1879 = vmax.f32 %v1823, 0.0
    %v1880 = vmax.f32 %v1824, 0.0
    %v1881 = vmax.f32 %v1825, 0.0
    %v1882 = vmax.f32 %v1826, 0.0
    %v1883 = vmax.f32 %v1827, 0.0
    %v1884 = vmax.f32 %v1828, 0.0
    %v1885 = vmax.f32 %v1829, 0.0
    %v1886 = vmax.f32 %v1830, 0.0
    %v1887 = vmax.f32 %v1831, 0.0
    %v1888 = vmax.f32 %v1832, 0.0
    %v1889 = vmax.f32 %v1833, 0.0
    %v1890 = vmax.f32 %v1834, 0.0
    %v1891 = vmax.f32 %v1835, 0.0
    %v1892 = vmax.f32 %v1836, 0.0
    %v1893 = vmax.f32 %v1837, 0.0
    %v1894 = vmax.f32 %v1838, 0.0
    %v1895 = vmax.f32 %v1839, 0.0
    %v1896 = vmax.f32 %v1840, 0.0
    %v1897 = vmax.f32 %v1841, 0.0
    %v1898 = vmax.f32 %v1842, 0.0
    %v1899 = vmax.f32 %v1843, 0.0
    %v1900 = vmax.f32 %v1844, 0.0
    %v1901 = vmax.f32 %v1845, %v1846
    %v1902 = vmax.f32 %v1847, %v1848
    %v1903 = vmax.f32 %v1849, %v1850
    %v1904 = vmax.f32 %v1851, %v1852
    %v1905 = vmax.f32 %v1853, %v1854
    %v1906 = vmax.f32 %v1855, %v1856
    %v1907 = vmax.f32 %v1857, %v1858
    %v1908 = vmax.f32 %v1859, %v1860
    %v1909 = vmax.f32 %v1861, %v1862
    %v1910 = vmax.f32 %v1863, %v1864
    %v1911 = vmax.f32 %v1865, %v1866
    %v1912 = vmax.f32 %v1867, %v1868
    %v1913 = vmax.f32 %v1869, %v1870
    %v1914 = vmax.f32 %v1871, %v1872
    %v1915 = vmax.f32 %v1873, %v1874
    %v1916 = vmax.f32 %v1875, %v1876
    %v1917 = vmax.f32 %v1877, %v1878
    %v1918 = vmax.f32 %v1879, %v1880
    %v1919 = vmax.f32 %v1881, %v1882
    %v1920 = vmax.f32 %v1883, %v1884
    %v1921 = vmax.f32 %v1885, %v1886
    %v1922 = vmax.f32 %v1887, %v1888
    %v1923 = vmax.f32 %v1889, %v1890
    %v1924 = vmax.f32 %v1891, %v1892
    %v1925 = vmax.f32 %v1893, %v1894
    %v1926 = vmax.f32 %v1895, %v1896
    %v1927 = vmax.f32 %v1897, %v1898
    %v1928 = vmax.f32 %v1899, %v1900
    %1929 = vmatprep.subr.bf16.mxu0 %v263
    %1930 = vmatpush1.bf16.msra.mxu0 %v262
    %1931 = vmatprep.subr.bf16.mxu0 %v265
    %1932 = vmatpush1.bf16.msra.mxu0 %v264
    %1933 = vmatprep.subr.bf16.mxu0 %v267
    %1934 = vmatpush1.bf16.msra.mxu0 %v266
    %1935 = vmatprep.subr.bf16.mxu0 %v269
    %1936 = vmatpush1.bf16.msra.mxu0 %v268
    %1937 = vmatprep.subr.bf16.mxu0 %v271
    %1938 = vmatpush1.bf16.msra.mxu0 %v270
    %1939 = vmatprep.subr.bf16.mxu0 %v273
    %1940 = vmatpush1.bf16.msra.mxu0 %v272
    %1941 = vmatprep.subr.bf16.mxu0 0
    %1942 = vmatpush1.bf16.msra.mxu0 0
    %1943 = vmatprep.subr.bf16.mxu0 0
    %1944 = vmatpush1.bf16.msra.mxu0 0
    %1945 = vmatprep.subr.bf16.mxu0 0
    %1946 = vmatpush1.bf16.msra.mxu0 0
    %1947 = vmatprep.subr.bf16.mxu0 0
    %1948 = vmatpush1.bf16.msra.mxu0 0
    %1949 = vmatprep.subr.bf16.mxu0 0
    %1950 = vmatpush1.bf16.msra.mxu0 0
    %1951 = vmatprep.subr.bf16.mxu0 0
    %1952 = vmatpush1.bf16.msra.mxu0 0
    %1953 = vmatprep.subr.bf16.mxu0 0
    %1954 = vmatpush1.bf16.msra.mxu0 0
    %1955 = vmatprep.subr.bf16.mxu0 0
    %1956 = vmatpush1.bf16.msra.mxu0 0
    %1957 = vmatprep.subr.bf16.mxu0 0
    %1958 = vmatpush1.bf16.msra.mxu0 0
    %1959 = vmatprep.subr.bf16.mxu0 0
    %1960 = vmatpush1.bf16.msra.mxu0 0
    %1961 = vmatprep.mubr.bf16.mxu0 0
    %1962 = vmatmul.mubr.bf16.gmra.mrb[0].mxu0 %v636
    %v1963 = vpop.f32.mrb[0].mxu0
    %v1964 = vadd.f32 0.0, %v1963
    %v1965 = vpop.f32.mrb[0].mxu0
    %v1966 = vadd.f32 0.0, %v1965
    %v1967 = vpop.f32.mrb[0].mxu0
    %v1968 = vadd.f32 0.0, %v1967
    %v1969 = vpop.f32.mrb[0].mxu0
    %v1970 = vadd.f32 0.0, %v1969
    %1971 = vmatprep.mubr.bf16.mxu0 0
    %1972 = vmatmul.mubr.bf16.gmra.mrb[0].mxu0 %v639
    %v1973 = vpop.f32.mrb[0].mxu0
    %v1974 = vadd.f32 0.0, %v1973
    %v1975 = vpop.f32.mrb[0].mxu0
    %v1976 = vadd.f32 0.0, %v1975
    %v1977 = vpop.f32.mrb[0].mxu0
    %v1978 = vadd.f32 0.0, %v1977
    %v1979 = vpop.f32.mrb[0].mxu0
    %v1980 = vadd.f32 0.0, %v1979
    %1981 = vmatprep.mubr.bf16.mxu0 0
    %1982 = vmatmul.mubr.bf16.gmra.mrb[0].mxu0 %v642
    %v1983 = vpop.f32.mrb[0].mxu0
    %v1984 = vadd.f32 0.0, %v1983
    %v1985 = vpop.f32.mrb[0].mxu0
    %v1986 = vadd.f32 0.0, %v1985
    %v1987 = vpop.f32.mrb[0].mxu0
    %v1988 = vadd.f32 0.0, %v1987
    %v1989 = vpop.f32.mrb[0].mxu0
    %v1990 = vadd.f32 0.0, %v1989
    %1991 = vmatprep.mubr.bf16.mxu0 0
    %1992 = vmatmul.mubr.bf16.gmra.mrb[0].mxu0 %v645
    %v1993 = vpop.f32.mrb[0].mxu0
    %v1994 = vadd.f32 0.0, %v1993
    %v1995 = vpop.f32.mrb[0].mxu0
    %v1996 = vadd.f32 0.0, %v1995
    %v1997 = vpop.f32.mrb[0].mxu0
    %v1998 = vadd.f32 0.0, %v1997
    %v1999 = vpop.f32.mrb[0].mxu0
    %v2000 = vadd.f32 0.0, %v1999
    %2001 = vmatprep.mubr.bf16.mxu0 0
    %2002 = vmatmul.mubr.bf16.gmra.mrb[0].mxu0 %v648
    %v2003 = vpop.f32.mrb[0].mxu0
    %v2004 = vadd.f32 0.0, %v2003
    %v2005 = vpop.f32.mrb[0].mxu0
    %v2006 = vadd.f32 0.0, %v2005
    %v2007 = vpop.f32.mrb[0].mxu0
    %v2008 = vadd.f32 0.0, %v2007
    %v2009 = vpop.f32.mrb[0].mxu0
    %v2010 = vadd.f32 0.0, %v2009
    %2011 = vmatprep.mubr.bf16.mxu0 0
    %2012 = vmatmul.mubr.bf16.gmra.mrb[0].mxu0 %v651
    %v2013 = vpop.f32.mrb[0].mxu0
    %v2014 = vadd.f32 0.0, %v2013
    %v2015 = vpop.f32.mrb[0].mxu0
    %v2016 = vadd.f32 0.0, %v2015
    %v2017 = vpop.f32.mrb[0].mxu0
    %v2018 = vadd.f32 0.0, %v2017
    %v2019 = vpop.f32.mrb[0].mxu0
    %v2020 = vadd.f32 0.0, %v2019
    %2021 = vmatprep.mubr.bf16.mxu0 0
    %2022 = vmatmul.mubr.bf16.gmra.mrb[0].mxu0 %v654
    %v2023 = vpop.f32.mrb[0].mxu0
    %v2024 = vadd.f32 0.0, %v2023
    %v2025 = vpop.f32.mrb[0].mxu0
    %v2026 = vadd.f32 0.0, %v2025
    %v2027 = vpop.f32.mrb[0].mxu0
    %v2028 = vadd.f32 0.0, %v2027
    %v2029 = vpop.f32.mrb[0].mxu0
    %v2030 = vadd.f32 0.0, %v2029
    %2031 = vmatprep.mubr.bf16.mxu0 0
    %2032 = vmatmul.mubr.bf16.gmra.mrb[0].mxu0 %v657
    %v2033 = vpop.f32.mrb[0].mxu0
    %v2034 = vadd.f32 0.0, %v2033
    %v2035 = vpop.f32.mrb[0].mxu0
    %v2036 = vadd.f32 0.0, %v2035
    %v2037 = vpop.f32.mrb[0].mxu0
    %v2038 = vadd.f32 0.0, %v2037
    %v2039 = vpop.f32.mrb[0].mxu0
    %v2040 = vadd.f32 0.0, %v2039
    %2041 = vmatprep.mubr.bf16.mxu0 0
    %2042 = vmatmul.mubr.bf16.gmra.mrb[0].mxu0 %v660
    %v2043 = vpop.f32.mrb[0].mxu0
    %v2044 = vadd.f32 0.0, %v2043
    %v2045 = vpop.f32.mrb[0].mxu0
    %v2046 = vadd.f32 0.0, %v2045
    %v2047 = vpop.f32.mrb[0].mxu0
    %v2048 = vadd.f32 0.0, %v2047
    %v2049 = vpop.f32.mrb[0].mxu0
    %v2050 = vadd.f32 0.0, %v2049
    %2051 = vmatprep.mubr.bf16.mxu0 0
    %2052 = vmatmul.mubr.bf16.gmra.mrb[0].mxu0 %v663
    %v2053 = vpop.f32.mrb[0].mxu0
    %v2054 = vadd.f32 0.0, %v2053
    %v2055 = vpop.f32.mrb[0].mxu0
    %v2056 = vadd.f32 0.0, %v2055
    %v2057 = vpop.f32.mrb[0].mxu0
    %v2058 = vadd.f32 0.0, %v2057
    %v2059 = vpop.f32.mrb[0].mxu0
    %v2060 = vadd.f32 0.0, %v2059
    %2061 = vmatprep.mubr.bf16.mxu0 0
    %2062 = vmatmul.mubr.bf16.gmra.mrb[0].mxu0 %v666
    %v2063 = vpop.f32.mrb[0].mxu0
    %v2064 = vadd.f32 0.0, %v2063
    %v2065 = vpop.f32.mrb[0].mxu0
    %v2066 = vadd.f32 0.0, %v2065
    %v2067 = vpop.f32.mrb[0].mxu0
    %v2068 = vadd.f32 0.0, %v2067
    %v2069 = vpop.f32.mrb[0].mxu0
    %v2070 = vadd.f32 0.0, %v2069
    %2071 = vmatprep.mubr.bf16.mxu0 0
    %2072 = vmatmul.mubr.bf16.gmra.mrb[0].mxu0 %v669
    %v2073 = vpop.f32.mrb[0].mxu0
    %v2074 = vadd.f32 0.0, %v2073
    %v2075 = vpop.f32.mrb[0].mxu0
    %v2076 = vadd.f32 0.0, %v2075
    %v2077 = vpop.f32.mrb[0].mxu0
    %v2078 = vadd.f32 0.0, %v2077
    %v2079 = vpop.f32.mrb[0].mxu0
    %v2080 = vadd.f32 0.0, %v2079
    %2081 = vmatprep.mubr.bf16.mxu0 0
    %2082 = vmatmul.mubr.bf16.gmra.mrb[0].mxu0 %v672
    %v2083 = vpop.f32.mrb[0].mxu0
    %v2084 = vadd.f32 0.0, %v2083
    %v2085 = vpop.f32.mrb[0].mxu0
    %v2086 = vadd.f32 0.0, %v2085
    %v2087 = vpop.f32.mrb[0].mxu0
    %v2088 = vadd.f32 0.0, %v2087
    %v2089 = vpop.f32.mrb[0].mxu0
    %v2090 = vadd.f32 0.0, %v2089
    %2091 = vmatprep.mubr.bf16.mxu0 0
    %2092 = vmatmul.mubr.bf16.gmra.mrb[0].mxu0 %v926
    %v2093 = vpop.f32.mrb[0].mxu0
    %v2094 = vadd.f32 0.0, %v2093
    %v2095 = vpop.f32.mrb[0].mxu0
    %v2096 = vadd.f32 0.0, %v2095
    %v2097 = vpop.f32.mrb[0].mxu0
    %v2098 = vadd.f32 0.0, %v2097
    %v2099 = vpop.f32.mrb[0].mxu0
    %v2100 = vadd.f32 0.0, %v2099
    %2101 = vdwg.mxu0
    %2102 = vmatprep.subr.bf16.mxu0 %v609
    %2103 = vmatpush1.bf16.msra.mxu0 %v608
    %2104 = vmatprep.subr.bf16.mxu0 %v611
    %2105 = vmatpush1.bf16.msra.mxu0 %v610
    %2106 = vmatprep.subr.bf16.mxu0 %v613
    %2107 = vmatpush1.bf16.msra.mxu0 %v612
    %2108 = vmatprep.subr.bf16.mxu0 %v615
    %2109 = vmatpush1.bf16.msra.mxu0 %v614
    %2110 = vmatprep.subr.bf16.mxu0 %v617
    %2111 = vmatpush1.bf16.msra.mxu0 %v616
    %2112 = vmatprep.subr.bf16.mxu0 %v619
    %2113 = vmatpush1.bf16.msra.mxu0 %v618
    %2114 = vmatprep.subr.bf16.mxu0 0
    %2115 = vmatpush1.bf16.msra.mxu0 0
    %2116 = vmatprep.subr.bf16.mxu0 0
    %2117 = vmatpush1.bf16.msra.mxu0 0
    %2118 = vmatprep.subr.bf16.mxu0 0
    %2119 = vmatpush1.bf16.msra.mxu0 0
    %2120 = vmatprep.subr.bf16.mxu0 0
    %2121 = vmatpush1.bf16.msra.mxu0 0
    %2122 = vmatprep.subr.bf16.mxu0 0
    %2123 = vmatpush1.bf16.msra.mxu0 0
    %2124 = vmatprep.subr.bf16.mxu0 0
    %2125 = vmatpush1.bf16.msra.mxu0 0
    %2126 = vmatprep.subr.bf16.mxu0 0
    %2127 = vmatpush1.bf16.msra.mxu0 0
    %2128 = vmatprep.subr.bf16.mxu0 0
    %2129 = vmatpush1.bf16.msra.mxu0 0
    %2130 = vmatprep.subr.bf16.mxu0 0
    %2131 = vmatpush1.bf16.msra.mxu0 0
    %2132 = vmatprep.subr.bf16.mxu0 0
    %2133 = vmatpush1.bf16.msra.mxu0 0
    %2134 = vmatprep.mubr.bf16.mxu0 0
    %2135 = vmatmul.mubr.bf16.gmra.mrb[0].mxu0 %v288
    %v2136 = vpop.f32.mrb[0].mxu0
    %v2137 = vadd.f32 %v1964, %v2136
    %v2138 = vpop.f32.mrb[0].mxu0
    %v2139 = vadd.f32 %v1966, %v2138
    %v2140 = vpop.f32.mrb[0].mxu0
    %v2141 = vadd.f32 %v1968, %v2140
    %v2142 = vpop.f32.mrb[0].mxu0
    %v2143 = vadd.f32 %v1970, %v2142
    %2144 = vmatprep.mubr.bf16.mxu0 0
    %2145 = vmatmul.mubr.bf16.gmra.mrb[0].mxu0 %v291
    %v2146 = vpop.f32.mrb[0].mxu0
    %v2147 = vadd.f32 %v1974, %v2146
    %v2148 = vpop.f32.mrb[0].mxu0
    %v2149 = vadd.f32 %v1976, %v2148
    %v2150 = vpop.f32.mrb[0].mxu0
    %v2151 = vadd.f32 %v1978, %v2150
    %v2152 = vpop.f32.mrb[0].mxu0
    %v2153 = vadd.f32 %v1980, %v2152
    %2154 = vmatprep.mubr.bf16.mxu0 0
    %2155 = vmatmul.mubr.bf16.gmra.mrb[0].mxu0 %v294
    %v2156 = vpop.f32.mrb[0].mxu0
    %v2157 = vadd.f32 %v1984, %v2156
    %v2158 = vpop.f32.mrb[0].mxu0
    %v2159 = vadd.f32 %v1986, %v2158
    %v2160 = vpop.f32.mrb[0].mxu0
    %v2161 = vadd.f32 %v1988, %v2160
    %v2162 = vpop.f32.mrb[0].mxu0
    %v2163 = vadd.f32 %v1990, %v2162
    %2164 = vmatprep.mubr.bf16.mxu0 0
    %2165 = vmatmul.mubr.bf16.gmra.mrb[0].mxu0 %v297
    %v2166 = vpop.f32.mrb[0].mxu0
    %v2167 = vadd.f32 %v1994, %v2166
    %v2168 = vpop.f32.mrb[0].mxu0
    %v2169 = vadd.f32 %v1996, %v2168
    %v2170 = vpop.f32.mrb[0].mxu0
    %v2171 = vadd.f32 %v1998, %v2170
    %v2172 = vpop.f32.mrb[0].mxu0
    %v2173 = vadd.f32 %v2000, %v2172
    %2174 = vmatprep.mubr.bf16.mxu0 0
    %2175 = vmatmul.mubr.bf16.gmra.mrb[0].mxu0 %v300
    %v2176 = vpop.f32.mrb[0].mxu0
    %v2177 = vadd.f32 %v2004, %v2176
    %v2178 = vpop.f32.mrb[0].mxu0
    %v2179 = vadd.f32 %v2006, %v2178
    %v2180 = vpop.f32.mrb[0].mxu0
    %v2181 = vadd.f32 %v2008, %v2180
    %v2182 = vpop.f32.mrb[0].mxu0
    %v2183 = vadd.f32 %v2010, %v2182
    %2184 = vmatprep.mubr.bf16.mxu0 0
    %2185 = vmatmul.mubr.bf16.gmra.mrb[0].mxu0 %v303
    %v2186 = vpop.f32.mrb[0].mxu0
    %v2187 = vadd.f32 %v2014, %v2186
    %v2188 = vpop.f32.mrb[0].mxu0
    %v2189 = vadd.f32 %v2016, %v2188
    %v2190 = vpop.f32.mrb[0].mxu0
    %v2191 = vadd.f32 %v2018, %v2190
    %v2192 = vpop.f32.mrb[0].mxu0
    %v2193 = vadd.f32 %v2020, %v2192
    %2194 = vmatprep.mubr.bf16.mxu0 0
    %2195 = vmatmul.mubr.bf16.gmra.mrb[0].mxu0 %v306
    %v2196 = vpop.f32.mrb[0].mxu0
    %v2197 = vadd.f32 %v2024, %v2196
    %v2198 = vpop.f32.mrb[0].mxu0
    %v2199 = vadd.f32 %v2026, %v2198
    %v2200 = vpop.f32.mrb[0].mxu0
    %v2201 = vadd.f32 %v2028, %v2200
    %v2202 = vpop.f32.mrb[0].mxu0
    %v2203 = vadd.f32 %v2030, %v2202
    %2204 = vmatprep.mubr.bf16.mxu0 0
    %2205 = vmatmul.mubr.bf16.gmra.mrb[0].mxu0 %v309
    %v2206 = vpop.f32.mrb[0].mxu0
    %v2207 = vadd.f32 %v2034, %v2206
    %v2208 = vpop.f32.mrb[0].mxu0
    %v2209 = vadd.f32 %v2036, %v2208
    %v2210 = vpop.f32.mrb[0].mxu0
    %v2211 = vadd.f32 %v2038, %v2210
    %v2212 = vpop.f32.mrb[0].mxu0
    %v2213 = vadd.f32 %v2040, %v2212
    %2214 = vmatprep.mubr.bf16.mxu0 0
    %2215 = vmatmul.mubr.bf16.gmra.mrb[0].mxu0 %v312
    %v2216 = vpop.f32.mrb[0].mxu0
    %v2217 = vadd.f32 %v2044, %v2216
    %v2218 = vpop.f32.mrb[0].mxu0
    %v2219 = vadd.f32 %v2046, %v2218
    %v2220 = vpop.f32.mrb[0].mxu0
    %v2221 = vadd.f32 %v2048, %v2220
    %v2222 = vpop.f32.mrb[0].mxu0
    %v2223 = vadd.f32 %v2050, %v2222
    %2224 = vmatprep.mubr.bf16.mxu0 0
    %2225 = vmatmul.mubr.bf16.gmra.mrb[0].mxu0 %v315
    %v2226 = vpop.f32.mrb[0].mxu0
    %v2227 = vadd.f32 %v2054, %v2226
    %v2228 = vpop.f32.mrb[0].mxu0
    %v2229 = vadd.f32 %v2056, %v2228
    %v2230 = vpop.f32.mrb[0].mxu0
    %v2231 = vadd.f32 %v2058, %v2230
    %v2232 = vpop.f32.mrb[0].mxu0
    %v2233 = vadd.f32 %v2060, %v2232
    %2234 = vmatprep.mubr.bf16.mxu0 0
    %2235 = vmatmul.mubr.bf16.gmra.mrb[0].mxu0 %v318
    %v2236 = vpop.f32.mrb[0].mxu0
    %v2237 = vadd.f32 %v2064, %v2236
    %v2238 = vpop.f32.mrb[0].mxu0
    %v2239 = vadd.f32 %v2066, %v2238
    %v2240 = vpop.f32.mrb[0].mxu0
    %v2241 = vadd.f32 %v2068, %v2240
    %v2242 = vpop.f32.mrb[0].mxu0
    %v2243 = vadd.f32 %v2070, %v2242
    %2244 = vmatprep.mubr.bf16.mxu0 0
    %2245 = vmatmul.mubr.bf16.gmra.mrb[0].mxu0 %v321
    %v2246 = vpop.f32.mrb[0].mxu0
    %v2247 = vadd.f32 %v2074, %v2246
    %v2248 = vpop.f32.mrb[0].mxu0
    %v2249 = vadd.f32 %v2076, %v2248
    %v2250 = vpop.f32.mrb[0].mxu0
    %v2251 = vadd.f32 %v2078, %v2250
    %v2252 = vpop.f32.mrb[0].mxu0
    %v2253 = vadd.f32 %v2080, %v2252
    %2254 = vmatprep.mubr.bf16.mxu0 0
    %2255 = vmatmul.mubr.bf16.gmra.mrb[0].mxu0 %v324
    %v2256 = vpop.f32.mrb[0].mxu0
    %v2257 = vadd.f32 %v2084, %v2256
    %v2258 = vpop.f32.mrb[0].mxu0
    %v2259 = vadd.f32 %v2086, %v2258
    %v2260 = vpop.f32.mrb[0].mxu0
    %v2261 = vadd.f32 %v2088, %v2260
    %v2262 = vpop.f32.mrb[0].mxu0
    %v2263 = vadd.f32 %v2090, %v2262
    %2264 = vmatprep.mubr.bf16.mxu0 0
    %2265 = vmatmul.mubr.bf16.gmra.mrb[0].mxu0 %v327
    %v2266 = vpop.f32.mrb[0].mxu0
    %v2267 = vadd.f32 %v2094, %v2266
    %v2268 = vpop.f32.mrb[0].mxu0
    %v2269 = vadd.f32 %v2096, %v2268
    %v2270 = vpop.f32.mrb[0].mxu0
    %v2271 = vadd.f32 %v2098, %v2270
    %v2272 = vpop.f32.mrb[0].mxu0
    %v2273 = vadd.f32 %v2100, %v2272
    %2274 = vdwg.mxu0
    %2275 = vmatprep.subr.bf16.mxu0 %v902
    %2276 = vmatpush1.bf16.msra.mxu0 %v901
    %2277 = vmatprep.subr.bf16.mxu0 %v904
    %2278 = vmatpush1.bf16.msra.mxu0 %v903
    %2279 = vmatprep.subr.bf16.mxu0 %v906
    %2280 = vmatpush1.bf16.msra.mxu0 %v905
    %2281 = vmatprep.subr.bf16.mxu0 %v908
    %2282 = vmatpush1.bf16.msra.mxu0 %v907
    %2283 = vmatprep.subr.bf16.mxu0 %v910
    %2284 = vmatpush1.bf16.msra.mxu0 %v909
    %2285 = vmatprep.subr.bf16.mxu0 %v912
    %2286 = vmatpush1.bf16.msra.mxu0 %v911
    %2287 = vmatprep.subr.bf16.mxu0 0
    %2288 = vmatpush1.bf16.msra.mxu0 0
    %2289 = vmatprep.subr.bf16.mxu0 0
    %2290 = vmatpush1.bf16.msra.mxu0 0
    %2291 = vmatprep.subr.bf16.mxu0 0
    %2292 = vmatpush1.bf16.msra.mxu0 0
    %2293 = vmatprep.subr.bf16.mxu0 0
    %2294 = vmatpush1.bf16.msra.mxu0 0
    %2295 = vmatprep.subr.bf16.mxu0 0
    %2296 = vmatpush1.bf16.msra.mxu0 0
    %2297 = vmatprep.subr.bf16.mxu0 0
    %2298 = vmatpush1.bf16.msra.mxu0 0
    %2299 = vmatprep.subr.bf16.mxu0 0
    %2300 = vmatpush1.bf16.msra.mxu0 0
    %2301 = vmatprep.subr.bf16.mxu0 0
    %2302 = vmatpush1.bf16.msra.mxu0 0
    %2303 = vmatprep.subr.bf16.mxu0 0
    %2304 = vmatpush1.bf16.msra.mxu0 0
    %2305 = vmatprep.subr.bf16.mxu0 0
    %2306 = vmatpush1.bf16.msra.mxu0 0
    %2307 = vmatprep.mubr.bf16.mxu0 0
    %2308 = vmatmul.mubr.bf16.gmra.mrb[0].mxu0 %v291
    %v2309 = vpop.f32.mrb[0].mxu0
    %v2310 = vadd.f32 0.0, %v2309
    %v2311 = vpop.f32.mrb[0].mxu0
    %v2312 = vadd.f32 0.0, %v2311
    %v2313 = vpop.f32.mrb[0].mxu0
    %v2314 = vadd.f32 0.0, %v2313
    %v2315 = vpop.f32.mrb[0].mxu0
    %v2316 = vadd.f32 0.0, %v2315
    %2317 = vmatprep.mubr.bf16.mxu0 0
    %2318 = vmatmul.mubr.bf16.gmra.mrb[0].mxu0 %v294
    %v2319 = vpop.f32.mrb[0].mxu0
    %v2320 = vadd.f32 0.0, %v2319
    %v2321 = vpop.f32.mrb[0].mxu0
    %v2322 = vadd.f32 0.0, %v2321
    %v2323 = vpop.f32.mrb[0].mxu0
    %v2324 = vadd.f32 0.0, %v2323
    %v2325 = vpop.f32.mrb[0].mxu0
    %v2326 = vadd.f32 0.0, %v2325
    %2327 = vmatprep.mubr.bf16.mxu0 0
    %2328 = vmatmul.mubr.bf16.gmra.mrb[0].mxu0 %v297
    %v2329 = vpop.f32.mrb[0].mxu0
    %v2330 = vadd.f32 0.0, %v2329
    %v2331 = vpop.f32.mrb[0].mxu0
    %v2332 = vadd.f32 0.0, %v2331
    %v2333 = vpop.f32.mrb[0].mxu0
    %v2334 = vadd.f32 0.0, %v2333
    %v2335 = vpop.f32.mrb[0].mxu0
    %v2336 = vadd.f32 0.0, %v2335
    %2337 = vmatprep.mubr.bf16.mxu0 0
    %2338 = vmatmul.mubr.bf16.gmra.mrb[0].mxu0 %v300
    %v2339 = vpop.f32.mrb[0].mxu0
    %v2340 = vadd.f32 0.0, %v2339
    %v2341 = vpop.f32.mrb[0].mxu0
    %v2342 = vadd.f32 0.0, %v2341
    %v2343 = vpop.f32.mrb[0].mxu0
    %v2344 = vadd.f32 0.0, %v2343
    %v2345 = vpop.f32.mrb[0].mxu0
    %v2346 = vadd.f32 0.0, %v2345
    %2347 = vmatprep.mubr.bf16.mxu0 0
    %2348 = vmatmul.mubr.bf16.gmra.mrb[0].mxu0 %v303
    %v2349 = vpop.f32.mrb[0].mxu0
    %v2350 = vadd.f32 0.0, %v2349
    %v2351 = vpop.f32.mrb[0].mxu0
    %v2352 = vadd.f32 0.0, %v2351
    %v2353 = vpop.f32.mrb[0].mxu0
    %v2354 = vadd.f32 0.0, %v2353
    %v2355 = vpop.f32.mrb[0].mxu0
    %v2356 = vadd.f32 0.0, %v2355
    %2357 = vmatprep.mubr.bf16.mxu0 0
    %2358 = vmatmul.mubr.bf16.gmra.mrb[0].mxu0 %v306
    %v2359 = vpop.f32.mrb[0].mxu0
    %v2360 = vadd.f32 0.0, %v2359
    %v2361 = vpop.f32.mrb[0].mxu0
    %v2362 = vadd.f32 0.0, %v2361
    %v2363 = vpop.f32.mrb[0].mxu0
    %v2364 = vadd.f32 0.0, %v2363
    %v2365 = vpop.f32.mrb[0].mxu0
    %v2366 = vadd.f32 0.0, %v2365
    %2367 = vmatprep.mubr.bf16.mxu0 0
    %2368 = vmatmul.mubr.bf16.gmra.mrb[0].mxu0 %v309
    %v2369 = vpop.f32.mrb[0].mxu0
    %v2370 = vadd.f32 0.0, %v2369
    %v2371 = vpop.f32.mrb[0].mxu0
    %v2372 = vadd.f32 0.0, %v2371
    %v2373 = vpop.f32.mrb[0].mxu0
    %v2374 = vadd.f32 0.0, %v2373
    %v2375 = vpop.f32.mrb[0].mxu0
    %v2376 = vadd.f32 0.0, %v2375
    %2377 = vmatprep.mubr.bf16.mxu0 0
    %2378 = vmatmul.mubr.bf16.gmra.mrb[0].mxu0 %v312
    %v2379 = vpop.f32.mrb[0].mxu0
    %v2380 = vadd.f32 0.0, %v2379
    %v2381 = vpop.f32.mrb[0].mxu0
    %v2382 = vadd.f32 0.0, %v2381
    %v2383 = vpop.f32.mrb[0].mxu0
    %v2384 = vadd.f32 0.0, %v2383
    %v2385 = vpop.f32.mrb[0].mxu0
    %v2386 = vadd.f32 0.0, %v2385
    %2387 = vmatprep.mubr.bf16.mxu0 0
    %2388 = vmatmul.mubr.bf16.gmra.mrb[0].mxu0 %v315
    %v2389 = vpop.f32.mrb[0].mxu0
    %v2390 = vadd.f32 0.0, %v2389
    %v2391 = vpop.f32.mrb[0].mxu0
    %v2392 = vadd.f32 0.0, %v2391
    %v2393 = vpop.f32.mrb[0].mxu0
    %v2394 = vadd.f32 0.0, %v2393
    %v2395 = vpop.f32.mrb[0].mxu0
    %v2396 = vadd.f32 0.0, %v2395
    %2397 = vmatprep.mubr.bf16.mxu0 0
    %2398 = vmatmul.mubr.bf16.gmra.mrb[0].mxu0 %v318
    %v2399 = vpop.f32.mrb[0].mxu0
    %v2400 = vadd.f32 0.0, %v2399
    %v2401 = vpop.f32.mrb[0].mxu0
    %v2402 = vadd.f32 0.0, %v2401
    %v2403 = vpop.f32.mrb[0].mxu0
    %v2404 = vadd.f32 0.0, %v2403
    %v2405 = vpop.f32.mrb[0].mxu0
    %v2406 = vadd.f32 0.0, %v2405
    %2407 = vmatprep.mubr.bf16.mxu0 0
    %2408 = vmatmul.mubr.bf16.gmra.mrb[0].mxu0 %v321
    %v2409 = vpop.f32.mrb[0].mxu0
    %v2410 = vadd.f32 0.0, %v2409
    %v2411 = vpop.f32.mrb[0].mxu0
    %v2412 = vadd.f32 0.0, %v2411
    %v2413 = vpop.f32.mrb[0].mxu0
    %v2414 = vadd.f32 0.0, %v2413
    %v2415 = vpop.f32.mrb[0].mxu0
    %v2416 = vadd.f32 0.0, %v2415
    %2417 = vmatprep.mubr.bf16.mxu0 0
    %2418 = vmatmul.mubr.bf16.gmra.mrb[0].mxu0 %v324
    %v2419 = vpop.f32.mrb[0].mxu0
    %v2420 = vadd.f32 0.0, %v2419
    %v2421 = vpop.f32.mrb[0].mxu0
    %v2422 = vadd.f32 0.0, %v2421
    %v2423 = vpop.f32.mrb[0].mxu0
    %v2424 = vadd.f32 0.0, %v2423
    %v2425 = vpop.f32.mrb[0].mxu0
    %v2426 = vadd.f32 0.0, %v2425
    %2427 = vmatprep.mubr.bf16.mxu0 0
    %2428 = vmatmul.mubr.bf16.gmra.mrb[0].mxu0 %v327
    %v2429 = vpop.f32.mrb[0].mxu0
    %v2430 = vadd.f32 0.0, %v2429
    %v2431 = vpop.f32.mrb[0].mxu0
    %v2432 = vadd.f32 0.0, %v2431
    %v2433 = vpop.f32.mrb[0].mxu0
    %v2434 = vadd.f32 0.0, %v2433
    %v2435 = vpop.f32.mrb[0].mxu0
    %v2436 = vadd.f32 0.0, %v2435
    %2437 = vmatprep.mubr.bf16.mxu0 0
    %2438 = vmatmul.mubr.bf16.gmra.mrb[0].mxu0 %v1236
    %v2439 = vpop.f32.mrb[0].mxu0
    %v2440 = vadd.f32 0.0, %v2439
    %v2441 = vpop.f32.mrb[0].mxu0
    %v2442 = vadd.f32 0.0, %v2441
    %v2443 = vpop.f32.mrb[0].mxu0
    %v2444 = vadd.f32 0.0, %v2443
    %v2445 = vpop.f32.mrb[0].mxu0
    %v2446 = vadd.f32 0.0, %v2445
    %2447 = vdwg.mxu0
    %v2448 = vadd.f32 %v2137, %v2310
    %v2449 = vadd.f32 %v2139, %v2312
    %v2450 = vadd.f32 %v2141, %v2314
    %v2451 = vadd.f32 %v2143, %v2316
    %v2452 = vadd.f32 %v2147, %v2320
    %v2453 = vadd.f32 %v2149, %v2322
    %v2454 = vadd.f32 %v2151, %v2324
    %v2455 = vadd.f32 %v2153, %v2326
    %v2456 = vadd.f32 %v2157, %v2330
    %v2457 = vadd.f32 %v2159, %v2332
    %v2458 = vadd.f32 %v2161, %v2334
    %v2459 = vadd.f32 %v2163, %v2336
    %v2460 = vadd.f32 %v2167, %v2340
    %v2461 = vadd.f32 %v2169, %v2342
    %v2462 = vadd.f32 %v2171, %v2344
    %v2463 = vadd.f32 %v2173, %v2346
    %v2464 = vadd.f32 %v2177, %v2350
    %v2465 = vadd.f32 %v2179, %v2352
    %v2466 = vadd.f32 %v2181, %v2354
    %v2467 = vadd.f32 %v2183, %v2356
    %v2468 = vadd.f32 %v2187, %v2360
    %v2469 = vadd.f32 %v2189, %v2362
    %v2470 = vadd.f32 %v2191, %v2364
    %v2471 = vadd.f32 %v2193, %v2366
    %v2472 = vadd.f32 %v2197, %v2370
    %v2473 = vadd.f32 %v2199, %v2372
    %v2474 = vadd.f32 %v2201, %v2374
    %v2475 = vadd.f32 %v2203, %v2376
    %v2476 = vadd.f32 %v2207, %v2380
    %v2477 = vadd.f32 %v2209, %v2382
    %v2478 = vadd.f32 %v2211, %v2384
    %v2479 = vadd.f32 %v2213, %v2386
    %v2480 = vadd.f32 %v2217, %v2390
    %v2481 = vadd.f32 %v2219, %v2392
    %v2482 = vadd.f32 %v2221, %v2394
    %v2483 = vadd.f32 %v2223, %v2396
    %v2484 = vadd.f32 %v2227, %v2400
    %v2485 = vadd.f32 %v2229, %v2402
    %v2486 = vadd.f32 %v2231, %v2404
    %v2487 = vadd.f32 %v2233, %v2406
    %v2488 = vadd.f32 %v2237, %v2410
    %v2489 = vadd.f32 %v2239, %v2412
    %v2490 = vadd.f32 %v2241, %v2414
    %v2491 = vadd.f32 %v2243, %v2416
    %v2492 = vadd.f32 %v2247, %v2420
    %v2493 = vadd.f32 %v2249, %v2422
    %v2494 = vadd.f32 %v2251, %v2424
    %v2495 = vadd.f32 %v2253, %v2426
    %v2496 = vadd.f32 %v2257, %v2430
    %v2497 = vadd.f32 %v2259, %v2432
    %v2498 = vadd.f32 %v2261, %v2434
    %v2499 = vadd.f32 %v2263, %v2436
    %v2500 = vadd.f32 %v2267, %v2440
    %v2501 = vadd.f32 %v2269, %v2442
    %v2502 = vadd.f32 %v2271, %v2444
    %v2503 = vadd.f32 %v2273, %v2446
    %2504 = vmatprep.subr.bf16.mxu0 %v1212
    %2505 = vmatpush1.bf16.msra.mxu0 %v1211
    %2506 = vmatprep.subr.bf16.mxu0 %v1214
    %2507 = vmatpush1.bf16.msra.mxu0 %v1213
    %2508 = vmatprep.subr.bf16.mxu0 %v1216
    %2509 = vmatpush1.bf16.msra.mxu0 %v1215
    %2510 = vmatprep.subr.bf16.mxu0 %v1218
    %2511 = vmatpush1.bf16.msra.mxu0 %v1217
    %2512 = vmatprep.subr.bf16.mxu0 %v1220
    %2513 = vmatpush1.bf16.msra.mxu0 %v1219
    %2514 = vmatprep.subr.bf16.mxu0 %v1222
    %2515 = vmatpush1.bf16.msra.mxu0 %v1221
    %2516 = vmatprep.subr.bf16.mxu0 0
    %2517 = vmatpush1.bf16.msra.mxu0 0
    %2518 = vmatprep.subr.bf16.mxu0 0
    %2519 = vmatpush1.bf16.msra.mxu0 0
    %2520 = vmatprep.subr.bf16.mxu0 0
    %2521 = vmatpush1.bf16.msra.mxu0 0
    %2522 = vmatprep.subr.bf16.mxu0 0
    %2523 = vmatpush1.bf16.msra.mxu0 0
    %2524 = vmatprep.subr.bf16.mxu0 0
    %2525 = vmatpush1.bf16.msra.mxu0 0
    %2526 = vmatprep.subr.bf16.mxu0 0
    %2527 = vmatpush1.bf16.msra.mxu0 0
    %2528 = vmatprep.subr.bf16.mxu0 0
    %2529 = vmatpush1.bf16.msra.mxu0 0
    %2530 = vmatprep.subr.bf16.mxu0 0
    %2531 = vmatpush1.bf16.msra.mxu0 0
    %2532 = vmatprep.subr.bf16.mxu0 0
    %2533 = vmatpush1.bf16.msra.mxu0 0
    %2534 = vmatprep.subr.bf16.mxu0 0
    %2535 = vmatpush1.bf16.msra.mxu0 0
    %2536 = vmatprep.mubr.bf16.mxu0 0
    %2537 = vmatmul.mubr.bf16.gmra.mrb[0].mxu0 %v639
    %v2538 = vpop.f32.mrb[0].mxu0
    %v2539 = vadd.f32 0.0, %v2538
    %v2540 = vpop.f32.mrb[0].mxu0
    %v2541 = vadd.f32 0.0, %v2540
    %v2542 = vpop.f32.mrb[0].mxu0
    %v2543 = vadd.f32 0.0, %v2542
    %v2544 = vpop.f32.mrb[0].mxu0
    %v2545 = vadd.f32 0.0, %v2544
    %2546 = vmatprep.mubr.bf16.mxu0 0
    %2547 = vmatmul.mubr.bf16.gmra.mrb[0].mxu0 %v642
    %v2548 = vpop.f32.mrb[0].mxu0
    %v2549 = vadd.f32 0.0, %v2548
    %v2550 = vpop.f32.mrb[0].mxu0
    %v2551 = vadd.f32 0.0, %v2550
    %v2552 = vpop.f32.mrb[0].mxu0
    %v2553 = vadd.f32 0.0, %v2552
    %v2554 = vpop.f32.mrb[0].mxu0
    %v2555 = vadd.f32 0.0, %v2554
    %2556 = vmatprep.mubr.bf16.mxu0 0
    %2557 = vmatmul.mubr.bf16.gmra.mrb[0].mxu0 %v645
    %v2558 = vpop.f32.mrb[0].mxu0
    %v2559 = vadd.f32 0.0, %v2558
    %v2560 = vpop.f32.mrb[0].mxu0
    %v2561 = vadd.f32 0.0, %v2560
    %v2562 = vpop.f32.mrb[0].mxu0
    %v2563 = vadd.f32 0.0, %v2562
    %v2564 = vpop.f32.mrb[0].mxu0
    %v2565 = vadd.f32 0.0, %v2564
    %2566 = vmatprep.mubr.bf16.mxu0 0
    %2567 = vmatmul.mubr.bf16.gmra.mrb[0].mxu0 %v648
    %v2568 = vpop.f32.mrb[0].mxu0
    %v2569 = vadd.f32 0.0, %v2568
    %v2570 = vpop.f32.mrb[0].mxu0
    %v2571 = vadd.f32 0.0, %v2570
    %v2572 = vpop.f32.mrb[0].mxu0
    %v2573 = vadd.f32 0.0, %v2572
    %v2574 = vpop.f32.mrb[0].mxu0
    %v2575 = vadd.f32 0.0, %v2574
    %2576 = vmatprep.mubr.bf16.mxu0 0
    %2577 = vmatmul.mubr.bf16.gmra.mrb[0].mxu0 %v651
    %v2578 = vpop.f32.mrb[0].mxu0
    %v2579 = vadd.f32 0.0, %v2578
    %v2580 = vpop.f32.mrb[0].mxu0
    %v2581 = vadd.f32 0.0, %v2580
    %v2582 = vpop.f32.mrb[0].mxu0
    %v2583 = vadd.f32 0.0, %v2582
    %v2584 = vpop.f32.mrb[0].mxu0
    %v2585 = vadd.f32 0.0, %v2584
    %2586 = vmatprep.mubr.bf16.mxu0 0
    %2587 = vmatmul.mubr.bf16.gmra.mrb[0].mxu0 %v654
    %v2588 = vpop.f32.mrb[0].mxu0
    %v2589 = vadd.f32 0.0, %v2588
    %v2590 = vpop.f32.mrb[0].mxu0
    %v2591 = vadd.f32 0.0, %v2590
    %v2592 = vpop.f32.mrb[0].mxu0
    %v2593 = vadd.f32 0.0, %v2592
    %v2594 = vpop.f32.mrb[0].mxu0
    %v2595 = vadd.f32 0.0, %v2594
    %2596 = vmatprep.mubr.bf16.mxu0 0
    %2597 = vmatmul.mubr.bf16.gmra.mrb[0].mxu0 %v657
    %v2598 = vpop.f32.mrb[0].mxu0
    %v2599 = vadd.f32 0.0, %v2598
    %v2600 = vpop.f32.mrb[0].mxu0
    %v2601 = vadd.f32 0.0, %v2600
    %v2602 = vpop.f32.mrb[0].mxu0
    %v2603 = vadd.f32 0.0, %v2602
    %v2604 = vpop.f32.mrb[0].mxu0
    %v2605 = vadd.f32 0.0, %v2604
    %2606 = vmatprep.mubr.bf16.mxu0 0
    %2607 = vmatmul.mubr.bf16.gmra.mrb[0].mxu0 %v660
    %v2608 = vpop.f32.mrb[0].mxu0
    %v2609 = vadd.f32 0.0, %v2608
    %v2610 = vpop.f32.mrb[0].mxu0
    %v2611 = vadd.f32 0.0, %v2610
    %v2612 = vpop.f32.mrb[0].mxu0
    %v2613 = vadd.f32 0.0, %v2612
    %v2614 = vpop.f32.mrb[0].mxu0
    %v2615 = vadd.f32 0.0, %v2614
    %2616 = vmatprep.mubr.bf16.mxu0 0
    %2617 = vmatmul.mubr.bf16.gmra.mrb[0].mxu0 %v663
    %v2618 = vpop.f32.mrb[0].mxu0
    %v2619 = vadd.f32 0.0, %v2618
    %v2620 = vpop.f32.mrb[0].mxu0
    %v2621 = vadd.f32 0.0, %v2620
    %v2622 = vpop.f32.mrb[0].mxu0
    %v2623 = vadd.f32 0.0, %v2622
    %v2624 = vpop.f32.mrb[0].mxu0
    %v2625 = vadd.f32 0.0, %v2624
    %2626 = vmatprep.mubr.bf16.mxu0 0
    %2627 = vmatmul.mubr.bf16.gmra.mrb[0].mxu0 %v666
    %v2628 = vpop.f32.mrb[0].mxu0
    %v2629 = vadd.f32 0.0, %v2628
    %v2630 = vpop.f32.mrb[0].mxu0
    %v2631 = vadd.f32 0.0, %v2630
    %v2632 = vpop.f32.mrb[0].mxu0
    %v2633 = vadd.f32 0.0, %v2632
    %v2634 = vpop.f32.mrb[0].mxu0
    %v2635 = vadd.f32 0.0, %v2634
    %2636 = vmatprep.mubr.bf16.mxu0 0
    %2637 = vmatmul.mubr.bf16.gmra.mrb[0].mxu0 %v669
    %v2638 = vpop.f32.mrb[0].mxu0
    %v2639 = vadd.f32 0.0, %v2638
    %v2640 = vpop.f32.mrb[0].mxu0
    %v2641 = vadd.f32 0.0, %v2640
    %v2642 = vpop.f32.mrb[0].mxu0
    %v2643 = vadd.f32 0.0, %v2642
    %v2644 = vpop.f32.mrb[0].mxu0
    %v2645 = vadd.f32 0.0, %v2644
    %2646 = vmatprep.mubr.bf16.mxu0 0
    %2647 = vmatmul.mubr.bf16.gmra.mrb[0].mxu0 %v672
    %v2648 = vpop.f32.mrb[0].mxu0
    %v2649 = vadd.f32 0.0, %v2648
    %v2650 = vpop.f32.mrb[0].mxu0
    %v2651 = vadd.f32 0.0, %v2650
    %v2652 = vpop.f32.mrb[0].mxu0
    %v2653 = vadd.f32 0.0, %v2652
    %v2654 = vpop.f32.mrb[0].mxu0
    %v2655 = vadd.f32 0.0, %v2654
    %2656 = vmatprep.mubr.bf16.mxu0 0
    %2657 = vmatmul.mubr.bf16.gmra.mrb[0].mxu0 %v926
    %v2658 = vpop.f32.mrb[0].mxu0
    %v2659 = vadd.f32 0.0, %v2658
    %v2660 = vpop.f32.mrb[0].mxu0
    %v2661 = vadd.f32 0.0, %v2660
    %v2662 = vpop.f32.mrb[0].mxu0
    %v2663 = vadd.f32 0.0, %v2662
    %v2664 = vpop.f32.mrb[0].mxu0
    %v2665 = vadd.f32 0.0, %v2664
    %2666 = vmatprep.mubr.bf16.mxu0 0
    %2667 = vmatmul.mubr.bf16.gmra.mrb[0].mxu0 %v1546
    %v2668 = vpop.f32.mrb[0].mxu0
    %v2669 = vadd.f32 0.0, %v2668
    %v2670 = vpop.f32.mrb[0].mxu0
    %v2671 = vadd.f32 0.0, %v2670
    %v2672 = vpop.f32.mrb[0].mxu0
    %v2673 = vadd.f32 0.0, %v2672
    %v2674 = vpop.f32.mrb[0].mxu0
    %v2675 = vadd.f32 0.0, %v2674
    %2676 = vdwg.mxu0
    %v2677 = vadd.f32 %v2448, %v2539
    %v2678 = vadd.f32 %v2449, %v2541
    %v2679 = vadd.f32 %v2450, %v2543
    %v2680 = vadd.f32 %v2451, %v2545
    %v2681 = vadd.f32 %v2452, %v2549
    %v2682 = vadd.f32 %v2453, %v2551
    %v2683 = vadd.f32 %v2454, %v2553
    %v2684 = vadd.f32 %v2455, %v2555
    %v2685 = vadd.f32 %v2456, %v2559
    %v2686 = vadd.f32 %v2457, %v2561
    %v2687 = vadd.f32 %v2458, %v2563
    %v2688 = vadd.f32 %v2459, %v2565
    %v2689 = vadd.f32 %v2460, %v2569
    %v2690 = vadd.f32 %v2461, %v2571
    %v2691 = vadd.f32 %v2462, %v2573
    %v2692 = vadd.f32 %v2463, %v2575
    %v2693 = vadd.f32 %v2464, %v2579
    %v2694 = vadd.f32 %v2465, %v2581
    %v2695 = vadd.f32 %v2466, %v2583
    %v2696 = vadd.f32 %v2467, %v2585
    %v2697 = vadd.f32 %v2468, %v2589
    %v2698 = vadd.f32 %v2469, %v2591
    %v2699 = vadd.f32 %v2470, %v2593
    %v2700 = vadd.f32 %v2471, %v2595
    %v2701 = vadd.f32 %v2472, %v2599
    %v2702 = vadd.f32 %v2473, %v2601
    %v2703 = vadd.f32 %v2474, %v2603
    %v2704 = vadd.f32 %v2475, %v2605
    %v2705 = vadd.f32 %v2476, %v2609
    %v2706 = vadd.f32 %v2477, %v2611
    %v2707 = vadd.f32 %v2478, %v2613
    %v2708 = vadd.f32 %v2479, %v2615
    %v2709 = vadd.f32 %v2480, %v2619
    %v2710 = vadd.f32 %v2481, %v2621
    %v2711 = vadd.f32 %v2482, %v2623
    %v2712 = vadd.f32 %v2483, %v2625
    %v2713 = vadd.f32 %v2484, %v2629
    %v2714 = vadd.f32 %v2485, %v2631
    %v2715 = vadd.f32 %v2486, %v2633
    %v2716 = vadd.f32 %v2487, %v2635
    %v2717 = vadd.f32 %v2488, %v2639
    %v2718 = vadd.f32 %v2489, %v2641
    %v2719 = vadd.f32 %v2490, %v2643
    %v2720 = vadd.f32 %v2491, %v2645
    %v2721 = vadd.f32 %v2492, %v2649
    %v2722 = vadd.f32 %v2493, %v2651
    %v2723 = vadd.f32 %v2494, %v2653
    %v2724 = vadd.f32 %v2495, %v2655
    %v2725 = vadd.f32 %v2496, %v2659
    %v2726 = vadd.f32 %v2497, %v2661
    %v2727 = vadd.f32 %v2498, %v2663
    %v2728 = vadd.f32 %v2499, %v2665
    %v2729 = vadd.f32 %v2500, %v2669
    %v2730 = vadd.f32 %v2501, %v2671
    %v2731 = vadd.f32 %v2502, %v2673
    %v2732 = vadd.f32 %v2503, %v2675
    %v2735 = vunpack.c.l.b16 %v129
    %v2736 = vunpack.c.l.b16 %v130
    %v2737 = vpack.c.b16 %v2736, %v2735
    %v2739 = vsel %vm286, %v2737, 0
    %2741 = vmatprep.subr.bf16.mxu0 %v1522
    %2742 = vmatpush1.bf16.msra.mxu0 %v1521
    %2743 = vmatprep.subr.bf16.mxu0 %v1524
    %2744 = vmatpush1.bf16.msra.mxu0 %v1523
    %2745 = vmatprep.subr.bf16.mxu0 %v1526
    %2746 = vmatpush1.bf16.msra.mxu0 %v1525
    %2747 = vmatprep.subr.bf16.mxu0 %v1528
    %2748 = vmatpush1.bf16.msra.mxu0 %v1527
    %2749 = vmatprep.subr.bf16.mxu0 %v1530
    %2750 = vmatpush1.bf16.msra.mxu0 %v1529
    %2751 = vmatprep.subr.bf16.mxu0 %v1532
    %2752 = vmatpush1.bf16.msra.mxu0 %v1531
    %2753 = vmatprep.subr.bf16.mxu0 0
    %2754 = vmatpush1.bf16.msra.mxu0 0
    %2755 = vmatprep.subr.bf16.mxu0 0
    %2756 = vmatpush1.bf16.msra.mxu0 0
    %2757 = vmatprep.subr.bf16.mxu0 0
    %2758 = vmatpush1.bf16.msra.mxu0 0
    %2759 = vmatprep.subr.bf16.mxu0 0
    %2760 = vmatpush1.bf16.msra.mxu0 0
    %2761 = vmatprep.subr.bf16.mxu0 0
    %2762 = vmatpush1.bf16.msra.mxu0 0
    %2763 = vmatprep.subr.bf16.mxu0 0
    %2764 = vmatpush1.bf16.msra.mxu0 0
    %2765 = vmatprep.subr.bf16.mxu0 0
    %2766 = vmatpush1.bf16.msra.mxu0 0
    %2767 = vmatprep.subr.bf16.mxu0 0
    %2768 = vmatpush1.bf16.msra.mxu0 0
    %2769 = vmatprep.subr.bf16.mxu0 0
    %2770 = vmatpush1.bf16.msra.mxu0 0
    %2771 = vmatprep.subr.bf16.mxu0 0
    %2772 = vmatpush1.bf16.msra.mxu0 0
    %2773 = vmatprep.mubr.bf16.mxu0 0
    %2774 = vmatmul.mubr.bf16.gmra.mrb[0].mxu0 %v294
    %v2775 = vpop.f32.mrb[0].mxu0
    %v2776 = vadd.f32 0.0, %v2775
    %v2777 = vpop.f32.mrb[0].mxu0
    %v2778 = vadd.f32 0.0, %v2777
    %v2779 = vpop.f32.mrb[0].mxu0
    %v2780 = vadd.f32 0.0, %v2779
    %v2781 = vpop.f32.mrb[0].mxu0
    %v2782 = vadd.f32 0.0, %v2781
    %2783 = vmatprep.mubr.bf16.mxu0 0
    %2784 = vmatmul.mubr.bf16.gmra.mrb[0].mxu0 %v297
    %v2785 = vpop.f32.mrb[0].mxu0
    %v2786 = vadd.f32 0.0, %v2785
    %v2787 = vpop.f32.mrb[0].mxu0
    %v2788 = vadd.f32 0.0, %v2787
    %v2789 = vpop.f32.mrb[0].mxu0
    %v2790 = vadd.f32 0.0, %v2789
    %v2791 = vpop.f32.mrb[0].mxu0
    %v2792 = vadd.f32 0.0, %v2791
    %2793 = vmatprep.mubr.bf16.mxu0 0
    %2794 = vmatmul.mubr.bf16.gmra.mrb[0].mxu0 %v300
    %v2795 = vpop.f32.mrb[0].mxu0
    %v2796 = vadd.f32 0.0, %v2795
    %v2797 = vpop.f32.mrb[0].mxu0
    %v2798 = vadd.f32 0.0, %v2797
    %v2799 = vpop.f32.mrb[0].mxu0
    %v2800 = vadd.f32 0.0, %v2799
    %v2801 = vpop.f32.mrb[0].mxu0
    %v2802 = vadd.f32 0.0, %v2801
    %2803 = vmatprep.mubr.bf16.mxu0 0
    %2804 = vmatmul.mubr.bf16.gmra.mrb[0].mxu0 %v303
    %v2805 = vpop.f32.mrb[0].mxu0
    %v2806 = vadd.f32 0.0, %v2805
    %v2807 = vpop.f32.mrb[0].mxu0
    %v2808 = vadd.f32 0.0, %v2807
    %v2809 = vpop.f32.mrb[0].mxu0
    %v2810 = vadd.f32 0.0, %v2809
    %v2811 = vpop.f32.mrb[0].mxu0
    %v2812 = vadd.f32 0.0, %v2811
    %2813 = vmatprep.mubr.bf16.mxu0 0
    %2814 = vmatmul.mubr.bf16.gmra.mrb[0].mxu0 %v306
    %v2815 = vpop.f32.mrb[0].mxu0
    %v2816 = vadd.f32 0.0, %v2815
    %v2817 = vpop.f32.mrb[0].mxu0
    %v2818 = vadd.f32 0.0, %v2817
    %v2819 = vpop.f32.mrb[0].mxu0
    %v2820 = vadd.f32 0.0, %v2819
    %v2821 = vpop.f32.mrb[0].mxu0
    %v2822 = vadd.f32 0.0, %v2821
    %2823 = vmatprep.mubr.bf16.mxu0 0
    %2824 = vmatmul.mubr.bf16.gmra.mrb[0].mxu0 %v309
    %v2825 = vpop.f32.mrb[0].mxu0
    %v2826 = vadd.f32 0.0, %v2825
    %v2827 = vpop.f32.mrb[0].mxu0
    %v2828 = vadd.f32 0.0, %v2827
    %v2829 = vpop.f32.mrb[0].mxu0
    %v2830 = vadd.f32 0.0, %v2829
    %v2831 = vpop.f32.mrb[0].mxu0
    %v2832 = vadd.f32 0.0, %v2831
    %2833 = vmatprep.mubr.bf16.mxu0 0
    %2834 = vmatmul.mubr.bf16.gmra.mrb[0].mxu0 %v312
    %v2835 = vpop.f32.mrb[0].mxu0
    %v2836 = vadd.f32 0.0, %v2835
    %v2837 = vpop.f32.mrb[0].mxu0
    %v2838 = vadd.f32 0.0, %v2837
    %v2839 = vpop.f32.mrb[0].mxu0
    %v2840 = vadd.f32 0.0, %v2839
    %v2841 = vpop.f32.mrb[0].mxu0
    %v2842 = vadd.f32 0.0, %v2841
    %2843 = vmatprep.mubr.bf16.mxu0 0
    %2844 = vmatmul.mubr.bf16.gmra.mrb[0].mxu0 %v315
    %v2845 = vpop.f32.mrb[0].mxu0
    %v2846 = vadd.f32 0.0, %v2845
    %v2847 = vpop.f32.mrb[0].mxu0
    %v2848 = vadd.f32 0.0, %v2847
    %v2849 = vpop.f32.mrb[0].mxu0
    %v2850 = vadd.f32 0.0, %v2849
    %v2851 = vpop.f32.mrb[0].mxu0
    %v2852 = vadd.f32 0.0, %v2851
    %2853 = vmatprep.mubr.bf16.mxu0 0
    %2854 = vmatmul.mubr.bf16.gmra.mrb[0].mxu0 %v318
    %v2855 = vpop.f32.mrb[0].mxu0
    %v2856 = vadd.f32 0.0, %v2855
    %v2857 = vpop.f32.mrb[0].mxu0
    %v2858 = vadd.f32 0.0, %v2857
    %v2859 = vpop.f32.mrb[0].mxu0
    %v2860 = vadd.f32 0.0, %v2859
    %v2861 = vpop.f32.mrb[0].mxu0
    %v2862 = vadd.f32 0.0, %v2861
    %2863 = vmatprep.mubr.bf16.mxu0 0
    %2864 = vmatmul.mubr.bf16.gmra.mrb[0].mxu0 %v321
    %v2865 = vpop.f32.mrb[0].mxu0
    %v2866 = vadd.f32 0.0, %v2865
    %v2867 = vpop.f32.mrb[0].mxu0
    %v2868 = vadd.f32 0.0, %v2867
    %v2869 = vpop.f32.mrb[0].mxu0
    %v2870 = vadd.f32 0.0, %v2869
    %v2871 = vpop.f32.mrb[0].mxu0
    %v2872 = vadd.f32 0.0, %v2871
    %2873 = vmatprep.mubr.bf16.mxu0 0
    %2874 = vmatmul.mubr.bf16.gmra.mrb[0].mxu0 %v324
    %v2875 = vpop.f32.mrb[0].mxu0
    %v2876 = vadd.f32 0.0, %v2875
    %v2877 = vpop.f32.mrb[0].mxu0
    %v2878 = vadd.f32 0.0, %v2877
    %v2879 = vpop.f32.mrb[0].mxu0
    %v2880 = vadd.f32 0.0, %v2879
    %v2881 = vpop.f32.mrb[0].mxu0
    %v2882 = vadd.f32 0.0, %v2881
    %2883 = vmatprep.mubr.bf16.mxu0 0
    %2884 = vmatmul.mubr.bf16.gmra.mrb[0].mxu0 %v327
    %v2885 = vpop.f32.mrb[0].mxu0
    %v2886 = vadd.f32 0.0, %v2885
    %v2887 = vpop.f32.mrb[0].mxu0
    %v2888 = vadd.f32 0.0, %v2887
    %v2889 = vpop.f32.mrb[0].mxu0
    %v2890 = vadd.f32 0.0, %v2889
    %v2891 = vpop.f32.mrb[0].mxu0
    %v2892 = vadd.f32 0.0, %v2891
    %2893 = vmatprep.mubr.bf16.mxu0 0
    %2894 = vmatmul.mubr.bf16.gmra.mrb[0].mxu0 %v1236
    %v2895 = vpop.f32.mrb[0].mxu0
    %v2896 = vadd.f32 0.0, %v2895
    %v2897 = vpop.f32.mrb[0].mxu0
    %v2898 = vadd.f32 0.0, %v2897
    %v2899 = vpop.f32.mrb[0].mxu0
    %v2900 = vadd.f32 0.0, %v2899
    %v2901 = vpop.f32.mrb[0].mxu0
    %v2902 = vadd.f32 0.0, %v2901
    %2903 = vmatprep.mubr.bf16.mxu0 0
    %2904 = vmatmul.mubr.bf16.gmra.mrb[0].mxu0 %v2739
    %v2905 = vpop.f32.mrb[0].mxu0
    %v2906 = vadd.f32 0.0, %v2905
    %v2907 = vpop.f32.mrb[0].mxu0
    %v2908 = vadd.f32 0.0, %v2907
    %v2909 = vpop.f32.mrb[0].mxu0
    %v2910 = vadd.f32 0.0, %v2909
    %v2911 = vpop.f32.mrb[0].mxu0
    %v2912 = vadd.f32 0.0, %v2911
    %2913 = vdwg.mxu0
    %v2914 = vadd.f32 %v2677, %v2776
    %v2915 = vadd.f32 %v2678, %v2778
    %v2916 = vadd.f32 %v2679, %v2780
    %v2917 = vadd.f32 %v2680, %v2782
    %v2918 = vadd.f32 %v2681, %v2786
    %v2919 = vadd.f32 %v2682, %v2788
    %v2920 = vadd.f32 %v2683, %v2790
    %v2921 = vadd.f32 %v2684, %v2792
    %v2922 = vadd.f32 %v2685, %v2796
    %v2923 = vadd.f32 %v2686, %v2798
    %v2924 = vadd.f32 %v2687, %v2800
    %v2925 = vadd.f32 %v2688, %v2802
    %v2926 = vadd.f32 %v2689, %v2806
    %v2927 = vadd.f32 %v2690, %v2808
    %v2928 = vadd.f32 %v2691, %v2810
    %v2929 = vadd.f32 %v2692, %v2812
    %v2930 = vadd.f32 %v2693, %v2816
    %v2931 = vadd.f32 %v2694, %v2818
    %v2932 = vadd.f32 %v2695, %v2820
    %v2933 = vadd.f32 %v2696, %v2822
    %v2934 = vadd.f32 %v2697, %v2826
    %v2935 = vadd.f32 %v2698, %v2828
    %v2936 = vadd.f32 %v2699, %v2830
    %v2937 = vadd.f32 %v2700, %v2832
    %v2938 = vadd.f32 %v2701, %v2836
    %v2939 = vadd.f32 %v2702, %v2838
    %v2940 = vadd.f32 %v2703, %v2840
    %v2941 = vadd.f32 %v2704, %v2842
    %v2942 = vadd.f32 %v2705, %v2846
    %v2943 = vadd.f32 %v2706, %v2848
    %v2944 = vadd.f32 %v2707, %v2850
    %v2945 = vadd.f32 %v2708, %v2852
    %v2946 = vadd.f32 %v2709, %v2856
    %v2947 = vadd.f32 %v2710, %v2858
    %v2948 = vadd.f32 %v2711, %v2860
    %v2949 = vadd.f32 %v2712, %v2862
    %v2950 = vadd.f32 %v2713, %v2866
    %v2951 = vadd.f32 %v2714, %v2868
    %v2952 = vadd.f32 %v2715, %v2870
    %v2953 = vadd.f32 %v2716, %v2872
    %v2954 = vadd.f32 %v2717, %v2876
    %v2955 = vadd.f32 %v2718, %v2878
    %v2956 = vadd.f32 %v2719, %v2880
    %v2957 = vadd.f32 %v2720, %v2882
    %v2958 = vadd.f32 %v2721, %v2886
    %v2959 = vadd.f32 %v2722, %v2888
    %v2960 = vadd.f32 %v2723, %v2890
    %v2961 = vadd.f32 %v2724, %v2892
    %v2962 = vadd.f32 %v2725, %v2896
    %v2963 = vadd.f32 %v2726, %v2898
    %v2964 = vadd.f32 %v2727, %v2900
    %v2965 = vadd.f32 %v2728, %v2902
    %v2966 = vadd.f32 %v2729, %v2906
    %v2967 = vadd.f32 %v2730, %v2908
    %v2968 = vadd.f32 %v2731, %v2910
    %v2969 = vadd.f32 %v2732, %v2912
    %v2970 = vadd.f32 %v2914, %v1782
    %v2971 = vadd.f32 %v2915, %v1786
    %v2972 = vadd.f32 %v2916, %v1782
    %v2973 = vadd.f32 %v2917, %v1786
    %v2974 = vadd.f32 %v2918, %v1782
    %v2975 = vadd.f32 %v2919, %v1786
    %v2976 = vadd.f32 %v2920, %v1782
    %v2977 = vadd.f32 %v2921, %v1786
    %v2978 = vadd.f32 %v2922, %v1782
    %v2979 = vadd.f32 %v2923, %v1786
    %v2980 = vadd.f32 %v2924, %v1782
    %v2981 = vadd.f32 %v2925, %v1786
    %v2982 = vadd.f32 %v2926, %v1782
    %v2983 = vadd.f32 %v2927, %v1786
    %v2984 = vadd.f32 %v2928, %v1782
    %v2985 = vadd.f32 %v2929, %v1786
    %v2986 = vadd.f32 %v2930, %v1782
    %v2987 = vadd.f32 %v2931, %v1786
    %v2988 = vadd.f32 %v2932, %v1782
    %v2989 = vadd.f32 %v2933, %v1786
    %v2990 = vadd.f32 %v2934, %v1782
    %v2991 = vadd.f32 %v2935, %v1786
    %v2992 = vadd.f32 %v2936, %v1782
    %v2993 = vadd.f32 %v2937, %v1786
    %v2994 = vadd.f32 %v2938, %v1782
    %v2995 = vadd.f32 %v2939, %v1786
    %v2996 = vadd.f32 %v2940, %v1782
    %v2997 = vadd.f32 %v2941, %v1786
    %v2998 = vadd.f32 %v2942, %v1782
    %v2999 = vadd.f32 %v2943, %v1786
    %v3000 = vadd.f32 %v2944, %v1782
    %v3001 = vadd.f32 %v2945, %v1786
    %v3002 = vadd.f32 %v2946, %v1782
    %v3003 = vadd.f32 %v2947, %v1786
    %v3004 = vadd.f32 %v2948, %v1782
    %v3005 = vadd.f32 %v2949, %v1786
    %v3006 = vadd.f32 %v2950, %v1782
    %v3007 = vadd.f32 %v2951, %v1786
    %v3008 = vadd.f32 %v2952, %v1782
    %v3009 = vadd.f32 %v2953, %v1786
    %v3010 = vadd.f32 %v2954, %v1782
    %v3011 = vadd.f32 %v2955, %v1786
    %v3012 = vadd.f32 %v2956, %v1782
    %v3013 = vadd.f32 %v2957, %v1786
    %v3014 = vadd.f32 %v2958, %v1782
    %v3015 = vadd.f32 %v2959, %v1786
    %v3016 = vadd.f32 %v2960, %v1782
    %v3017 = vadd.f32 %v2961, %v1786
    %v3018 = vadd.f32 %v2962, %v1782
    %v3019 = vadd.f32 %v2963, %v1786
    %v3020 = vadd.f32 %v2964, %v1782
    %v3021 = vadd.f32 %v2965, %v1786
    %v3022 = vadd.f32 %v2966, %v1782
    %v3023 = vadd.f32 %v2967, %v1786
    %v3024 = vadd.f32 %v2968, %v1782
    %v3025 = vadd.f32 %v2969, %v1786
    %v3026 = vmax.f32 %v2970, 0.0
    %v3027 = vmax.f32 %v2971, 0.0
    %v3028 = vmax.f32 %v2972, 0.0
    %v3029 = vmax.f32 %v2973, 0.0
    %v3030 = vmax.f32 %v2974, 0.0
    %v3031 = vmax.f32 %v2975, 0.0
    %v3032 = vmax.f32 %v2976, 0.0
    %v3033 = vmax.f32 %v2977, 0.0
    %v3034 = vmax.f32 %v2978, 0.0
    %v3035 = vmax.f32 %v2979, 0.0
    %v3036 = vmax.f32 %v2980, 0.0
    %v3037 = vmax.f32 %v2981, 0.0
    %v3038 = vmax.f32 %v2982, 0.0
    %v3039 = vmax.f32 %v2983, 0.0
    %v3040 = vmax.f32 %v2984, 0.0
    %v3041 = vmax.f32 %v2985, 0.0
    %v3042 = vmax.f32 %v2986, 0.0
    %v3043 = vmax.f32 %v2987, 0.0
    %v3044 = vmax.f32 %v2988, 0.0
    %v3045 = vmax.f32 %v2989, 0.0
    %v3046 = vmax.f32 %v2990, 0.0
    %v3047 = vmax.f32 %v2991, 0.0
    %v3048 = vmax.f32 %v2992, 0.0
    %v3049 = vmax.f32 %v2993, 0.0
    %v3050 = vmax.f32 %v2994, 0.0
    %v3051 = vmax.f32 %v2995, 0.0
    %v3052 = vmax.f32 %v2996, 0.0
    %v3053 = vmax.f32 %v2997, 0.0
    %v3054 = vmax.f32 %v2998, 0.0
    %v3055 = vmax.f32 %v2999, 0.0
    %v3056 = vmax.f32 %v3000, 0.0
    %v3057 = vmax.f32 %v3001, 0.0
    %v3058 = vmax.f32 %v3002, 0.0
    %v3059 = vmax.f32 %v3003, 0.0
    %v3060 = vmax.f32 %v3004, 0.0
    %v3061 = vmax.f32 %v3005, 0.0
    %v3062 = vmax.f32 %v3006, 0.0
    %v3063 = vmax.f32 %v3007, 0.0
    %v3064 = vmax.f32 %v3008, 0.0
    %v3065 = vmax.f32 %v3009, 0.0
    %v3066 = vmax.f32 %v3010, 0.0
    %v3067 = vmax.f32 %v3011, 0.0
    %v3068 = vmax.f32 %v3012, 0.0
    %v3069 = vmax.f32 %v3013, 0.0
    %v3070 = vmax.f32 %v3014, 0.0
    %v3071 = vmax.f32 %v3015, 0.0
    %v3072 = vmax.f32 %v3016, 0.0
    %v3073 = vmax.f32 %v3017, 0.0
    %v3074 = vmax.f32 %v3018, 0.0
    %v3075 = vmax.f32 %v3019, 0.0
    %v3076 = vmax.f32 %v3020, 0.0
    %v3077 = vmax.f32 %v3021, 0.0
    %v3078 = vmax.f32 %v3022, 0.0
    %v3079 = vmax.f32 %v3023, 0.0
    %v3080 = vmax.f32 %v3024, 0.0
    %v3081 = vmax.f32 %v3025, 0.0
    %v3082 = vmax.f32 %v3026, %v3027
    %v3083 = vmax.f32 %v3028, %v3029
    %v3084 = vmax.f32 %v3030, %v3031
    %v3085 = vmax.f32 %v3032, %v3033
    %v3086 = vmax.f32 %v3034, %v3035
    %v3087 = vmax.f32 %v3036, %v3037
    %v3088 = vmax.f32 %v3038, %v3039
    %v3089 = vmax.f32 %v3040, %v3041
    %v3090 = vmax.f32 %v3042, %v3043
    %v3091 = vmax.f32 %v3044, %v3045
    %v3092 = vmax.f32 %v3046, %v3047
    %v3093 = vmax.f32 %v3048, %v3049
    %v3094 = vmax.f32 %v3050, %v3051
    %v3095 = vmax.f32 %v3052, %v3053
    %v3096 = vmax.f32 %v3054, %v3055
    %v3097 = vmax.f32 %v3056, %v3057
    %v3098 = vmax.f32 %v3058, %v3059
    %v3099 = vmax.f32 %v3060, %v3061
    %v3100 = vmax.f32 %v3062, %v3063
    %v3101 = vmax.f32 %v3064, %v3065
    %v3102 = vmax.f32 %v3066, %v3067
    %v3103 = vmax.f32 %v3068, %v3069
    %v3104 = vmax.f32 %v3070, %v3071
    %v3105 = vmax.f32 %v3072, %v3073
    %v3106 = vmax.f32 %v3074, %v3075
    %v3107 = vmax.f32 %v3076, %v3077
    %v3108 = vmax.f32 %v3078, %v3079
    %v3109 = vmax.f32 %v3080, %v3081
    %v3110 = vmax.f32 %v1901, %v3082
    %v3111 = vmax.f32 %v1902, %v3083
    %v3112 = vmax.f32 %v1903, %v3084
    %v3113 = vmax.f32 %v1904, %v3085
    %v3114 = vmax.f32 %v1905, %v3086
    %v3115 = vmax.f32 %v1906, %v3087
    %v3116 = vmax.f32 %v1907, %v3088
    %v3117 = vmax.f32 %v1908, %v3089
    %v3118 = vmax.f32 %v1909, %v3090
    %v3119 = vmax.f32 %v1910, %v3091
    %v3120 = vmax.f32 %v1911, %v3092
    %v3121 = vmax.f32 %v1912, %v3093
    %v3122 = vmax.f32 %v1913, %v3094
    %v3123 = vmax.f32 %v1914, %v3095
    %v3124 = vmax.f32 %v1915, %v3096
    %v3125 = vmax.f32 %v1916, %v3097
    %v3126 = vmax.f32 %v1917, %v3098
    %v3127 = vmax.f32 %v1918, %v3099
    %v3128 = vmax.f32 %v1919, %v3100
    %v3129 = vmax.f32 %v1920, %v3101
    %v3130 = vmax.f32 %v1921, %v3102
    %v3131 = vmax.f32 %v1922, %v3103
    %v3132 = vmax.f32 %v1923, %v3104
    %v3133 = vmax.f32 %v1924, %v3105
    %v3134 = vmax.f32 %v1925, %v3106
    %v3135 = vmax.f32 %v1926, %v3107
    %v3136 = vmax.f32 %v1927, %v3108
    %v3137 = vmax.f32 %v1928, %v3109
    %v3138 = vpack.c.bf16 %v3111, %v3110
    %v3139 = vpack.c.bf16 %v3113, %v3112
    %v3140 = vpack.c.bf16 %v3115, %v3114
    %v3141 = vpack.c.bf16 %v3117, %v3116
    %v3142 = vpack.c.bf16 %v3119, %v3118
    %v3143 = vpack.c.bf16 %v3121, %v3120
    %v3144 = vpack.c.bf16 %v3123, %v3122
    %v3145 = vpack.c.bf16 %v3125, %v3124
    %v3146 = vpack.c.bf16 %v3127, %v3126
    %v3147 = vpack.c.bf16 %v3129, %v3128
    %v3148 = vpack.c.bf16 %v3131, %v3130
    %v3149 = vpack.c.bf16 %v3133, %v3132
    %v3150 = vpack.c.bf16 %v3135, %v3134
    %v3151 = vpack.c.bf16 %v3137, %v3136
    %v3152 = vld [vmem:[%s3] sm:$0xff]
    %v3153 = vld [vmem:[%s3 + $0x8] sm:$0xff]
    %v3154 = vld [vmem:[%s3 + $0x10] sm:$0xff]
    %v3155 = vld [vmem:[%s3 + $0x18] sm:$0xff]
    %v3156 = vld [vmem:[%s3 + $0x20] sm:$0xff]
    %v3157 = vld [vmem:[%s3 + $0x28] sm:$0xff]
    %v3158 = vld [vmem:[%s3 + $0x30] sm:$0xff]
    %v3159 = vld [vmem:[%s3 + $0x38] sm:$0xff]
    %v3160 = vld [vmem:[%s3 + $0x40] sm:$0xff]
    %v3161 = vld [vmem:[%s3 + $0x48] sm:$0xff]
    %v3162 = vld [vmem:[%s3 + $0x50] sm:$0xff]
    %v3163 = vld [vmem:[%s3 + $0x58] sm:$0xff]
    %v3164 = vld [vmem:[%s3 + $0x60] sm:$0xff]
    %v3165 = vld [vmem:[%s3 + $0x68] sm:$0xff]
    %v3166 = vld [vmem:[%s3 + $0x70] sm:$0xff]
    %v3167 = vld [vmem:[%s3 + $0x78] sm:$0xff]
    %s3168 = scalar_lea.vmem %s3, 128
    %v3169 = vld [vmem:[%s3168] sm:$0xff]
    %v3170 = vld [vmem:[%s3168 + $0x8] sm:$0xff]
    %v3171 = vld [vmem:[%s3168 + $0x10] sm:$0xff]
    %v3172 = vld [vmem:[%s3168 + $0x18] sm:$0xff]
    %v3173 = vld [vmem:[%s3168 + $0x20] sm:$0xff]
    %v3174 = vld [vmem:[%s3168 + $0x28] sm:$0xff]
    %v3175 = vld [vmem:[%s3168 + $0x30] sm:$0xff]
    %v3176 = vld [vmem:[%s3168 + $0x38] sm:$0xff]
    %v3177 = vld [vmem:[%s3168 + $0x40] sm:$0xff]
    %v3178 = vld [vmem:[%s3168 + $0x48] sm:$0xff]
    %v3179 = vld [vmem:[%s3168 + $0x50] sm:$0xff]
    %v3180 = vld [vmem:[%s3168 + $0x58] sm:$0xff]
    %v3181 = vld [vmem:[%s3168 + $0x60] sm:$0xff]
    %v3182 = vld [vmem:[%s3168 + $0x68] sm:$0xff]
    %v3183 = vld [vmem:[%s3168 + $0x70] sm:$0xff]
    %v3184 = vld [vmem:[%s3168 + $0x78] sm:$0xff]
    %v3201 = vunpack.c.l.b16 %v3169
    %v3202 = vunpack.c.h.b16 %v3169
    %v3203 = vunpack.c.l.b16 %v3170
    %v3204 = vunpack.c.h.b16 %v3170
    %v3205 = vunpack.c.l.b16 %v3171
    %v3206 = vunpack.c.h.b16 %v3171
    %v3207 = vunpack.c.l.b16 %v3172
    %v3208 = vunpack.c.h.b16 %v3172
    %v3209 = vunpack.c.l.b16 %v3173
    %v3210 = vunpack.c.h.b16 %v3173
    %v3211 = vunpack.c.l.b16 %v3174
    %v3212 = vunpack.c.h.b16 %v3174
    %v3213 = vunpack.c.l.b16 %v3175
    %v3214 = vunpack.c.h.b16 %v3175
    %v3215 = vunpack.c.l.b16 %v3176
    %v3216 = vunpack.c.h.b16 %v3176
    %v3217 = vunpack.c.l.b16 %v3177
    %v3218 = vunpack.c.h.b16 %v3177
    %v3219 = vunpack.c.l.b16 %v3178
    %v3220 = vunpack.c.h.b16 %v3178
    %v3221 = vunpack.c.l.b16 %v3179
    %v3222 = vunpack.c.h.b16 %v3179
    %v3223 = vunpack.c.l.b16 %v3180
    %v3224 = vunpack.c.h.b16 %v3180
    %v3225 = vunpack.c.l.b16 %v3181
    %v3226 = vunpack.c.h.b16 %v3181
    %v3227 = vunpack.c.l.b16 %v3182
    %v3228 = vunpack.c.h.b16 %v3182
    %v3229 = vunpack.c.l.b16 %v3183
    %v3230 = vunpack.c.h.b16 %v3183
    %v3231 = vunpack.c.l.b16 %v3184
    %v3232 = vunpack.c.h.b16 %v3184
    %v3233 = vpack.c.b16 %v3203, %v3201
    %v3234 = vpack.c.b16 %v3204, %v3202
    %v3235 = vpack.c.b16 %v3207, %v3205
    %v3236 = vpack.c.b16 %v3208, %v3206
    %v3237 = vpack.c.b16 %v3211, %v3209
    %v3238 = vpack.c.b16 %v3212, %v3210
    %v3239 = vpack.c.b16 %v3215, %v3213
    %v3240 = vpack.c.b16 %v3216, %v3214
    %v3241 = vpack.c.b16 %v3219, %v3217
    %v3242 = vpack.c.b16 %v3220, %v3218
    %v3243 = vpack.c.b16 %v3223, %v3221
    %v3244 = vpack.c.b16 %v3224, %v3222
    %v3245 = vpack.c.b16 %v3227, %v3225
    %v3246 = vpack.c.b16 %v3228, %v3226
    %v3247 = vpack.c.b16 %v3231, %v3229
    %v3248 = vpack.c.b16 %v3232, %v3230
    %3265 = vmatprep.subr.bf16.mxu0 %v3234
    %3266 = vmatpush1.bf16.msra.mxu0 %v3233
    %3267 = vmatprep.subr.bf16.mxu0 %v3236
    %3268 = vmatpush1.bf16.msra.mxu0 %v3235
    %3269 = vmatprep.subr.bf16.mxu0 %v3238
    %3270 = vmatpush1.bf16.msra.mxu0 %v3237
    %3271 = vmatprep.subr.bf16.mxu0 %v3240
    %3272 = vmatpush1.bf16.msra.mxu0 %v3239
    %3273 = vmatprep.subr.bf16.mxu0 %v3242
    %3274 = vmatpush1.bf16.msra.mxu0 %v3241
    %3275 = vmatprep.subr.bf16.mxu0 %v3244
    %3276 = vmatpush1.bf16.msra.mxu0 %v3243
    %3277 = vmatprep.subr.bf16.mxu0 %v3246
    %3278 = vmatpush1.bf16.msra.mxu0 %v3245
    %3279 = vmatprep.subr.bf16.mxu0 %v3248
    %3280 = vmatpush1.bf16.msra.mxu0 %v3247
    %3281 = vmatprep.subr.bf16.mxu0 0
    %3282 = vmatpush1.bf16.msra.mxu0 0
    %3283 = vmatprep.subr.bf16.mxu0 0
    %3284 = vmatpush1.bf16.msra.mxu0 0
    %3285 = vmatprep.subr.bf16.mxu0 0
    %3286 = vmatpush1.bf16.msra.mxu0 0
    %3287 = vmatprep.subr.bf16.mxu0 0
    %3288 = vmatpush1.bf16.msra.mxu0 0
    %3289 = vmatprep.subr.bf16.mxu0 0
    %3290 = vmatpush1.bf16.msra.mxu0 0
    %3291 = vmatprep.subr.bf16.mxu0 0
    %3292 = vmatpush1.bf16.msra.mxu0 0
    %3293 = vmatprep.subr.bf16.mxu0 0
    %3294 = vmatpush1.bf16.msra.mxu0 0
    %3295 = vmatprep.subr.bf16.mxu0 0
    %3296 = vmatpush1.bf16.msra.mxu0 0
    %3297 = vmatprep.mubr.bf16.mxu0 0
    %3298 = vmatmul.mubr.bf16.gmra.mrb[0].mxu0 %v3139
    %v3299 = vpop.f32.mrb[0].mxu0
    %v3300 = vadd.f32 0.0, %v3299
    %v3301 = vpop.f32.mrb[0].mxu0
    %v3302 = vadd.f32 0.0, %v3301
    %v3303 = vpop.f32.mrb[0].mxu0
    %v3304 = vadd.f32 0.0, %v3303
    %v3305 = vpop.f32.mrb[0].mxu0
    %v3306 = vadd.f32 0.0, %v3305
    %3307 = vmatprep.mubr.bf16.mxu0 0
    %3308 = vmatmul.mubr.bf16.gmra.mrb[0].mxu0 %v3141
    %v3309 = vpop.f32.mrb[0].mxu0
    %v3310 = vadd.f32 0.0, %v3309
    %v3311 = vpop.f32.mrb[0].mxu0
    %v3312 = vadd.f32 0.0, %v3311
    %v3313 = vpop.f32.mrb[0].mxu0
    %v3314 = vadd.f32 0.0, %v3313
    %v3315 = vpop.f32.mrb[0].mxu0
    %v3316 = vadd.f32 0.0, %v3315
    %3317 = vmatprep.mubr.bf16.mxu0 0
    %3318 = vmatmul.mubr.bf16.gmra.mrb[0].mxu0 %v3143
    %v3319 = vpop.f32.mrb[0].mxu0
    %v3320 = vadd.f32 0.0, %v3319
    %v3321 = vpop.f32.mrb[0].mxu0
    %v3322 = vadd.f32 0.0, %v3321
    %v3323 = vpop.f32.mrb[0].mxu0
    %v3324 = vadd.f32 0.0, %v3323
    %v3325 = vpop.f32.mrb[0].mxu0
    %v3326 = vadd.f32 0.0, %v3325
    %3327 = vmatprep.mubr.bf16.mxu0 0
    %3328 = vmatmul.mubr.bf16.gmra.mrb[0].mxu0 %v3145
    %v3329 = vpop.f32.mrb[0].mxu0
    %v3330 = vadd.f32 0.0, %v3329
    %v3331 = vpop.f32.mrb[0].mxu0
    %v3332 = vadd.f32 0.0, %v3331
    %v3333 = vpop.f32.mrb[0].mxu0
    %v3334 = vadd.f32 0.0, %v3333
    %v3335 = vpop.f32.mrb[0].mxu0
    %v3336 = vadd.f32 0.0, %v3335
    %3337 = vmatprep.mubr.bf16.mxu0 0
    %3338 = vmatmul.mubr.bf16.gmra.mrb[0].mxu0 %v3147
    %v3339 = vpop.f32.mrb[0].mxu0
    %v3340 = vadd.f32 0.0, %v3339
    %v3341 = vpop.f32.mrb[0].mxu0
    %v3342 = vadd.f32 0.0, %v3341
    %v3343 = vpop.f32.mrb[0].mxu0
    %v3344 = vadd.f32 0.0, %v3343
    %v3345 = vpop.f32.mrb[0].mxu0
    %v3346 = vadd.f32 0.0, %v3345
    %3347 = vdwg.mxu0
    %v3364 = vunpack.c.l.b16 %v3152
    %v3365 = vunpack.c.h.b16 %v3152
    %v3366 = vunpack.c.l.b16 %v3153
    %v3367 = vunpack.c.h.b16 %v3153
    %v3368 = vunpack.c.l.b16 %v3154
    %v3369 = vunpack.c.h.b16 %v3154
    %v3370 = vunpack.c.l.b16 %v3155
    %v3371 = vunpack.c.h.b16 %v3155
    %v3372 = vunpack.c.l.b16 %v3156
    %v3373 = vunpack.c.h.b16 %v3156
    %v3374 = vunpack.c.l.b16 %v3157
    %v3375 = vunpack.c.h.b16 %v3157
    %v3376 = vunpack.c.l.b16 %v3158
    %v3377 = vunpack.c.h.b16 %v3158
    %v3378 = vunpack.c.l.b16 %v3159
    %v3379 = vunpack.c.h.b16 %v3159
    %v3380 = vunpack.c.l.b16 %v3160
    %v3381 = vunpack.c.h.b16 %v3160
    %v3382 = vunpack.c.l.b16 %v3161
    %v3383 = vunpack.c.h.b16 %v3161
    %v3384 = vunpack.c.l.b16 %v3162
    %v3385 = vunpack.c.h.b16 %v3162
    %v3386 = vunpack.c.l.b16 %v3163
    %v3387 = vunpack.c.h.b16 %v3163
    %v3388 = vunpack.c.l.b16 %v3164
    %v3389 = vunpack.c.h.b16 %v3164
    %v3390 = vunpack.c.l.b16 %v3165
    %v3391 = vunpack.c.h.b16 %v3165
    %v3392 = vunpack.c.l.b16 %v3166
    %v3393 = vunpack.c.h.b16 %v3166
    %v3394 = vunpack.c.l.b16 %v3167
    %v3395 = vunpack.c.h.b16 %v3167
    %v3396 = vpack.c.b16 %v3366, %v3364
    %v3397 = vpack.c.b16 %v3367, %v3365
    %v3398 = vpack.c.b16 %v3370, %v3368
    %v3399 = vpack.c.b16 %v3371, %v3369
    %v3400 = vpack.c.b16 %v3374, %v3372
    %v3401 = vpack.c.b16 %v3375, %v3373
    %v3402 = vpack.c.b16 %v3378, %v3376
    %v3403 = vpack.c.b16 %v3379, %v3377
    %v3404 = vpack.c.b16 %v3382, %v3380
    %v3405 = vpack.c.b16 %v3383, %v3381
    %v3406 = vpack.c.b16 %v3386, %v3384
    %v3407 = vpack.c.b16 %v3387, %v3385
    %v3408 = vpack.c.b16 %v3390, %v3388
    %v3409 = vpack.c.b16 %v3391, %v3389
    %v3410 = vpack.c.b16 %v3394, %v3392
    %v3411 = vpack.c.b16 %v3395, %v3393
    %3428 = vmatprep.subr.bf16.mxu0 %v3397
    %3429 = vmatpush1.bf16.msra.mxu0 %v3396
    %3430 = vmatprep.subr.bf16.mxu0 %v3399
    %3431 = vmatpush1.bf16.msra.mxu0 %v3398
    %3432 = vmatprep.subr.bf16.mxu0 %v3401
    %3433 = vmatpush1.bf16.msra.mxu0 %v3400
    %3434 = vmatprep.subr.bf16.mxu0 %v3403
    %3435 = vmatpush1.bf16.msra.mxu0 %v3402
    %3436 = vmatprep.subr.bf16.mxu0 %v3405
    %3437 = vmatpush1.bf16.msra.mxu0 %v3404
    %3438 = vmatprep.subr.bf16.mxu0 %v3407
    %3439 = vmatpush1.bf16.msra.mxu0 %v3406
    %3440 = vmatprep.subr.bf16.mxu0 %v3409
    %3441 = vmatpush1.bf16.msra.mxu0 %v3408
    %3442 = vmatprep.subr.bf16.mxu0 %v3411
    %3443 = vmatpush1.bf16.msra.mxu0 %v3410
    %3444 = vmatprep.subr.bf16.mxu0 0
    %3445 = vmatpush1.bf16.msra.mxu0 0
    %3446 = vmatprep.subr.bf16.mxu0 0
    %3447 = vmatpush1.bf16.msra.mxu0 0
    %3448 = vmatprep.subr.bf16.mxu0 0
    %3449 = vmatpush1.bf16.msra.mxu0 0
    %3450 = vmatprep.subr.bf16.mxu0 0
    %3451 = vmatpush1.bf16.msra.mxu0 0
    %3452 = vmatprep.subr.bf16.mxu0 0
    %3453 = vmatpush1.bf16.msra.mxu0 0
    %3454 = vmatprep.subr.bf16.mxu0 0
    %3455 = vmatpush1.bf16.msra.mxu0 0
    %3456 = vmatprep.subr.bf16.mxu0 0
    %3457 = vmatpush1.bf16.msra.mxu0 0
    %3458 = vmatprep.subr.bf16.mxu0 0
    %3459 = vmatpush1.bf16.msra.mxu0 0
    %3460 = vmatprep.mubr.bf16.mxu0 0
    %3461 = vmatmul.mubr.bf16.gmra.mrb[0].mxu0 %v3138
    %v3462 = vpop.f32.mrb[0].mxu0
    %v3463 = vadd.f32 %v3300, %v3462
    %v3464 = vpop.f32.mrb[0].mxu0
    %v3465 = vadd.f32 %v3302, %v3464
    %v3466 = vpop.f32.mrb[0].mxu0
    %v3467 = vadd.f32 %v3304, %v3466
    %v3468 = vpop.f32.mrb[0].mxu0
    %v3469 = vadd.f32 %v3306, %v3468
    %3470 = vmatprep.mubr.bf16.mxu0 0
    %3471 = vmatmul.mubr.bf16.gmra.mrb[0].mxu0 %v3140
    %v3472 = vpop.f32.mrb[0].mxu0
    %v3473 = vadd.f32 %v3310, %v3472
    %v3474 = vpop.f32.mrb[0].mxu0
    %v3475 = vadd.f32 %v3312, %v3474
    %v3476 = vpop.f32.mrb[0].mxu0
    %v3477 = vadd.f32 %v3314, %v3476
    %v3478 = vpop.f32.mrb[0].mxu0
    %v3479 = vadd.f32 %v3316, %v3478
    %3480 = vmatprep.mubr.bf16.mxu0 0
    %3481 = vmatmul.mubr.bf16.gmra.mrb[0].mxu0 %v3142
    %v3482 = vpop.f32.mrb[0].mxu0
    %v3483 = vadd.f32 %v3320, %v3482
    %v3484 = vpop.f32.mrb[0].mxu0
    %v3485 = vadd.f32 %v3322, %v3484
    %v3486 = vpop.f32.mrb[0].mxu0
    %v3487 = vadd.f32 %v3324, %v3486
    %v3488 = vpop.f32.mrb[0].mxu0
    %v3489 = vadd.f32 %v3326, %v3488
    %3490 = vmatprep.mubr.bf16.mxu0 0
    %3491 = vmatmul.mubr.bf16.gmra.mrb[0].mxu0 %v3144
    %v3492 = vpop.f32.mrb[0].mxu0
    %v3493 = vadd.f32 %v3330, %v3492
    %v3494 = vpop.f32.mrb[0].mxu0
    %v3495 = vadd.f32 %v3332, %v3494
    %v3496 = vpop.f32.mrb[0].mxu0
    %v3497 = vadd.f32 %v3334, %v3496
    %v3498 = vpop.f32.mrb[0].mxu0
    %v3499 = vadd.f32 %v3336, %v3498
    %3500 = vmatprep.mubr.bf16.mxu0 0
    %3501 = vmatmul.mubr.bf16.gmra.mrb[0].mxu0 %v3146
    %v3502 = vpop.f32.mrb[0].mxu0
    %v3503 = vadd.f32 %v3340, %v3502
    %v3504 = vpop.f32.mrb[0].mxu0
    %v3505 = vadd.f32 %v3342, %v3504
    %v3506 = vpop.f32.mrb[0].mxu0
    %v3507 = vadd.f32 %v3344, %v3506
    %v3508 = vpop.f32.mrb[0].mxu0
    %v3509 = vadd.f32 %v3346, %v3508
    %3510 = vdwg.mxu0
    %s3511 = scalar_lea.vmem %s3, 256
    %v3512 = vld [vmem:[%s3511] sm:$0xff]
    %v3513 = vld [vmem:[%s3511 + $0x8] sm:$0xff]
    %v3514 = vld [vmem:[%s3511 + $0x10] sm:$0xff]
    %v3515 = vld [vmem:[%s3511 + $0x18] sm:$0xff]
    %v3516 = vld [vmem:[%s3511 + $0x20] sm:$0xff]
    %v3517 = vld [vmem:[%s3511 + $0x28] sm:$0xff]
    %v3518 = vld [vmem:[%s3511 + $0x30] sm:$0xff]
    %v3519 = vld [vmem:[%s3511 + $0x38] sm:$0xff]
    %v3520 = vld [vmem:[%s3511 + $0x40] sm:$0xff]
    %v3521 = vld [vmem:[%s3511 + $0x48] sm:$0xff]
    %v3522 = vld [vmem:[%s3511 + $0x50] sm:$0xff]
    %v3523 = vld [vmem:[%s3511 + $0x58] sm:$0xff]
    %v3524 = vld [vmem:[%s3511 + $0x60] sm:$0xff]
    %v3525 = vld [vmem:[%s3511 + $0x68] sm:$0xff]
    %v3526 = vld [vmem:[%s3511 + $0x70] sm:$0xff]
    %v3527 = vld [vmem:[%s3511 + $0x78] sm:$0xff]
    %v3544 = vunpack.c.l.b16 %v3512
    %v3545 = vunpack.c.h.b16 %v3512
    %v3546 = vunpack.c.l.b16 %v3513
    %v3547 = vunpack.c.h.b16 %v3513
    %v3548 = vunpack.c.l.b16 %v3514
    %v3549 = vunpack.c.h.b16 %v3514
    %v3550 = vunpack.c.l.b16 %v3515
    %v3551 = vunpack.c.h.b16 %v3515
    %v3552 = vunpack.c.l.b16 %v3516
    %v3553 = vunpack.c.h.b16 %v3516
    %v3554 = vunpack.c.l.b16 %v3517
    %v3555 = vunpack.c.h.b16 %v3517
    %v3556 = vunpack.c.l.b16 %v3518
    %v3557 = vunpack.c.h.b16 %v3518
    %v3558 = vunpack.c.l.b16 %v3519
    %v3559 = vunpack.c.h.b16 %v3519
    %v3560 = vunpack.c.l.b16 %v3520
    %v3561 = vunpack.c.h.b16 %v3520
    %v3562 = vunpack.c.l.b16 %v3521
    %v3563 = vunpack.c.h.b16 %v3521
    %v3564 = vunpack.c.l.b16 %v3522
    %v3565 = vunpack.c.h.b16 %v3522
    %v3566 = vunpack.c.l.b16 %v3523
    %v3567 = vunpack.c.h.b16 %v3523
    %v3568 = vunpack.c.l.b16 %v3524
    %v3569 = vunpack.c.h.b16 %v3524
    %v3570 = vunpack.c.l.b16 %v3525
    %v3571 = vunpack.c.h.b16 %v3525
    %v3572 = vunpack.c.l.b16 %v3526
    %v3573 = vunpack.c.h.b16 %v3526
    %v3574 = vunpack.c.l.b16 %v3527
    %v3575 = vunpack.c.h.b16 %v3527
    %v3576 = vpack.c.b16 %v3546, %v3544
    %v3577 = vpack.c.b16 %v3547, %v3545
    %v3578 = vpack.c.b16 %v3550, %v3548
    %v3579 = vpack.c.b16 %v3551, %v3549
    %v3580 = vpack.c.b16 %v3554, %v3552
    %v3581 = vpack.c.b16 %v3555, %v3553
    %v3582 = vpack.c.b16 %v3558, %v3556
    %v3583 = vpack.c.b16 %v3559, %v3557
    %v3584 = vpack.c.b16 %v3562, %v3560
    %v3585 = vpack.c.b16 %v3563, %v3561
    %v3586 = vpack.c.b16 %v3566, %v3564
    %v3587 = vpack.c.b16 %v3567, %v3565
    %v3588 = vpack.c.b16 %v3570, %v3568
    %v3589 = vpack.c.b16 %v3571, %v3569
    %v3590 = vpack.c.b16 %v3574, %v3572
    %v3591 = vpack.c.b16 %v3575, %v3573
    %3608 = vmatprep.subr.bf16.mxu0 %v3577
    %3609 = vmatpush1.bf16.msra.mxu0 %v3576
    %3610 = vmatprep.subr.bf16.mxu0 %v3579
    %3611 = vmatpush1.bf16.msra.mxu0 %v3578
    %3612 = vmatprep.subr.bf16.mxu0 %v3581
    %3613 = vmatpush1.bf16.msra.mxu0 %v3580
    %3614 = vmatprep.subr.bf16.mxu0 %v3583
    %3615 = vmatpush1.bf16.msra.mxu0 %v3582
    %3616 = vmatprep.subr.bf16.mxu0 %v3585
    %3617 = vmatpush1.bf16.msra.mxu0 %v3584
    %3618 = vmatprep.subr.bf16.mxu0 %v3587
    %3619 = vmatpush1.bf16.msra.mxu0 %v3586
    %3620 = vmatprep.subr.bf16.mxu0 %v3589
    %3621 = vmatpush1.bf16.msra.mxu0 %v3588
    %3622 = vmatprep.subr.bf16.mxu0 %v3591
    %3623 = vmatpush1.bf16.msra.mxu0 %v3590
    %3624 = vmatprep.subr.bf16.mxu0 0
    %3625 = vmatpush1.bf16.msra.mxu0 0
    %3626 = vmatprep.subr.bf16.mxu0 0
    %3627 = vmatpush1.bf16.msra.mxu0 0
    %3628 = vmatprep.subr.bf16.mxu0 0
    %3629 = vmatpush1.bf16.msra.mxu0 0
    %3630 = vmatprep.subr.bf16.mxu0 0
    %3631 = vmatpush1.bf16.msra.mxu0 0
    %3632 = vmatprep.subr.bf16.mxu0 0
    %3633 = vmatpush1.bf16.msra.mxu0 0
    %3634 = vmatprep.subr.bf16.mxu0 0
    %3635 = vmatpush1.bf16.msra.mxu0 0
    %3636 = vmatprep.subr.bf16.mxu0 0
    %3637 = vmatpush1.bf16.msra.mxu0 0
    %3638 = vmatprep.subr.bf16.mxu0 0
    %3639 = vmatpush1.bf16.msra.mxu0 0
    %3640 = vmatprep.mubr.bf16.mxu0 0
    %3641 = vmatmul.mubr.bf16.gmra.mrb[0].mxu0 %v3140
    %v3642 = vpop.f32.mrb[0].mxu0
    %v3643 = vadd.f32 0.0, %v3642
    %v3644 = vpop.f32.mrb[0].mxu0
    %v3645 = vadd.f32 0.0, %v3644
    %v3646 = vpop.f32.mrb[0].mxu0
    %v3647 = vadd.f32 0.0, %v3646
    %v3648 = vpop.f32.mrb[0].mxu0
    %v3649 = vadd.f32 0.0, %v3648
    %3650 = vmatprep.mubr.bf16.mxu0 0
    %3651 = vmatmul.mubr.bf16.gmra.mrb[0].mxu0 %v3142
    %v3652 = vpop.f32.mrb[0].mxu0
    %v3653 = vadd.f32 0.0, %v3652
    %v3654 = vpop.f32.mrb[0].mxu0
    %v3655 = vadd.f32 0.0, %v3654
    %v3656 = vpop.f32.mrb[0].mxu0
    %v3657 = vadd.f32 0.0, %v3656
    %v3658 = vpop.f32.mrb[0].mxu0
    %v3659 = vadd.f32 0.0, %v3658
    %3660 = vmatprep.mubr.bf16.mxu0 0
    %3661 = vmatmul.mubr.bf16.gmra.mrb[0].mxu0 %v3144
    %v3662 = vpop.f32.mrb[0].mxu0
    %v3663 = vadd.f32 0.0, %v3662
    %v3664 = vpop.f32.mrb[0].mxu0
    %v3665 = vadd.f32 0.0, %v3664
    %v3666 = vpop.f32.mrb[0].mxu0
    %v3667 = vadd.f32 0.0, %v3666
    %v3668 = vpop.f32.mrb[0].mxu0
    %v3669 = vadd.f32 0.0, %v3668
    %3670 = vmatprep.mubr.bf16.mxu0 0
    %3671 = vmatmul.mubr.bf16.gmra.mrb[0].mxu0 %v3146
    %v3672 = vpop.f32.mrb[0].mxu0
    %v3673 = vadd.f32 0.0, %v3672
    %v3674 = vpop.f32.mrb[0].mxu0
    %v3675 = vadd.f32 0.0, %v3674
    %v3676 = vpop.f32.mrb[0].mxu0
    %v3677 = vadd.f32 0.0, %v3676
    %v3678 = vpop.f32.mrb[0].mxu0
    %v3679 = vadd.f32 0.0, %v3678
    %3680 = vmatprep.mubr.bf16.mxu0 0
    %3681 = vmatmul.mubr.bf16.gmra.mrb[0].mxu0 %v3148
    %v3682 = vpop.f32.mrb[0].mxu0
    %v3683 = vadd.f32 0.0, %v3682
    %v3684 = vpop.f32.mrb[0].mxu0
    %v3685 = vadd.f32 0.0, %v3684
    %v3686 = vpop.f32.mrb[0].mxu0
    %v3687 = vadd.f32 0.0, %v3686
    %v3688 = vpop.f32.mrb[0].mxu0
    %v3689 = vadd.f32 0.0, %v3688
    %3690 = vdwg.mxu0
    %v3691 = vadd.f32 %v3463, %v3643
    %v3692 = vadd.f32 %v3465, %v3645
    %v3693 = vadd.f32 %v3467, %v3647
    %v3694 = vadd.f32 %v3469, %v3649
    %v3695 = vadd.f32 %v3473, %v3653
    %v3696 = vadd.f32 %v3475, %v3655
    %v3697 = vadd.f32 %v3477, %v3657
    %v3698 = vadd.f32 %v3479, %v3659
    %v3699 = vadd.f32 %v3483, %v3663
    %v3700 = vadd.f32 %v3485, %v3665
    %v3701 = vadd.f32 %v3487, %v3667
    %v3702 = vadd.f32 %v3489, %v3669
    %v3703 = vadd.f32 %v3493, %v3673
    %v3704 = vadd.f32 %v3495, %v3675
    %v3705 = vadd.f32 %v3497, %v3677
    %v3706 = vadd.f32 %v3499, %v3679
    %v3707 = vadd.f32 %v3503, %v3683
    %v3708 = vadd.f32 %v3505, %v3685
    %v3709 = vadd.f32 %v3507, %v3687
    %v3710 = vadd.f32 %v3509, %v3689
    %s3711 = scalar_lea.vmem %s3, 384
    %v3712 = vld [vmem:[%s3711] sm:$0xff]
    %v3713 = vld [vmem:[%s3711 + $0x8] sm:$0xff]
    %v3714 = vld [vmem:[%s3711 + $0x10] sm:$0xff]
    %v3715 = vld [vmem:[%s3711 + $0x18] sm:$0xff]
    %v3716 = vld [vmem:[%s3711 + $0x20] sm:$0xff]
    %v3717 = vld [vmem:[%s3711 + $0x28] sm:$0xff]
    %v3718 = vld [vmem:[%s3711 + $0x30] sm:$0xff]
    %v3719 = vld [vmem:[%s3711 + $0x38] sm:$0xff]
    %v3720 = vld [vmem:[%s3711 + $0x40] sm:$0xff]
    %v3721 = vld [vmem:[%s3711 + $0x48] sm:$0xff]
    %v3722 = vld [vmem:[%s3711 + $0x50] sm:$0xff]
    %v3723 = vld [vmem:[%s3711 + $0x58] sm:$0xff]
    %v3724 = vld [vmem:[%s3711 + $0x60] sm:$0xff]
    %v3725 = vld [vmem:[%s3711 + $0x68] sm:$0xff]
    %v3726 = vld [vmem:[%s3711 + $0x70] sm:$0xff]
    %v3727 = vld [vmem:[%s3711 + $0x78] sm:$0xff]
    %v3744 = vunpack.c.l.b16 %v3712
    %v3745 = vunpack.c.h.b16 %v3712
    %v3746 = vunpack.c.l.b16 %v3713
    %v3747 = vunpack.c.h.b16 %v3713
    %v3748 = vunpack.c.l.b16 %v3714
    %v3749 = vunpack.c.h.b16 %v3714
    %v3750 = vunpack.c.l.b16 %v3715
    %v3751 = vunpack.c.h.b16 %v3715
    %v3752 = vunpack.c.l.b16 %v3716
    %v3753 = vunpack.c.h.b16 %v3716
    %v3754 = vunpack.c.l.b16 %v3717
    %v3755 = vunpack.c.h.b16 %v3717
    %v3756 = vunpack.c.l.b16 %v3718
    %v3757 = vunpack.c.h.b16 %v3718
    %v3758 = vunpack.c.l.b16 %v3719
    %v3759 = vunpack.c.h.b16 %v3719
    %v3760 = vunpack.c.l.b16 %v3720
    %v3761 = vunpack.c.h.b16 %v3720
    %v3762 = vunpack.c.l.b16 %v3721
    %v3763 = vunpack.c.h.b16 %v3721
    %v3764 = vunpack.c.l.b16 %v3722
    %v3765 = vunpack.c.h.b16 %v3722
    %v3766 = vunpack.c.l.b16 %v3723
    %v3767 = vunpack.c.h.b16 %v3723
    %v3768 = vunpack.c.l.b16 %v3724
    %v3769 = vunpack.c.h.b16 %v3724
    %v3770 = vunpack.c.l.b16 %v3725
    %v3771 = vunpack.c.h.b16 %v3725
    %v3772 = vunpack.c.l.b16 %v3726
    %v3773 = vunpack.c.h.b16 %v3726
    %v3774 = vunpack.c.l.b16 %v3727
    %v3775 = vunpack.c.h.b16 %v3727
    %v3776 = vpack.c.b16 %v3746, %v3744
    %v3777 = vpack.c.b16 %v3747, %v3745
    %v3778 = vpack.c.b16 %v3750, %v3748
    %v3779 = vpack.c.b16 %v3751, %v3749
    %v3780 = vpack.c.b16 %v3754, %v3752
    %v3781 = vpack.c.b16 %v3755, %v3753
    %v3782 = vpack.c.b16 %v3758, %v3756
    %v3783 = vpack.c.b16 %v3759, %v3757
    %v3784 = vpack.c.b16 %v3762, %v3760
    %v3785 = vpack.c.b16 %v3763, %v3761
    %v3786 = vpack.c.b16 %v3766, %v3764
    %v3787 = vpack.c.b16 %v3767, %v3765
    %v3788 = vpack.c.b16 %v3770, %v3768
    %v3789 = vpack.c.b16 %v3771, %v3769
    %v3790 = vpack.c.b16 %v3774, %v3772
    %v3791 = vpack.c.b16 %v3775, %v3773
    %3808 = vmatprep.subr.bf16.mxu0 %v3777
    %3809 = vmatpush1.bf16.msra.mxu0 %v3776
    %3810 = vmatprep.subr.bf16.mxu0 %v3779
    %3811 = vmatpush1.bf16.msra.mxu0 %v3778
    %3812 = vmatprep.subr.bf16.mxu0 %v3781
    %3813 = vmatpush1.bf16.msra.mxu0 %v3780
    %3814 = vmatprep.subr.bf16.mxu0 %v3783
    %3815 = vmatpush1.bf16.msra.mxu0 %v3782
    %3816 = vmatprep.subr.bf16.mxu0 %v3785
    %3817 = vmatpush1.bf16.msra.mxu0 %v3784
    %3818 = vmatprep.subr.bf16.mxu0 %v3787
    %3819 = vmatpush1.bf16.msra.mxu0 %v3786
    %3820 = vmatprep.subr.bf16.mxu0 %v3789
    %3821 = vmatpush1.bf16.msra.mxu0 %v3788
    %3822 = vmatprep.subr.bf16.mxu0 %v3791
    %3823 = vmatpush1.bf16.msra.mxu0 %v3790
    %3824 = vmatprep.subr.bf16.mxu0 0
    %3825 = vmatpush1.bf16.msra.mxu0 0
    %3826 = vmatprep.subr.bf16.mxu0 0
    %3827 = vmatpush1.bf16.msra.mxu0 0
    %3828 = vmatprep.subr.bf16.mxu0 0
    %3829 = vmatpush1.bf16.msra.mxu0 0
    %3830 = vmatprep.subr.bf16.mxu0 0
    %3831 = vmatpush1.bf16.msra.mxu0 0
    %3832 = vmatprep.subr.bf16.mxu0 0
    %3833 = vmatpush1.bf16.msra.mxu0 0
    %3834 = vmatprep.subr.bf16.mxu0 0
    %3835 = vmatpush1.bf16.msra.mxu0 0
    %3836 = vmatprep.subr.bf16.mxu0 0
    %3837 = vmatpush1.bf16.msra.mxu0 0
    %3838 = vmatprep.subr.bf16.mxu0 0
    %3839 = vmatpush1.bf16.msra.mxu0 0
    %3840 = vmatprep.mubr.bf16.mxu0 0
    %3841 = vmatmul.mubr.bf16.gmra.mrb[0].mxu0 %v3141
    %v3842 = vpop.f32.mrb[0].mxu0
    %v3843 = vadd.f32 0.0, %v3842
    %v3844 = vpop.f32.mrb[0].mxu0
    %v3845 = vadd.f32 0.0, %v3844
    %v3846 = vpop.f32.mrb[0].mxu0
    %v3847 = vadd.f32 0.0, %v3846
    %v3848 = vpop.f32.mrb[0].mxu0
    %v3849 = vadd.f32 0.0, %v3848
    %3850 = vmatprep.mubr.bf16.mxu0 0
    %3851 = vmatmul.mubr.bf16.gmra.mrb[0].mxu0 %v3143
    %v3852 = vpop.f32.mrb[0].mxu0
    %v3853 = vadd.f32 0.0, %v3852
    %v3854 = vpop.f32.mrb[0].mxu0
    %v3855 = vadd.f32 0.0, %v3854
    %v3856 = vpop.f32.mrb[0].mxu0
    %v3857 = vadd.f32 0.0, %v3856
    %v3858 = vpop.f32.mrb[0].mxu0
    %v3859 = vadd.f32 0.0, %v3858
    %3860 = vmatprep.mubr.bf16.mxu0 0
    %3861 = vmatmul.mubr.bf16.gmra.mrb[0].mxu0 %v3145
    %v3862 = vpop.f32.mrb[0].mxu0
    %v3863 = vadd.f32 0.0, %v3862
    %v3864 = vpop.f32.mrb[0].mxu0
    %v3865 = vadd.f32 0.0, %v3864
    %v3866 = vpop.f32.mrb[0].mxu0
    %v3867 = vadd.f32 0.0, %v3866
    %v3868 = vpop.f32.mrb[0].mxu0
    %v3869 = vadd.f32 0.0, %v3868
    %3870 = vmatprep.mubr.bf16.mxu0 0
    %3871 = vmatmul.mubr.bf16.gmra.mrb[0].mxu0 %v3147
    %v3872 = vpop.f32.mrb[0].mxu0
    %v3873 = vadd.f32 0.0, %v3872
    %v3874 = vpop.f32.mrb[0].mxu0
    %v3875 = vadd.f32 0.0, %v3874
    %v3876 = vpop.f32.mrb[0].mxu0
    %v3877 = vadd.f32 0.0, %v3876
    %v3878 = vpop.f32.mrb[0].mxu0
    %v3879 = vadd.f32 0.0, %v3878
    %3880 = vmatprep.mubr.bf16.mxu0 0
    %3881 = vmatmul.mubr.bf16.gmra.mrb[0].mxu0 %v3149
    %v3882 = vpop.f32.mrb[0].mxu0
    %v3883 = vadd.f32 0.0, %v3882
    %v3884 = vpop.f32.mrb[0].mxu0
    %v3885 = vadd.f32 0.0, %v3884
    %v3886 = vpop.f32.mrb[0].mxu0
    %v3887 = vadd.f32 0.0, %v3886
    %v3888 = vpop.f32.mrb[0].mxu0
    %v3889 = vadd.f32 0.0, %v3888
    %3890 = vdwg.mxu0
    %v3891 = vadd.f32 %v3691, %v3843
    %v3892 = vadd.f32 %v3692, %v3845
    %v3893 = vadd.f32 %v3693, %v3847
    %v3894 = vadd.f32 %v3694, %v3849
    %v3895 = vadd.f32 %v3695, %v3853
    %v3896 = vadd.f32 %v3696, %v3855
    %v3897 = vadd.f32 %v3697, %v3857
    %v3898 = vadd.f32 %v3698, %v3859
    %v3899 = vadd.f32 %v3699, %v3863
    %v3900 = vadd.f32 %v3700, %v3865
    %v3901 = vadd.f32 %v3701, %v3867
    %v3902 = vadd.f32 %v3702, %v3869
    %v3903 = vadd.f32 %v3703, %v3873
    %v3904 = vadd.f32 %v3704, %v3875
    %v3905 = vadd.f32 %v3705, %v3877
    %v3906 = vadd.f32 %v3706, %v3879
    %v3907 = vadd.f32 %v3707, %v3883
    %v3908 = vadd.f32 %v3708, %v3885
    %v3909 = vadd.f32 %v3709, %v3887
    %v3910 = vadd.f32 %v3710, %v3889
    %s3911 = scalar_lea.vmem %s3, 512
    %v3912 = vld [vmem:[%s3911] sm:$0xff]
    %v3913 = vld [vmem:[%s3911 + $0x8] sm:$0xff]
    %v3914 = vld [vmem:[%s3911 + $0x10] sm:$0xff]
    %v3915 = vld [vmem:[%s3911 + $0x18] sm:$0xff]
    %v3916 = vld [vmem:[%s3911 + $0x20] sm:$0xff]
    %v3917 = vld [vmem:[%s3911 + $0x28] sm:$0xff]
    %v3918 = vld [vmem:[%s3911 + $0x30] sm:$0xff]
    %v3919 = vld [vmem:[%s3911 + $0x38] sm:$0xff]
    %v3920 = vld [vmem:[%s3911 + $0x40] sm:$0xff]
    %v3921 = vld [vmem:[%s3911 + $0x48] sm:$0xff]
    %v3922 = vld [vmem:[%s3911 + $0x50] sm:$0xff]
    %v3923 = vld [vmem:[%s3911 + $0x58] sm:$0xff]
    %v3924 = vld [vmem:[%s3911 + $0x60] sm:$0xff]
    %v3925 = vld [vmem:[%s3911 + $0x68] sm:$0xff]
    %v3926 = vld [vmem:[%s3911 + $0x70] sm:$0xff]
    %v3927 = vld [vmem:[%s3911 + $0x78] sm:$0xff]
    %v3944 = vunpack.c.l.b16 %v3912
    %v3945 = vunpack.c.h.b16 %v3912
    %v3946 = vunpack.c.l.b16 %v3913
    %v3947 = vunpack.c.h.b16 %v3913
    %v3948 = vunpack.c.l.b16 %v3914
    %v3949 = vunpack.c.h.b16 %v3914
    %v3950 = vunpack.c.l.b16 %v3915
    %v3951 = vunpack.c.h.b16 %v3915
    %v3952 = vunpack.c.l.b16 %v3916
    %v3953 = vunpack.c.h.b16 %v3916
    %v3954 = vunpack.c.l.b16 %v3917
    %v3955 = vunpack.c.h.b16 %v3917
    %v3956 = vunpack.c.l.b16 %v3918
    %v3957 = vunpack.c.h.b16 %v3918
    %v3958 = vunpack.c.l.b16 %v3919
    %v3959 = vunpack.c.h.b16 %v3919
    %v3960 = vunpack.c.l.b16 %v3920
    %v3961 = vunpack.c.h.b16 %v3920
    %v3962 = vunpack.c.l.b16 %v3921
    %v3963 = vunpack.c.h.b16 %v3921
    %v3964 = vunpack.c.l.b16 %v3922
    %v3965 = vunpack.c.h.b16 %v3922
    %v3966 = vunpack.c.l.b16 %v3923
    %v3967 = vunpack.c.h.b16 %v3923
    %v3968 = vunpack.c.l.b16 %v3924
    %v3969 = vunpack.c.h.b16 %v3924
    %v3970 = vunpack.c.l.b16 %v3925
    %v3971 = vunpack.c.h.b16 %v3925
    %v3972 = vunpack.c.l.b16 %v3926
    %v3973 = vunpack.c.h.b16 %v3926
    %v3974 = vunpack.c.l.b16 %v3927
    %v3975 = vunpack.c.h.b16 %v3927
    %v3976 = vpack.c.b16 %v3946, %v3944
    %v3977 = vpack.c.b16 %v3947, %v3945
    %v3978 = vpack.c.b16 %v3950, %v3948
    %v3979 = vpack.c.b16 %v3951, %v3949
    %v3980 = vpack.c.b16 %v3954, %v3952
    %v3981 = vpack.c.b16 %v3955, %v3953
    %v3982 = vpack.c.b16 %v3958, %v3956
    %v3983 = vpack.c.b16 %v3959, %v3957
    %v3984 = vpack.c.b16 %v3962, %v3960
    %v3985 = vpack.c.b16 %v3963, %v3961
    %v3986 = vpack.c.b16 %v3966, %v3964
    %v3987 = vpack.c.b16 %v3967, %v3965
    %v3988 = vpack.c.b16 %v3970, %v3968
    %v3989 = vpack.c.b16 %v3971, %v3969
    %v3990 = vpack.c.b16 %v3974, %v3972
    %v3991 = vpack.c.b16 %v3975, %v3973
    %4008 = vmatprep.subr.bf16.mxu0 %v3977
    %4009 = vmatpush1.bf16.msra.mxu0 %v3976
    %4010 = vmatprep.subr.bf16.mxu0 %v3979
    %4011 = vmatpush1.bf16.msra.mxu0 %v3978
    %4012 = vmatprep.subr.bf16.mxu0 %v3981
    %4013 = vmatpush1.bf16.msra.mxu0 %v3980
    %4014 = vmatprep.subr.bf16.mxu0 %v3983
    %4015 = vmatpush1.bf16.msra.mxu0 %v3982
    %4016 = vmatprep.subr.bf16.mxu0 %v3985
    %4017 = vmatpush1.bf16.msra.mxu0 %v3984
    %4018 = vmatprep.subr.bf16.mxu0 %v3987
    %4019 = vmatpush1.bf16.msra.mxu0 %v3986
    %4020 = vmatprep.subr.bf16.mxu0 %v3989
    %4021 = vmatpush1.bf16.msra.mxu0 %v3988
    %4022 = vmatprep.subr.bf16.mxu0 %v3991
    %4023 = vmatpush1.bf16.msra.mxu0 %v3990
    %4024 = vmatprep.subr.bf16.mxu0 0
    %4025 = vmatpush1.bf16.msra.mxu0 0
    %4026 = vmatprep.subr.bf16.mxu0 0
    %4027 = vmatpush1.bf16.msra.mxu0 0
    %4028 = vmatprep.subr.bf16.mxu0 0
    %4029 = vmatpush1.bf16.msra.mxu0 0
    %4030 = vmatprep.subr.bf16.mxu0 0
    %4031 = vmatpush1.bf16.msra.mxu0 0
    %4032 = vmatprep.subr.bf16.mxu0 0
    %4033 = vmatpush1.bf16.msra.mxu0 0
    %4034 = vmatprep.subr.bf16.mxu0 0
    %4035 = vmatpush1.bf16.msra.mxu0 0
    %4036 = vmatprep.subr.bf16.mxu0 0
    %4037 = vmatpush1.bf16.msra.mxu0 0
    %4038 = vmatprep.subr.bf16.mxu0 0
    %4039 = vmatpush1.bf16.msra.mxu0 0
    %4040 = vmatprep.mubr.bf16.mxu0 0
    %4041 = vmatmul.mubr.bf16.gmra.mrb[0].mxu0 %v3142
    %v4042 = vpop.f32.mrb[0].mxu0
    %v4043 = vadd.f32 0.0, %v4042
    %v4044 = vpop.f32.mrb[0].mxu0
    %v4045 = vadd.f32 0.0, %v4044
    %v4046 = vpop.f32.mrb[0].mxu0
    %v4047 = vadd.f32 0.0, %v4046
    %v4048 = vpop.f32.mrb[0].mxu0
    %v4049 = vadd.f32 0.0, %v4048
    %4050 = vmatprep.mubr.bf16.mxu0 0
    %4051 = vmatmul.mubr.bf16.gmra.mrb[0].mxu0 %v3144
    %v4052 = vpop.f32.mrb[0].mxu0
    %v4053 = vadd.f32 0.0, %v4052
    %v4054 = vpop.f32.mrb[0].mxu0
    %v4055 = vadd.f32 0.0, %v4054
    %v4056 = vpop.f32.mrb[0].mxu0
    %v4057 = vadd.f32 0.0, %v4056
    %v4058 = vpop.f32.mrb[0].mxu0
    %v4059 = vadd.f32 0.0, %v4058
    %4060 = vmatprep.mubr.bf16.mxu0 0
    %4061 = vmatmul.mubr.bf16.gmra.mrb[0].mxu0 %v3146
    %v4062 = vpop.f32.mrb[0].mxu0
    %v4063 = vadd.f32 0.0, %v4062
    %v4064 = vpop.f32.mrb[0].mxu0
    %v4065 = vadd.f32 0.0, %v4064
    %v4066 = vpop.f32.mrb[0].mxu0
    %v4067 = vadd.f32 0.0, %v4066
    %v4068 = vpop.f32.mrb[0].mxu0
    %v4069 = vadd.f32 0.0, %v4068
    %4070 = vmatprep.mubr.bf16.mxu0 0
    %4071 = vmatmul.mubr.bf16.gmra.mrb[0].mxu0 %v3148
    %v4072 = vpop.f32.mrb[0].mxu0
    %v4073 = vadd.f32 0.0, %v4072
    %v4074 = vpop.f32.mrb[0].mxu0
    %v4075 = vadd.f32 0.0, %v4074
    %v4076 = vpop.f32.mrb[0].mxu0
    %v4077 = vadd.f32 0.0, %v4076
    %v4078 = vpop.f32.mrb[0].mxu0
    %v4079 = vadd.f32 0.0, %v4078
    %4080 = vmatprep.mubr.bf16.mxu0 0
    %4081 = vmatmul.mubr.bf16.gmra.mrb[0].mxu0 %v3150
    %v4082 = vpop.f32.mrb[0].mxu0
    %v4083 = vadd.f32 0.0, %v4082
    %v4084 = vpop.f32.mrb[0].mxu0
    %v4085 = vadd.f32 0.0, %v4084
    %v4086 = vpop.f32.mrb[0].mxu0
    %v4087 = vadd.f32 0.0, %v4086
    %v4088 = vpop.f32.mrb[0].mxu0
    %v4089 = vadd.f32 0.0, %v4088
    %4090 = vdwg.mxu0
    %v4091 = vadd.f32 %v3891, %v4043
    %v4092 = vadd.f32 %v3892, %v4045
    %v4093 = vadd.f32 %v3893, %v4047
    %v4094 = vadd.f32 %v3894, %v4049
    %v4095 = vadd.f32 %v3895, %v4053
    %v4096 = vadd.f32 %v3896, %v4055
    %v4097 = vadd.f32 %v3897, %v4057
    %v4098 = vadd.f32 %v3898, %v4059
    %v4099 = vadd.f32 %v3899, %v4063
    %v4100 = vadd.f32 %v3900, %v4065
    %v4101 = vadd.f32 %v3901, %v4067
    %v4102 = vadd.f32 %v3902, %v4069
    %v4103 = vadd.f32 %v3903, %v4073
    %v4104 = vadd.f32 %v3904, %v4075
    %v4105 = vadd.f32 %v3905, %v4077
    %v4106 = vadd.f32 %v3906, %v4079
    %v4107 = vadd.f32 %v3907, %v4083
    %v4108 = vadd.f32 %v3908, %v4085
    %v4109 = vadd.f32 %v3909, %v4087
    %v4110 = vadd.f32 %v3910, %v4089
    %v4111 = vld [vmem:[%s4] sm:$0x3]
    %v4113 = vlaneseq
    %v4114 = vshrl.u32 %v4113, 7
    %v4115 = vsub.s32 0, %v4114
    %v4116 = vrot.slane %v4111, %v4115
    %v4117 = vlaneseq
    %v4118 = vshrl.u32 %v4117, 7
    %v4119 = vsub.s32 1, %v4118
    %v4120 = vrot.slane %v4111, %v4119
    %v4123 = vadd.f32 %v4091, %v4116
    %v4124 = vadd.f32 %v4092, %v4120
    %v4125 = vadd.f32 %v4093, %v4116
    %v4126 = vadd.f32 %v4094, %v4120
    %v4127 = vadd.f32 %v4095, %v4116
    %v4128 = vadd.f32 %v4096, %v4120
    %v4129 = vadd.f32 %v4097, %v4116
    %v4130 = vadd.f32 %v4098, %v4120
    %v4131 = vadd.f32 %v4099, %v4116
    %v4132 = vadd.f32 %v4100, %v4120
    %v4133 = vadd.f32 %v4101, %v4116
    %v4134 = vadd.f32 %v4102, %v4120
    %v4135 = vadd.f32 %v4103, %v4116
    %v4136 = vadd.f32 %v4104, %v4120
    %v4137 = vadd.f32 %v4105, %v4116
    %v4138 = vadd.f32 %v4106, %v4120
    %v4139 = vadd.f32 %v4107, %v4116
    %v4140 = vadd.f32 %v4108, %v4120
    %v4141 = vadd.f32 %v4109, %v4116
    %v4142 = vadd.f32 %v4110, %v4120
    %v4143 = vmax.f32 %v4123, 0.0
    %v4144 = vmax.f32 %v4124, 0.0
    %v4145 = vmax.f32 %v4125, 0.0
    %v4146 = vmax.f32 %v4126, 0.0
    %v4147 = vmax.f32 %v4127, 0.0
    %v4148 = vmax.f32 %v4128, 0.0
    %v4149 = vmax.f32 %v4129, 0.0
    %v4150 = vmax.f32 %v4130, 0.0
    %v4151 = vmax.f32 %v4131, 0.0
    %v4152 = vmax.f32 %v4132, 0.0
    %v4153 = vmax.f32 %v4133, 0.0
    %v4154 = vmax.f32 %v4134, 0.0
    %v4155 = vmax.f32 %v4135, 0.0
    %v4156 = vmax.f32 %v4136, 0.0
    %v4157 = vmax.f32 %v4137, 0.0
    %v4158 = vmax.f32 %v4138, 0.0
    %v4159 = vmax.f32 %v4139, 0.0
    %v4160 = vmax.f32 %v4140, 0.0
    %v4161 = vmax.f32 %v4141, 0.0
    %v4162 = vmax.f32 %v4142, 0.0
    %v4163 = vmax.f32 %v4143, %v4144
    %v4164 = vmax.f32 %v4145, %v4146
    %v4165 = vmax.f32 %v4147, %v4148
    %v4166 = vmax.f32 %v4149, %v4150
    %v4167 = vmax.f32 %v4151, %v4152
    %v4168 = vmax.f32 %v4153, %v4154
    %v4169 = vmax.f32 %v4155, %v4156
    %v4170 = vmax.f32 %v4157, %v4158
    %v4171 = vmax.f32 %v4159, %v4160
    %v4172 = vmax.f32 %v4161, %v4162
    %4173 = vmatprep.subr.bf16.mxu0 %v3234
    %4174 = vmatpush1.bf16.msra.mxu0 %v3233
    %4175 = vmatprep.subr.bf16.mxu0 %v3236
    %4176 = vmatpush1.bf16.msra.mxu0 %v3235
    %4177 = vmatprep.subr.bf16.mxu0 %v3238
    %4178 = vmatpush1.bf16.msra.mxu0 %v3237
    %4179 = vmatprep.subr.bf16.mxu0 %v3240
    %4180 = vmatpush1.bf16.msra.mxu0 %v3239
    %4181 = vmatprep.subr.bf16.mxu0 %v3242
    %4182 = vmatpush1.bf16.msra.mxu0 %v3241
    %4183 = vmatprep.subr.bf16.mxu0 %v3244
    %4184 = vmatpush1.bf16.msra.mxu0 %v3243
    %4185 = vmatprep.subr.bf16.mxu0 %v3246
    %4186 = vmatpush1.bf16.msra.mxu0 %v3245
    %4187 = vmatprep.subr.bf16.mxu0 %v3248
    %4188 = vmatpush1.bf16.msra.mxu0 %v3247
    %4189 = vmatprep.subr.bf16.mxu0 0
    %4190 = vmatpush1.bf16.msra.mxu0 0
    %4191 = vmatprep.subr.bf16.mxu0 0
    %4192 = vmatpush1.bf16.msra.mxu0 0
    %4193 = vmatprep.subr.bf16.mxu0 0
    %4194 = vmatpush1.bf16.msra.mxu0 0
    %4195 = vmatprep.subr.bf16.mxu0 0
    %4196 = vmatpush1.bf16.msra.mxu0 0
    %4197 = vmatprep.subr.bf16.mxu0 0
    %4198 = vmatpush1.bf16.msra.mxu0 0
    %4199 = vmatprep.subr.bf16.mxu0 0
    %4200 = vmatpush1.bf16.msra.mxu0 0
    %4201 = vmatprep.subr.bf16.mxu0 0
    %4202 = vmatpush1.bf16.msra.mxu0 0
    %4203 = vmatprep.subr.bf16.mxu0 0
    %4204 = vmatpush1.bf16.msra.mxu0 0
    %4205 = vmatprep.mubr.bf16.mxu0 0
    %4206 = vmatmul.mubr.bf16.gmra.mrb[0].mxu0 %v3140
    %v4207 = vpop.f32.mrb[0].mxu0
    %v4208 = vadd.f32 0.0, %v4207
    %v4209 = vpop.f32.mrb[0].mxu0
    %v4210 = vadd.f32 0.0, %v4209
    %v4211 = vpop.f32.mrb[0].mxu0
    %v4212 = vadd.f32 0.0, %v4211
    %v4213 = vpop.f32.mrb[0].mxu0
    %v4214 = vadd.f32 0.0, %v4213
    %4215 = vmatprep.mubr.bf16.mxu0 0
    %4216 = vmatmul.mubr.bf16.gmra.mrb[0].mxu0 %v3142
    %v4217 = vpop.f32.mrb[0].mxu0
    %v4218 = vadd.f32 0.0, %v4217
    %v4219 = vpop.f32.mrb[0].mxu0
    %v4220 = vadd.f32 0.0, %v4219
    %v4221 = vpop.f32.mrb[0].mxu0
    %v4222 = vadd.f32 0.0, %v4221
    %v4223 = vpop.f32.mrb[0].mxu0
    %v4224 = vadd.f32 0.0, %v4223
    %4225 = vmatprep.mubr.bf16.mxu0 0
    %4226 = vmatmul.mubr.bf16.gmra.mrb[0].mxu0 %v3144
    %v4227 = vpop.f32.mrb[0].mxu0
    %v4228 = vadd.f32 0.0, %v4227
    %v4229 = vpop.f32.mrb[0].mxu0
    %v4230 = vadd.f32 0.0, %v4229
    %v4231 = vpop.f32.mrb[0].mxu0
    %v4232 = vadd.f32 0.0, %v4231
    %v4233 = vpop.f32.mrb[0].mxu0
    %v4234 = vadd.f32 0.0, %v4233
    %4235 = vmatprep.mubr.bf16.mxu0 0
    %4236 = vmatmul.mubr.bf16.gmra.mrb[0].mxu0 %v3146
    %v4237 = vpop.f32.mrb[0].mxu0
    %v4238 = vadd.f32 0.0, %v4237
    %v4239 = vpop.f32.mrb[0].mxu0
    %v4240 = vadd.f32 0.0, %v4239
    %v4241 = vpop.f32.mrb[0].mxu0
    %v4242 = vadd.f32 0.0, %v4241
    %v4243 = vpop.f32.mrb[0].mxu0
    %v4244 = vadd.f32 0.0, %v4243
    %4245 = vmatprep.mubr.bf16.mxu0 0
    %4246 = vmatmul.mubr.bf16.gmra.mrb[0].mxu0 %v3148
    %v4247 = vpop.f32.mrb[0].mxu0
    %v4248 = vadd.f32 0.0, %v4247
    %v4249 = vpop.f32.mrb[0].mxu0
    %v4250 = vadd.f32 0.0, %v4249
    %v4251 = vpop.f32.mrb[0].mxu0
    %v4252 = vadd.f32 0.0, %v4251
    %v4253 = vpop.f32.mrb[0].mxu0
    %v4254 = vadd.f32 0.0, %v4253
    %4255 = vdwg.mxu0
    %4256 = vmatprep.subr.bf16.mxu0 %v3397
    %4257 = vmatpush1.bf16.msra.mxu0 %v3396
    %4258 = vmatprep.subr.bf16.mxu0 %v3399
    %4259 = vmatpush1.bf16.msra.mxu0 %v3398
    %4260 = vmatprep.subr.bf16.mxu0 %v3401
    %4261 = vmatpush1.bf16.msra.mxu0 %v3400
    %4262 = vmatprep.subr.bf16.mxu0 %v3403
    %4263 = vmatpush1.bf16.msra.mxu0 %v3402
    %4264 = vmatprep.subr.bf16.mxu0 %v3405
    %4265 = vmatpush1.bf16.msra.mxu0 %v3404
    %4266 = vmatprep.subr.bf16.mxu0 %v3407
    %4267 = vmatpush1.bf16.msra.mxu0 %v3406
    %4268 = vmatprep.subr.bf16.mxu0 %v3409
    %4269 = vmatpush1.bf16.msra.mxu0 %v3408
    %4270 = vmatprep.subr.bf16.mxu0 %v3411
    %4271 = vmatpush1.bf16.msra.mxu0 %v3410
    %4272 = vmatprep.subr.bf16.mxu0 0
    %4273 = vmatpush1.bf16.msra.mxu0 0
    %4274 = vmatprep.subr.bf16.mxu0 0
    %4275 = vmatpush1.bf16.msra.mxu0 0
    %4276 = vmatprep.subr.bf16.mxu0 0
    %4277 = vmatpush1.bf16.msra.mxu0 0
    %4278 = vmatprep.subr.bf16.mxu0 0
    %4279 = vmatpush1.bf16.msra.mxu0 0
    %4280 = vmatprep.subr.bf16.mxu0 0
    %4281 = vmatpush1.bf16.msra.mxu0 0
    %4282 = vmatprep.subr.bf16.mxu0 0
    %4283 = vmatpush1.bf16.msra.mxu0 0
    %4284 = vmatprep.subr.bf16.mxu0 0
    %4285 = vmatpush1.bf16.msra.mxu0 0
    %4286 = vmatprep.subr.bf16.mxu0 0
    %4287 = vmatpush1.bf16.msra.mxu0 0
    %4288 = vmatprep.mubr.bf16.mxu0 0
    %4289 = vmatmul.mubr.bf16.gmra.mrb[0].mxu0 %v3139
    %v4290 = vpop.f32.mrb[0].mxu0
    %v4291 = vadd.f32 %v4208, %v4290
    %v4292 = vpop.f32.mrb[0].mxu0
    %v4293 = vadd.f32 %v4210, %v4292
    %v4294 = vpop.f32.mrb[0].mxu0
    %v4295 = vadd.f32 %v4212, %v4294
    %v4296 = vpop.f32.mrb[0].mxu0
    %v4297 = vadd.f32 %v4214, %v4296
    %4298 = vmatprep.mubr.bf16.mxu0 0
    %4299 = vmatmul.mubr.bf16.gmra.mrb[0].mxu0 %v3141
    %v4300 = vpop.f32.mrb[0].mxu0
    %v4301 = vadd.f32 %v4218, %v4300
    %v4302 = vpop.f32.mrb[0].mxu0
    %v4303 = vadd.f32 %v4220, %v4302
    %v4304 = vpop.f32.mrb[0].mxu0
    %v4305 = vadd.f32 %v4222, %v4304
    %v4306 = vpop.f32.mrb[0].mxu0
    %v4307 = vadd.f32 %v4224, %v4306
    %4308 = vmatprep.mubr.bf16.mxu0 0
    %4309 = vmatmul.mubr.bf16.gmra.mrb[0].mxu0 %v3143
    %v4310 = vpop.f32.mrb[0].mxu0
    %v4311 = vadd.f32 %v4228, %v4310
    %v4312 = vpop.f32.mrb[0].mxu0
    %v4313 = vadd.f32 %v4230, %v4312
    %v4314 = vpop.f32.mrb[0].mxu0
    %v4315 = vadd.f32 %v4232, %v4314
    %v4316 = vpop.f32.mrb[0].mxu0
    %v4317 = vadd.f32 %v4234, %v4316
    %4318 = vmatprep.mubr.bf16.mxu0 0
    %4319 = vmatmul.mubr.bf16.gmra.mrb[0].mxu0 %v3145
    %v4320 = vpop.f32.mrb[0].mxu0
    %v4321 = vadd.f32 %v4238, %v4320
    %v4322 = vpop.f32.mrb[0].mxu0
    %v4323 = vadd.f32 %v4240, %v4322
    %v4324 = vpop.f32.mrb[0].mxu0
    %v4325 = vadd.f32 %v4242, %v4324
    %v4326 = vpop.f32.mrb[0].mxu0
    %v4327 = vadd.f32 %v4244, %v4326
    %4328 = vmatprep.mubr.bf16.mxu0 0
    %4329 = vmatmul.mubr.bf16.gmra.mrb[0].mxu0 %v3147
    %v4330 = vpop.f32.mrb[0].mxu0
    %v4331 = vadd.f32 %v4248, %v4330
    %v4332 = vpop.f32.mrb[0].mxu0
    %v4333 = vadd.f32 %v4250, %v4332
    %v4334 = vpop.f32.mrb[0].mxu0
    %v4335 = vadd.f32 %v4252, %v4334
    %v4336 = vpop.f32.mrb[0].mxu0
    %v4337 = vadd.f32 %v4254, %v4336
    %4338 = vdwg.mxu0
    %4339 = vmatprep.subr.bf16.mxu0 %v3577
    %4340 = vmatpush1.bf16.msra.mxu0 %v3576
    %4341 = vmatprep.subr.bf16.mxu0 %v3579
    %4342 = vmatpush1.bf16.msra.mxu0 %v3578
    %4343 = vmatprep.subr.bf16.mxu0 %v3581
    %4344 = vmatpush1.bf16.msra.mxu0 %v3580
    %4345 = vmatprep.subr.bf16.mxu0 %v3583
    %4346 = vmatpush1.bf16.msra.mxu0 %v3582
    %4347 = vmatprep.subr.bf16.mxu0 %v3585
    %4348 = vmatpush1.bf16.msra.mxu0 %v3584
    %4349 = vmatprep.subr.bf16.mxu0 %v3587
    %4350 = vmatpush1.bf16.msra.mxu0 %v3586
    %4351 = vmatprep.subr.bf16.mxu0 %v3589
    %4352 = vmatpush1.bf16.msra.mxu0 %v3588
    %4353 = vmatprep.subr.bf16.mxu0 %v3591
    %4354 = vmatpush1.bf16.msra.mxu0 %v3590
    %4355 = vmatprep.subr.bf16.mxu0 0
    %4356 = vmatpush1.bf16.msra.mxu0 0
    %4357 = vmatprep.subr.bf16.mxu0 0
    %4358 = vmatpush1.bf16.msra.mxu0 0
    %4359 = vmatprep.subr.bf16.mxu0 0
    %4360 = vmatpush1.bf16.msra.mxu0 0
    %4361 = vmatprep.subr.bf16.mxu0 0
    %4362 = vmatpush1.bf16.msra.mxu0 0
    %4363 = vmatprep.subr.bf16.mxu0 0
    %4364 = vmatpush1.bf16.msra.mxu0 0
    %4365 = vmatprep.subr.bf16.mxu0 0
    %4366 = vmatpush1.bf16.msra.mxu0 0
    %4367 = vmatprep.subr.bf16.mxu0 0
    %4368 = vmatpush1.bf16.msra.mxu0 0
    %4369 = vmatprep.subr.bf16.mxu0 0
    %4370 = vmatpush1.bf16.msra.mxu0 0
    %4371 = vmatprep.mubr.bf16.mxu0 0
    %4372 = vmatmul.mubr.bf16.gmra.mrb[0].mxu0 %v3141
    %v4373 = vpop.f32.mrb[0].mxu0
    %v4374 = vadd.f32 0.0, %v4373
    %v4375 = vpop.f32.mrb[0].mxu0
    %v4376 = vadd.f32 0.0, %v4375
    %v4377 = vpop.f32.mrb[0].mxu0
    %v4378 = vadd.f32 0.0, %v4377
    %v4379 = vpop.f32.mrb[0].mxu0
    %v4380 = vadd.f32 0.0, %v4379
    %4381 = vmatprep.mubr.bf16.mxu0 0
    %4382 = vmatmul.mubr.bf16.gmra.mrb[0].mxu0 %v3143
    %v4383 = vpop.f32.mrb[0].mxu0
    %v4384 = vadd.f32 0.0, %v4383
    %v4385 = vpop.f32.mrb[0].mxu0
    %v4386 = vadd.f32 0.0, %v4385
    %v4387 = vpop.f32.mrb[0].mxu0
    %v4388 = vadd.f32 0.0, %v4387
    %v4389 = vpop.f32.mrb[0].mxu0
    %v4390 = vadd.f32 0.0, %v4389
    %4391 = vmatprep.mubr.bf16.mxu0 0
    %4392 = vmatmul.mubr.bf16.gmra.mrb[0].mxu0 %v3145
    %v4393 = vpop.f32.mrb[0].mxu0
    %v4394 = vadd.f32 0.0, %v4393
    %v4395 = vpop.f32.mrb[0].mxu0
    %v4396 = vadd.f32 0.0, %v4395
    %v4397 = vpop.f32.mrb[0].mxu0
    %v4398 = vadd.f32 0.0, %v4397
    %v4399 = vpop.f32.mrb[0].mxu0
    %v4400 = vadd.f32 0.0, %v4399
    %4401 = vmatprep.mubr.bf16.mxu0 0
    %4402 = vmatmul.mubr.bf16.gmra.mrb[0].mxu0 %v3147
    %v4403 = vpop.f32.mrb[0].mxu0
    %v4404 = vadd.f32 0.0, %v4403
    %v4405 = vpop.f32.mrb[0].mxu0
    %v4406 = vadd.f32 0.0, %v4405
    %v4407 = vpop.f32.mrb[0].mxu0
    %v4408 = vadd.f32 0.0, %v4407
    %v4409 = vpop.f32.mrb[0].mxu0
    %v4410 = vadd.f32 0.0, %v4409
    %4411 = vmatprep.mubr.bf16.mxu0 0
    %4412 = vmatmul.mubr.bf16.gmra.mrb[0].mxu0 %v3149
    %v4413 = vpop.f32.mrb[0].mxu0
    %v4414 = vadd.f32 0.0, %v4413
    %v4415 = vpop.f32.mrb[0].mxu0
    %v4416 = vadd.f32 0.0, %v4415
    %v4417 = vpop.f32.mrb[0].mxu0
    %v4418 = vadd.f32 0.0, %v4417
    %v4419 = vpop.f32.mrb[0].mxu0
    %v4420 = vadd.f32 0.0, %v4419
    %4421 = vdwg.mxu0
    %v4422 = vadd.f32 %v4291, %v4374
    %v4423 = vadd.f32 %v4293, %v4376
    %v4424 = vadd.f32 %v4295, %v4378
    %v4425 = vadd.f32 %v4297, %v4380
    %v4426 = vadd.f32 %v4301, %v4384
    %v4427 = vadd.f32 %v4303, %v4386
    %v4428 = vadd.f32 %v4305, %v4388
    %v4429 = vadd.f32 %v4307, %v4390
    %v4430 = vadd.f32 %v4311, %v4394
    %v4431 = vadd.f32 %v4313, %v4396
    %v4432 = vadd.f32 %v4315, %v4398
    %v4433 = vadd.f32 %v4317, %v4400
    %v4434 = vadd.f32 %v4321, %v4404
    %v4435 = vadd.f32 %v4323, %v4406
    %v4436 = vadd.f32 %v4325, %v4408
    %v4437 = vadd.f32 %v4327, %v4410
    %v4438 = vadd.f32 %v4331, %v4414
    %v4439 = vadd.f32 %v4333, %v4416
    %v4440 = vadd.f32 %v4335, %v4418
    %v4441 = vadd.f32 %v4337, %v4420
    %4442 = vmatprep.subr.bf16.mxu0 %v3777
    %4443 = vmatpush1.bf16.msra.mxu0 %v3776
    %4444 = vmatprep.subr.bf16.mxu0 %v3779
    %4445 = vmatpush1.bf16.msra.mxu0 %v3778
    %4446 = vmatprep.subr.bf16.mxu0 %v3781
    %4447 = vmatpush1.bf16.msra.mxu0 %v3780
    %4448 = vmatprep.subr.bf16.mxu0 %v3783
    %4449 = vmatpush1.bf16.msra.mxu0 %v3782
    %4450 = vmatprep.subr.bf16.mxu0 %v3785
    %4451 = vmatpush1.bf16.msra.mxu0 %v3784
    %4452 = vmatprep.subr.bf16.mxu0 %v3787
    %4453 = vmatpush1.bf16.msra.mxu0 %v3786
    %4454 = vmatprep.subr.bf16.mxu0 %v3789
    %4455 = vmatpush1.bf16.msra.mxu0 %v3788
    %4456 = vmatprep.subr.bf16.mxu0 %v3791
    %4457 = vmatpush1.bf16.msra.mxu0 %v3790
    %4458 = vmatprep.subr.bf16.mxu0 0
    %4459 = vmatpush1.bf16.msra.mxu0 0
    %4460 = vmatprep.subr.bf16.mxu0 0
    %4461 = vmatpush1.bf16.msra.mxu0 0
    %4462 = vmatprep.subr.bf16.mxu0 0
    %4463 = vmatpush1.bf16.msra.mxu0 0
    %4464 = vmatprep.subr.bf16.mxu0 0
    %4465 = vmatpush1.bf16.msra.mxu0 0
    %4466 = vmatprep.subr.bf16.mxu0 0
    %4467 = vmatpush1.bf16.msra.mxu0 0
    %4468 = vmatprep.subr.bf16.mxu0 0
    %4469 = vmatpush1.bf16.msra.mxu0 0
    %4470 = vmatprep.subr.bf16.mxu0 0
    %4471 = vmatpush1.bf16.msra.mxu0 0
    %4472 = vmatprep.subr.bf16.mxu0 0
    %4473 = vmatpush1.bf16.msra.mxu0 0
    %4474 = vmatprep.mubr.bf16.mxu0 0
    %4475 = vmatmul.mubr.bf16.gmra.mrb[0].mxu0 %v3142
    %v4476 = vpop.f32.mrb[0].mxu0
    %v4477 = vadd.f32 0.0, %v4476
    %v4478 = vpop.f32.mrb[0].mxu0
    %v4479 = vadd.f32 0.0, %v4478
    %v4480 = vpop.f32.mrb[0].mxu0
    %v4481 = vadd.f32 0.0, %v4480
    %v4482 = vpop.f32.mrb[0].mxu0
    %v4483 = vadd.f32 0.0, %v4482
    %4484 = vmatprep.mubr.bf16.mxu0 0
    %4485 = vmatmul.mubr.bf16.gmra.mrb[0].mxu0 %v3144
    %v4486 = vpop.f32.mrb[0].mxu0
    %v4487 = vadd.f32 0.0, %v4486
    %v4488 = vpop.f32.mrb[0].mxu0
    %v4489 = vadd.f32 0.0, %v4488
    %v4490 = vpop.f32.mrb[0].mxu0
    %v4491 = vadd.f32 0.0, %v4490
    %v4492 = vpop.f32.mrb[0].mxu0
    %v4493 = vadd.f32 0.0, %v4492
    %4494 = vmatprep.mubr.bf16.mxu0 0
    %4495 = vmatmul.mubr.bf16.gmra.mrb[0].mxu0 %v3146
    %v4496 = vpop.f32.mrb[0].mxu0
    %v4497 = vadd.f32 0.0, %v4496
    %v4498 = vpop.f32.mrb[0].mxu0
    %v4499 = vadd.f32 0.0, %v4498
    %v4500 = vpop.f32.mrb[0].mxu0
    %v4501 = vadd.f32 0.0, %v4500
    %v4502 = vpop.f32.mrb[0].mxu0
    %v4503 = vadd.f32 0.0, %v4502
    %4504 = vmatprep.mubr.bf16.mxu0 0
    %4505 = vmatmul.mubr.bf16.gmra.mrb[0].mxu0 %v3148
    %v4506 = vpop.f32.mrb[0].mxu0
    %v4507 = vadd.f32 0.0, %v4506
    %v4508 = vpop.f32.mrb[0].mxu0
    %v4509 = vadd.f32 0.0, %v4508
    %v4510 = vpop.f32.mrb[0].mxu0
    %v4511 = vadd.f32 0.0, %v4510
    %v4512 = vpop.f32.mrb[0].mxu0
    %v4513 = vadd.f32 0.0, %v4512
    %4514 = vmatprep.mubr.bf16.mxu0 0
    %4515 = vmatmul.mubr.bf16.gmra.mrb[0].mxu0 %v3150
    %v4516 = vpop.f32.mrb[0].mxu0
    %v4517 = vadd.f32 0.0, %v4516
    %v4518 = vpop.f32.mrb[0].mxu0
    %v4519 = vadd.f32 0.0, %v4518
    %v4520 = vpop.f32.mrb[0].mxu0
    %v4521 = vadd.f32 0.0, %v4520
    %v4522 = vpop.f32.mrb[0].mxu0
    %v4523 = vadd.f32 0.0, %v4522
    %4524 = vdwg.mxu0
    %v4525 = vadd.f32 %v4422, %v4477
    %v4526 = vadd.f32 %v4423, %v4479
    %v4527 = vadd.f32 %v4424, %v4481
    %v4528 = vadd.f32 %v4425, %v4483
    %v4529 = vadd.f32 %v4426, %v4487
    %v4530 = vadd.f32 %v4427, %v4489
    %v4531 = vadd.f32 %v4428, %v4491
    %v4532 = vadd.f32 %v4429, %v4493
    %v4533 = vadd.f32 %v4430, %v4497
    %v4534 = vadd.f32 %v4431, %v4499
    %v4535 = vadd.f32 %v4432, %v4501
    %v4536 = vadd.f32 %v4433, %v4503
    %v4537 = vadd.f32 %v4434, %v4507
    %v4538 = vadd.f32 %v4435, %v4509
    %v4539 = vadd.f32 %v4436, %v4511
    %v4540 = vadd.f32 %v4437, %v4513
    %v4541 = vadd.f32 %v4438, %v4517
    %v4542 = vadd.f32 %v4439, %v4519
    %v4543 = vadd.f32 %v4440, %v4521
    %v4544 = vadd.f32 %v4441, %v4523
    %4545 = vmatprep.subr.bf16.mxu0 %v3977
    %4546 = vmatpush1.bf16.msra.mxu0 %v3976
    %4547 = vmatprep.subr.bf16.mxu0 %v3979
    %4548 = vmatpush1.bf16.msra.mxu0 %v3978
    %4549 = vmatprep.subr.bf16.mxu0 %v3981
    %4550 = vmatpush1.bf16.msra.mxu0 %v3980
    %4551 = vmatprep.subr.bf16.mxu0 %v3983
    %4552 = vmatpush1.bf16.msra.mxu0 %v3982
    %4553 = vmatprep.subr.bf16.mxu0 %v3985
    %4554 = vmatpush1.bf16.msra.mxu0 %v3984
    %4555 = vmatprep.subr.bf16.mxu0 %v3987
    %4556 = vmatpush1.bf16.msra.mxu0 %v3986
    %4557 = vmatprep.subr.bf16.mxu0 %v3989
    %4558 = vmatpush1.bf16.msra.mxu0 %v3988
    %4559 = vmatprep.subr.bf16.mxu0 %v3991
    %4560 = vmatpush1.bf16.msra.mxu0 %v3990
    %4561 = vmatprep.subr.bf16.mxu0 0
    %4562 = vmatpush1.bf16.msra.mxu0 0
    %4563 = vmatprep.subr.bf16.mxu0 0
    %4564 = vmatpush1.bf16.msra.mxu0 0
    %4565 = vmatprep.subr.bf16.mxu0 0
    %4566 = vmatpush1.bf16.msra.mxu0 0
    %4567 = vmatprep.subr.bf16.mxu0 0
    %4568 = vmatpush1.bf16.msra.mxu0 0
    %4569 = vmatprep.subr.bf16.mxu0 0
    %4570 = vmatpush1.bf16.msra.mxu0 0
    %4571 = vmatprep.subr.bf16.mxu0 0
    %4572 = vmatpush1.bf16.msra.mxu0 0
    %4573 = vmatprep.subr.bf16.mxu0 0
    %4574 = vmatpush1.bf16.msra.mxu0 0
    %4575 = vmatprep.subr.bf16.mxu0 0
    %4576 = vmatpush1.bf16.msra.mxu0 0
    %4577 = vmatprep.mubr.bf16.mxu0 0
    %4578 = vmatmul.mubr.bf16.gmra.mrb[0].mxu0 %v3143
    %v4579 = vpop.f32.mrb[0].mxu0
    %v4580 = vadd.f32 0.0, %v4579
    %v4581 = vpop.f32.mrb[0].mxu0
    %v4582 = vadd.f32 0.0, %v4581
    %v4583 = vpop.f32.mrb[0].mxu0
    %v4584 = vadd.f32 0.0, %v4583
    %v4585 = vpop.f32.mrb[0].mxu0
    %v4586 = vadd.f32 0.0, %v4585
    %4587 = vmatprep.mubr.bf16.mxu0 0
    %4588 = vmatmul.mubr.bf16.gmra.mrb[0].mxu0 %v3145
    %v4589 = vpop.f32.mrb[0].mxu0
    %v4590 = vadd.f32 0.0, %v4589
    %v4591 = vpop.f32.mrb[0].mxu0
    %v4592 = vadd.f32 0.0, %v4591
    %v4593 = vpop.f32.mrb[0].mxu0
    %v4594 = vadd.f32 0.0, %v4593
    %v4595 = vpop.f32.mrb[0].mxu0
    %v4596 = vadd.f32 0.0, %v4595
    %4597 = vmatprep.mubr.bf16.mxu0 0
    %4598 = vmatmul.mubr.bf16.gmra.mrb[0].mxu0 %v3147
    %v4599 = vpop.f32.mrb[0].mxu0
    %v4600 = vadd.f32 0.0, %v4599
    %v4601 = vpop.f32.mrb[0].mxu0
    %v4602 = vadd.f32 0.0, %v4601
    %v4603 = vpop.f32.mrb[0].mxu0
    %v4604 = vadd.f32 0.0, %v4603
    %v4605 = vpop.f32.mrb[0].mxu0
    %v4606 = vadd.f32 0.0, %v4605
    %4607 = vmatprep.mubr.bf16.mxu0 0
    %4608 = vmatmul.mubr.bf16.gmra.mrb[0].mxu0 %v3149
    %v4609 = vpop.f32.mrb[0].mxu0
    %v4610 = vadd.f32 0.0, %v4609
    %v4611 = vpop.f32.mrb[0].mxu0
    %v4612 = vadd.f32 0.0, %v4611
    %v4613 = vpop.f32.mrb[0].mxu0
    %v4614 = vadd.f32 0.0, %v4613
    %v4615 = vpop.f32.mrb[0].mxu0
    %v4616 = vadd.f32 0.0, %v4615
    %4617 = vmatprep.mubr.bf16.mxu0 0
    %4618 = vmatmul.mubr.bf16.gmra.mrb[0].mxu0 %v3151
    %v4619 = vpop.f32.mrb[0].mxu0
    %v4620 = vadd.f32 0.0, %v4619
    %v4621 = vpop.f32.mrb[0].mxu0
    %v4622 = vadd.f32 0.0, %v4621
    %v4623 = vpop.f32.mrb[0].mxu0
    %v4624 = vadd.f32 0.0, %v4623
    %v4625 = vpop.f32.mrb[0].mxu0
    %v4626 = vadd.f32 0.0, %v4625
    %4627 = vdwg.mxu0
    %v4628 = vadd.f32 %v4525, %v4580
    %v4629 = vadd.f32 %v4526, %v4582
    %v4630 = vadd.f32 %v4527, %v4584
    %v4631 = vadd.f32 %v4528, %v4586
    %v4632 = vadd.f32 %v4529, %v4590
    %v4633 = vadd.f32 %v4530, %v4592
    %v4634 = vadd.f32 %v4531, %v4594
    %v4635 = vadd.f32 %v4532, %v4596
    %v4636 = vadd.f32 %v4533, %v4600
    %v4637 = vadd.f32 %v4534, %v4602
    %v4638 = vadd.f32 %v4535, %v4604
    %v4639 = vadd.f32 %v4536, %v4606
    %v4640 = vadd.f32 %v4537, %v4610
    %v4641 = vadd.f32 %v4538, %v4612
    %v4642 = vadd.f32 %v4539, %v4614
    %v4643 = vadd.f32 %v4540, %v4616
    %v4644 = vadd.f32 %v4541, %v4620
    %v4645 = vadd.f32 %v4542, %v4622
    %v4646 = vadd.f32 %v4543, %v4624
    %v4647 = vadd.f32 %v4544, %v4626
    %v4648 = vadd.f32 %v4628, %v4116
    %v4649 = vadd.f32 %v4629, %v4120
    %v4650 = vadd.f32 %v4630, %v4116
    %v4651 = vadd.f32 %v4631, %v4120
    %v4652 = vadd.f32 %v4632, %v4116
    %v4653 = vadd.f32 %v4633, %v4120
    %v4654 = vadd.f32 %v4634, %v4116
    %v4655 = vadd.f32 %v4635, %v4120
    %v4656 = vadd.f32 %v4636, %v4116
    %v4657 = vadd.f32 %v4637, %v4120
    %v4658 = vadd.f32 %v4638, %v4116
    %v4659 = vadd.f32 %v4639, %v4120
    %v4660 = vadd.f32 %v4640, %v4116
    %v4661 = vadd.f32 %v4641, %v4120
    %v4662 = vadd.f32 %v4642, %v4116
    %v4663 = vadd.f32 %v4643, %v4120
    %v4664 = vadd.f32 %v4644, %v4116
    %v4665 = vadd.f32 %v4645, %v4120
    %v4666 = vadd.f32 %v4646, %v4116
    %v4667 = vadd.f32 %v4647, %v4120
    %v4668 = vmax.f32 %v4648, 0.0
    %v4669 = vmax.f32 %v4649, 0.0
    %v4670 = vmax.f32 %v4650, 0.0
    %v4671 = vmax.f32 %v4651, 0.0
    %v4672 = vmax.f32 %v4652, 0.0
    %v4673 = vmax.f32 %v4653, 0.0
    %v4674 = vmax.f32 %v4654, 0.0
    %v4675 = vmax.f32 %v4655, 0.0
    %v4676 = vmax.f32 %v4656, 0.0
    %v4677 = vmax.f32 %v4657, 0.0
    %v4678 = vmax.f32 %v4658, 0.0
    %v4679 = vmax.f32 %v4659, 0.0
    %v4680 = vmax.f32 %v4660, 0.0
    %v4681 = vmax.f32 %v4661, 0.0
    %v4682 = vmax.f32 %v4662, 0.0
    %v4683 = vmax.f32 %v4663, 0.0
    %v4684 = vmax.f32 %v4664, 0.0
    %v4685 = vmax.f32 %v4665, 0.0
    %v4686 = vmax.f32 %v4666, 0.0
    %v4687 = vmax.f32 %v4667, 0.0
    %v4688 = vmax.f32 %v4668, %v4669
    %v4689 = vmax.f32 %v4670, %v4671
    %v4690 = vmax.f32 %v4672, %v4673
    %v4691 = vmax.f32 %v4674, %v4675
    %v4692 = vmax.f32 %v4676, %v4677
    %v4693 = vmax.f32 %v4678, %v4679
    %v4694 = vmax.f32 %v4680, %v4681
    %v4695 = vmax.f32 %v4682, %v4683
    %v4696 = vmax.f32 %v4684, %v4685
    %v4697 = vmax.f32 %v4686, %v4687
    %v4698 = vmax.f32 %v4163, %v4688
    %v4699 = vmax.f32 %v4164, %v4689
    %v4700 = vmax.f32 %v4165, %v4690
    %v4701 = vmax.f32 %v4166, %v4691
    %v4702 = vmax.f32 %v4167, %v4692
    %v4703 = vmax.f32 %v4168, %v4693
    %v4704 = vmax.f32 %v4169, %v4694
    %v4705 = vmax.f32 %v4170, %v4695
    %v4706 = vmax.f32 %v4171, %v4696
    %v4707 = vmax.f32 %v4172, %v4697
    %v4708 = vpack.c.bf16 %v4699, %v4698
    %v4709 = vpack.c.bf16 %v4701, %v4700
    %v4710 = vpack.c.bf16 %v4703, %v4702
    %v4711 = vpack.c.bf16 %v4705, %v4704
    %v4712 = vpack.c.bf16 %v4707, %v4706
    %v4713 = vld [vmem:[#allocation4] sm:$0xf]
    %v4714 = vld [vmem:[#allocation4 + $0x4] sm:$0xf]
    %v4715 = vld [vmem:[#allocation4 + $0x8] sm:$0xf]
    %v4716 = vld [vmem:[#allocation4 + $0xc] sm:$0xf]
    %v4717 = vld [vmem:[#allocation4 + $0x10] sm:$0xf]
    %v4718 = vld [vmem:[#allocation4 + $0x14] sm:$0xf]
    %v4719 = vld [vmem:[#allocation4 + $0x18] sm:$0xf]
    %v4720 = vld [vmem:[#allocation4 + $0x1c] sm:$0xf]
    %v4721 = vld [vmem:[#allocation4 + $0x20] sm:$0xf]
    %v4722 = vld [vmem:[#allocation4 + $0x24] sm:$0xf]
    %v4723 = vld [vmem:[#allocation4 + $0x28] sm:$0xf]
    %v4724 = vld [vmem:[#allocation4 + $0x2c] sm:$0xf]
    %v4725 = vld [vmem:[#allocation4 + $0x30] sm:$0xf]
    %v4726 = vld [vmem:[#allocation4 + $0x34] sm:$0xf]
    %v4727 = vld [vmem:[#allocation4 + $0x38] sm:$0xf]
    %v4728 = vld [vmem:[#allocation4 + $0x3c] sm:$0xf]
    %s4729 = scalar_lea.vmem [#allocation4], 64
    %v4730 = vld [vmem:[%s4729] sm:$0xf]
    %v4731 = vld [vmem:[%s4729 + $0x4] sm:$0xf]
    %v4732 = vld [vmem:[%s4729 + $0x8] sm:$0xf]
    %v4733 = vld [vmem:[%s4729 + $0xc] sm:$0xf]
    %v4734 = vld [vmem:[%s4729 + $0x10] sm:$0xf]
    %v4735 = vld [vmem:[%s4729 + $0x14] sm:$0xf]
    %v4736 = vld [vmem:[%s4729 + $0x18] sm:$0xf]
    %v4737 = vld [vmem:[%s4729 + $0x1c] sm:$0xf]
    %v4738 = vld [vmem:[%s4729 + $0x20] sm:$0xf]
    %v4739 = vld [vmem:[%s4729 + $0x24] sm:$0xf]
    %v4740 = vld [vmem:[%s4729 + $0x28] sm:$0xf]
    %v4741 = vld [vmem:[%s4729 + $0x2c] sm:$0xf]
    %v4742 = vld [vmem:[%s4729 + $0x30] sm:$0xf]
    %v4743 = vld [vmem:[%s4729 + $0x34] sm:$0xf]
    %v4744 = vld [vmem:[%s4729 + $0x38] sm:$0xf]
    %v4745 = vld [vmem:[%s4729 + $0x3c] sm:$0xf]
    %v4762 = vunpack.c.l.b16 %v4730
    %v4763 = vunpack.c.l.b16 %v4731
    %v4764 = vunpack.c.l.b16 %v4732
    %v4765 = vunpack.c.l.b16 %v4733
    %v4766 = vunpack.c.l.b16 %v4734
    %v4767 = vunpack.c.l.b16 %v4735
    %v4768 = vunpack.c.l.b16 %v4736
    %v4769 = vunpack.c.l.b16 %v4737
    %v4770 = vunpack.c.l.b16 %v4738
    %v4771 = vunpack.c.l.b16 %v4739
    %v4772 = vunpack.c.l.b16 %v4740
    %v4773 = vunpack.c.l.b16 %v4741
    %v4774 = vunpack.c.l.b16 %v4742
    %v4775 = vunpack.c.l.b16 %v4743
    %v4776 = vunpack.c.l.b16 %v4744
    %v4777 = vunpack.c.l.b16 %v4745
    %v4778 = vpack.c.b16 %v4763, %v4762
    %v4779 = vpack.c.b16 %v4765, %v4764
    %v4780 = vpack.c.b16 %v4767, %v4766
    %v4781 = vpack.c.b16 %v4769, %v4768
    %v4782 = vpack.c.b16 %v4771, %v4770
    %v4783 = vpack.c.b16 %v4773, %v4772
    %v4784 = vpack.c.b16 %v4775, %v4774
    %v4785 = vpack.c.b16 %v4777, %v4776
    %4794 = vmatprep.subr.bf16.mxu0 0
    %4795 = vmatpush1.bf16.msra.mxu0 %v4778
    %4796 = vmatprep.subr.bf16.mxu0 0
    %4797 = vmatpush1.bf16.msra.mxu0 %v4779
    %4798 = vmatprep.subr.bf16.mxu0 0
    %4799 = vmatpush1.bf16.msra.mxu0 %v4780
    %4800 = vmatprep.subr.bf16.mxu0 0
    %4801 = vmatpush1.bf16.msra.mxu0 %v4781
    %4802 = vmatprep.subr.bf16.mxu0 0
    %4803 = vmatpush1.bf16.msra.mxu0 %v4782
    %4804 = vmatprep.subr.bf16.mxu0 0
    %4805 = vmatpush1.bf16.msra.mxu0 %v4783
    %4806 = vmatprep.subr.bf16.mxu0 0
    %4807 = vmatpush1.bf16.msra.mxu0 %v4784
    %4808 = vmatprep.subr.bf16.mxu0 0
    %4809 = vmatpush1.bf16.msra.mxu0 %v4785
    %4810 = vmatprep.subr.bf16.mxu0 0
    %4811 = vmatpush1.bf16.msra.mxu0 0
    %4812 = vmatprep.subr.bf16.mxu0 0
    %4813 = vmatpush1.bf16.msra.mxu0 0
    %4814 = vmatprep.subr.bf16.mxu0 0
    %4815 = vmatpush1.bf16.msra.mxu0 0
    %4816 = vmatprep.subr.bf16.mxu0 0
    %4817 = vmatpush1.bf16.msra.mxu0 0
    %4818 = vmatprep.subr.bf16.mxu0 0
    %4819 = vmatpush1.bf16.msra.mxu0 0
    %4820 = vmatprep.subr.bf16.mxu0 0
    %4821 = vmatpush1.bf16.msra.mxu0 0
    %4822 = vmatprep.subr.bf16.mxu0 0
    %4823 = vmatpush1.bf16.msra.mxu0 0
    %4824 = vmatprep.subr.bf16.mxu0 0
    %4825 = vmatpush1.bf16.msra.mxu0 0
    %4826 = vmatprep.mubr.bf16.mxu0 0
    %4827 = vmatmul.mubr.bf16.gmra.mrb[0].mxu0 %v4709
    %v4828 = vpop.f32.mrb[0].mxu0
    %v4829 = vadd.f32 0.0, %v4828
    %v4830 = vpop.f32.mrb[0].mxu0
    %v4831 = vpop.f32.mrb[0].mxu0
    %v4832 = vadd.f32 0.0, %v4831
    %v4833 = vpop.f32.mrb[0].mxu0
    %4834 = vdwg.mxu0
    %v4851 = vunpack.c.l.b16 %v4713
    %v4852 = vunpack.c.l.b16 %v4714
    %v4853 = vunpack.c.l.b16 %v4715
    %v4854 = vunpack.c.l.b16 %v4716
    %v4855 = vunpack.c.l.b16 %v4717
    %v4856 = vunpack.c.l.b16 %v4718
    %v4857 = vunpack.c.l.b16 %v4719
    %v4858 = vunpack.c.l.b16 %v4720
    %v4859 = vunpack.c.l.b16 %v4721
    %v4860 = vunpack.c.l.b16 %v4722
    %v4861 = vunpack.c.l.b16 %v4723
    %v4862 = vunpack.c.l.b16 %v4724
    %v4863 = vunpack.c.l.b16 %v4725
    %v4864 = vunpack.c.l.b16 %v4726
    %v4865 = vunpack.c.l.b16 %v4727
    %v4866 = vunpack.c.l.b16 %v4728
    %v4867 = vpack.c.b16 %v4852, %v4851
    %v4868 = vpack.c.b16 %v4854, %v4853
    %v4869 = vpack.c.b16 %v4856, %v4855
    %v4870 = vpack.c.b16 %v4858, %v4857
    %v4871 = vpack.c.b16 %v4860, %v4859
    %v4872 = vpack.c.b16 %v4862, %v4861
    %v4873 = vpack.c.b16 %v4864, %v4863
    %v4874 = vpack.c.b16 %v4866, %v4865
    %4883 = vmatprep.subr.bf16.mxu0 0
    %4884 = vmatpush1.bf16.msra.mxu0 %v4867
    %4885 = vmatprep.subr.bf16.mxu0 0
    %4886 = vmatpush1.bf16.msra.mxu0 %v4868
    %4887 = vmatprep.subr.bf16.mxu0 0
    %4888 = vmatpush1.bf16.msra.mxu0 %v4869
    %4889 = vmatprep.subr.bf16.mxu0 0
    %4890 = vmatpush1.bf16.msra.mxu0 %v4870
    %4891 = vmatprep.subr.bf16.mxu0 0
    %4892 = vmatpush1.bf16.msra.mxu0 %v4871
    %4893 = vmatprep.subr.bf16.mxu0 0
    %4894 = vmatpush1.bf16.msra.mxu0 %v4872
    %4895 = vmatprep.subr.bf16.mxu0 0
    %4896 = vmatpush1.bf16.msra.mxu0 %v4873
    %4897 = vmatprep.subr.bf16.mxu0 0
    %4898 = vmatpush1.bf16.msra.mxu0 %v4874
    %4899 = vmatprep.subr.bf16.mxu0 0
    %4900 = vmatpush1.bf16.msra.mxu0 0
    %4901 = vmatprep.subr.bf16.mxu0 0
    %4902 = vmatpush1.bf16.msra.mxu0 0
    %4903 = vmatprep.subr.bf16.mxu0 0
    %4904 = vmatpush1.bf16.msra.mxu0 0
    %4905 = vmatprep.subr.bf16.mxu0 0
    %4906 = vmatpush1.bf16.msra.mxu0 0
    %4907 = vmatprep.subr.bf16.mxu0 0
    %4908 = vmatpush1.bf16.msra.mxu0 0
    %4909 = vmatprep.subr.bf16.mxu0 0
    %4910 = vmatpush1.bf16.msra.mxu0 0
    %4911 = vmatprep.subr.bf16.mxu0 0
    %4912 = vmatpush1.bf16.msra.mxu0 0
    %4913 = vmatprep.subr.bf16.mxu0 0
    %4914 = vmatpush1.bf16.msra.mxu0 0
    %4915 = vmatprep.mubr.bf16.mxu0 0
    %4916 = vmatmul.mubr.bf16.gmra.mrb[0].mxu0 %v4708
    %v4917 = vpop.f32.mrb[0].mxu0
    %v4918 = vadd.f32 %v4829, %v4917
    %v4919 = vpop.f32.mrb[0].mxu0
    %v4920 = vpop.f32.mrb[0].mxu0
    %v4921 = vadd.f32 %v4832, %v4920
    %v4922 = vpop.f32.mrb[0].mxu0
    %4923 = vdwg.mxu0
    %s4924 = scalar_lea.vmem [#allocation4], 128
    %v4925 = vld [vmem:[%s4924] sm:$0xf]
    %v4926 = vld [vmem:[%s4924 + $0x4] sm:$0xf]
    %v4927 = vld [vmem:[%s4924 + $0x8] sm:$0xf]
    %v4928 = vld [vmem:[%s4924 + $0xc] sm:$0xf]
    %v4929 = vld [vmem:[%s4924 + $0x10] sm:$0xf]
    %v4930 = vld [vmem:[%s4924 + $0x14] sm:$0xf]
    %v4931 = vld [vmem:[%s4924 + $0x18] sm:$0xf]
    %v4932 = vld [vmem:[%s4924 + $0x1c] sm:$0xf]
    %v4933 = vld [vmem:[%s4924 + $0x20] sm:$0xf]
    %v4934 = vld [vmem:[%s4924 + $0x24] sm:$0xf]
    %v4935 = vld [vmem:[%s4924 + $0x28] sm:$0xf]
    %v4936 = vld [vmem:[%s4924 + $0x2c] sm:$0xf]
    %v4937 = vld [vmem:[%s4924 + $0x30] sm:$0xf]
    %v4938 = vld [vmem:[%s4924 + $0x34] sm:$0xf]
    %v4939 = vld [vmem:[%s4924 + $0x38] sm:$0xf]
    %v4940 = vld [vmem:[%s4924 + $0x3c] sm:$0xf]
    %v4957 = vunpack.c.l.b16 %v4925
    %v4958 = vunpack.c.l.b16 %v4926
    %v4959 = vunpack.c.l.b16 %v4927
    %v4960 = vunpack.c.l.b16 %v4928
    %v4961 = vunpack.c.l.b16 %v4929
    %v4962 = vunpack.c.l.b16 %v4930
    %v4963 = vunpack.c.l.b16 %v4931
    %v4964 = vunpack.c.l.b16 %v4932
    %v4965 = vunpack.c.l.b16 %v4933
    %v4966 = vunpack.c.l.b16 %v4934
    %v4967 = vunpack.c.l.b16 %v4935
    %v4968 = vunpack.c.l.b16 %v4936
    %v4969 = vunpack.c.l.b16 %v4937
    %v4970 = vunpack.c.l.b16 %v4938
    %v4971 = vunpack.c.l.b16 %v4939
    %v4972 = vunpack.c.l.b16 %v4940
    %v4973 = vpack.c.b16 %v4958, %v4957
    %v4974 = vpack.c.b16 %v4960, %v4959
    %v4975 = vpack.c.b16 %v4962, %v4961
    %v4976 = vpack.c.b16 %v4964, %v4963
    %v4977 = vpack.c.b16 %v4966, %v4965
    %v4978 = vpack.c.b16 %v4968, %v4967
    %v4979 = vpack.c.b16 %v4970, %v4969
    %v4980 = vpack.c.b16 %v4972, %v4971
    %4989 = vmatprep.subr.bf16.mxu0 0
    %4990 = vmatpush1.bf16.msra.mxu0 %v4973
    %4991 = vmatprep.subr.bf16.mxu0 0
    %4992 = vmatpush1.bf16.msra.mxu0 %v4974
    %4993 = vmatprep.subr.bf16.mxu0 0
    %4994 = vmatpush1.bf16.msra.mxu0 %v4975
    %4995 = vmatprep.subr.bf16.mxu0 0
    %4996 = vmatpush1.bf16.msra.mxu0 %v4976
    %4997 = vmatprep.subr.bf16.mxu0 0
    %4998 = vmatpush1.bf16.msra.mxu0 %v4977
    %4999 = vmatprep.subr.bf16.mxu0 0
    %5000 = vmatpush1.bf16.msra.mxu0 %v4978
    %5001 = vmatprep.subr.bf16.mxu0 0
    %5002 = vmatpush1.bf16.msra.mxu0 %v4979
    %5003 = vmatprep.subr.bf16.mxu0 0
    %5004 = vmatpush1.bf16.msra.mxu0 %v4980
    %5005 = vmatprep.subr.bf16.mxu0 0
    %5006 = vmatpush1.bf16.msra.mxu0 0
    %5007 = vmatprep.subr.bf16.mxu0 0
    %5008 = vmatpush1.bf16.msra.mxu0 0
    %5009 = vmatprep.subr.bf16.mxu0 0
    %5010 = vmatpush1.bf16.msra.mxu0 0
    %5011 = vmatprep.subr.bf16.mxu0 0
    %5012 = vmatpush1.bf16.msra.mxu0 0
    %5013 = vmatprep.subr.bf16.mxu0 0
    %5014 = vmatpush1.bf16.msra.mxu0 0
    %5015 = vmatprep.subr.bf16.mxu0 0
    %5016 = vmatpush1.bf16.msra.mxu0 0
    %5017 = vmatprep.subr.bf16.mxu0 0
    %5018 = vmatpush1.bf16.msra.mxu0 0
    %5019 = vmatprep.subr.bf16.mxu0 0
    %5020 = vmatpush1.bf16.msra.mxu0 0
    %5021 = vmatprep.mubr.bf16.mxu0 0
    %5022 = vmatmul.mubr.bf16.gmra.mrb[0].mxu0 %v4710
    %v5023 = vpop.f32.mrb[0].mxu0
    %v5024 = vadd.f32 0.0, %v5023
    %v5025 = vpop.f32.mrb[0].mxu0
    %v5026 = vpop.f32.mrb[0].mxu0
    %v5027 = vadd.f32 0.0, %v5026
    %v5028 = vpop.f32.mrb[0].mxu0
    %5029 = vdwg.mxu0
    %v5030 = vadd.f32 %v4918, %v5024
    %v5031 = vadd.f32 %v4921, %v5027
    %s5032 = scalar_lea.vmem [#allocation4], 192
    %v5033 = vld [vmem:[%s5032] sm:$0xf]
    %v5034 = vld [vmem:[%s5032 + $0x4] sm:$0xf]
    %v5035 = vld [vmem:[%s5032 + $0x8] sm:$0xf]
    %v5036 = vld [vmem:[%s5032 + $0xc] sm:$0xf]
    %v5037 = vld [vmem:[%s5032 + $0x10] sm:$0xf]
    %v5038 = vld [vmem:[%s5032 + $0x14] sm:$0xf]
    %v5039 = vld [vmem:[%s5032 + $0x18] sm:$0xf]
    %v5040 = vld [vmem:[%s5032 + $0x1c] sm:$0xf]
    %v5041 = vld [vmem:[%s5032 + $0x20] sm:$0xf]
    %v5042 = vld [vmem:[%s5032 + $0x24] sm:$0xf]
    %v5043 = vld [vmem:[%s5032 + $0x28] sm:$0xf]
    %v5044 = vld [vmem:[%s5032 + $0x2c] sm:$0xf]
    %v5045 = vld [vmem:[%s5032 + $0x30] sm:$0xf]
    %v5046 = vld [vmem:[%s5032 + $0x34] sm:$0xf]
    %v5047 = vld [vmem:[%s5032 + $0x38] sm:$0xf]
    %v5048 = vld [vmem:[%s5032 + $0x3c] sm:$0xf]
    %v5065 = vunpack.c.l.b16 %v5033
    %v5066 = vunpack.c.l.b16 %v5034
    %v5067 = vunpack.c.l.b16 %v5035
    %v5068 = vunpack.c.l.b16 %v5036
    %v5069 = vunpack.c.l.b16 %v5037
    %v5070 = vunpack.c.l.b16 %v5038
    %v5071 = vunpack.c.l.b16 %v5039
    %v5072 = vunpack.c.l.b16 %v5040
    %v5073 = vunpack.c.l.b16 %v5041
    %v5074 = vunpack.c.l.b16 %v5042
    %v5075 = vunpack.c.l.b16 %v5043
    %v5076 = vunpack.c.l.b16 %v5044
    %v5077 = vunpack.c.l.b16 %v5045
    %v5078 = vunpack.c.l.b16 %v5046
    %v5079 = vunpack.c.l.b16 %v5047
    %v5080 = vunpack.c.l.b16 %v5048
    %v5081 = vpack.c.b16 %v5066, %v5065
    %v5082 = vpack.c.b16 %v5068, %v5067
    %v5083 = vpack.c.b16 %v5070, %v5069
    %v5084 = vpack.c.b16 %v5072, %v5071
    %v5085 = vpack.c.b16 %v5074, %v5073
    %v5086 = vpack.c.b16 %v5076, %v5075
    %v5087 = vpack.c.b16 %v5078, %v5077
    %v5088 = vpack.c.b16 %v5080, %v5079
    %5097 = vmatprep.subr.bf16.mxu0 0
    %5098 = vmatpush1.bf16.msra.mxu0 %v5081
    %5099 = vmatprep.subr.bf16.mxu0 0
    %5100 = vmatpush1.bf16.msra.mxu0 %v5082
    %5101 = vmatprep.subr.bf16.mxu0 0
    %5102 = vmatpush1.bf16.msra.mxu0 %v5083
    %5103 = vmatprep.subr.bf16.mxu0 0
    %5104 = vmatpush1.bf16.msra.mxu0 %v5084
    %5105 = vmatprep.subr.bf16.mxu0 0
    %5106 = vmatpush1.bf16.msra.mxu0 %v5085
    %5107 = vmatprep.subr.bf16.mxu0 0
    %5108 = vmatpush1.bf16.msra.mxu0 %v5086
    %5109 = vmatprep.subr.bf16.mxu0 0
    %5110 = vmatpush1.bf16.msra.mxu0 %v5087
    %5111 = vmatprep.subr.bf16.mxu0 0
    %5112 = vmatpush1.bf16.msra.mxu0 %v5088
    %5113 = vmatprep.subr.bf16.mxu0 0
    %5114 = vmatpush1.bf16.msra.mxu0 0
    %5115 = vmatprep.subr.bf16.mxu0 0
    %5116 = vmatpush1.bf16.msra.mxu0 0
    %5117 = vmatprep.subr.bf16.mxu0 0
    %5118 = vmatpush1.bf16.msra.mxu0 0
    %5119 = vmatprep.subr.bf16.mxu0 0
    %5120 = vmatpush1.bf16.msra.mxu0 0
    %5121 = vmatprep.subr.bf16.mxu0 0
    %5122 = vmatpush1.bf16.msra.mxu0 0
    %5123 = vmatprep.subr.bf16.mxu0 0
    %5124 = vmatpush1.bf16.msra.mxu0 0
    %5125 = vmatprep.subr.bf16.mxu0 0
    %5126 = vmatpush1.bf16.msra.mxu0 0
    %5127 = vmatprep.subr.bf16.mxu0 0
    %5128 = vmatpush1.bf16.msra.mxu0 0
    %5129 = vmatprep.mubr.bf16.mxu0 0
    %5130 = vmatmul.mubr.bf16.gmra.mrb[0].mxu0 %v4711
    %v5131 = vpop.f32.mrb[0].mxu0
    %v5132 = vadd.f32 0.0, %v5131
    %v5133 = vpop.f32.mrb[0].mxu0
    %v5134 = vpop.f32.mrb[0].mxu0
    %v5135 = vadd.f32 0.0, %v5134
    %v5136 = vpop.f32.mrb[0].mxu0
    %5137 = vdwg.mxu0
    %v5138 = vadd.f32 %v5030, %v5132
    %v5139 = vadd.f32 %v5031, %v5135
    %s5140 = scalar_lea.vmem [#allocation4], 256
    %v5141 = vld [vmem:[%s5140] sm:$0xf]
    %v5142 = vld [vmem:[%s5140 + $0x4] sm:$0xf]
    %v5143 = vld [vmem:[%s5140 + $0x8] sm:$0xf]
    %v5144 = vld [vmem:[%s5140 + $0xc] sm:$0xf]
    %v5145 = vld [vmem:[%s5140 + $0x10] sm:$0xf]
    %v5146 = vld [vmem:[%s5140 + $0x14] sm:$0xf]
    %v5147 = vld [vmem:[%s5140 + $0x18] sm:$0xf]
    %v5148 = vld [vmem:[%s5140 + $0x1c] sm:$0xf]
    %v5149 = vld [vmem:[%s5140 + $0x20] sm:$0xf]
    %v5150 = vld [vmem:[%s5140 + $0x24] sm:$0xf]
    %v5151 = vld [vmem:[%s5140 + $0x28] sm:$0xf]
    %v5152 = vld [vmem:[%s5140 + $0x2c] sm:$0xf]
    %v5153 = vld [vmem:[%s5140 + $0x30] sm:$0xf]
    %v5154 = vld [vmem:[%s5140 + $0x34] sm:$0xf]
    %v5155 = vld [vmem:[%s5140 + $0x38] sm:$0xf]
    %v5156 = vld [vmem:[%s5140 + $0x3c] sm:$0xf]
    %v5173 = vunpack.c.l.b16 %v5141
    %v5174 = vunpack.c.l.b16 %v5142
    %v5175 = vunpack.c.l.b16 %v5143
    %v5176 = vunpack.c.l.b16 %v5144
    %v5177 = vunpack.c.l.b16 %v5145
    %v5178 = vunpack.c.l.b16 %v5146
    %v5179 = vunpack.c.l.b16 %v5147
    %v5180 = vunpack.c.l.b16 %v5148
    %v5181 = vunpack.c.l.b16 %v5149
    %v5182 = vunpack.c.l.b16 %v5150
    %v5183 = vunpack.c.l.b16 %v5151
    %v5184 = vunpack.c.l.b16 %v5152
    %v5185 = vunpack.c.l.b16 %v5153
    %v5186 = vunpack.c.l.b16 %v5154
    %v5187 = vunpack.c.l.b16 %v5155
    %v5188 = vunpack.c.l.b16 %v5156
    %v5189 = vpack.c.b16 %v5174, %v5173
    %v5190 = vpack.c.b16 %v5176, %v5175
    %v5191 = vpack.c.b16 %v5178, %v5177
    %v5192 = vpack.c.b16 %v5180, %v5179
    %v5193 = vpack.c.b16 %v5182, %v5181
    %v5194 = vpack.c.b16 %v5184, %v5183
    %v5195 = vpack.c.b16 %v5186, %v5185
    %v5196 = vpack.c.b16 %v5188, %v5187
    %5205 = vmatprep.subr.bf16.mxu0 0
    %5206 = vmatpush1.bf16.msra.mxu0 %v5189
    %5207 = vmatprep.subr.bf16.mxu0 0
    %5208 = vmatpush1.bf16.msra.mxu0 %v5190
    %5209 = vmatprep.subr.bf16.mxu0 0
    %5210 = vmatpush1.bf16.msra.mxu0 %v5191
    %5211 = vmatprep.subr.bf16.mxu0 0
    %5212 = vmatpush1.bf16.msra.mxu0 %v5192
    %5213 = vmatprep.subr.bf16.mxu0 0
    %5214 = vmatpush1.bf16.msra.mxu0 %v5193
    %5215 = vmatprep.subr.bf16.mxu0 0
    %5216 = vmatpush1.bf16.msra.mxu0 %v5194
    %5217 = vmatprep.subr.bf16.mxu0 0
    %5218 = vmatpush1.bf16.msra.mxu0 %v5195
    %5219 = vmatprep.subr.bf16.mxu0 0
    %5220 = vmatpush1.bf16.msra.mxu0 %v5196
    %5221 = vmatprep.subr.bf16.mxu0 0
    %5222 = vmatpush1.bf16.msra.mxu0 0
    %5223 = vmatprep.subr.bf16.mxu0 0
    %5224 = vmatpush1.bf16.msra.mxu0 0
    %5225 = vmatprep.subr.bf16.mxu0 0
    %5226 = vmatpush1.bf16.msra.mxu0 0
    %5227 = vmatprep.subr.bf16.mxu0 0
    %5228 = vmatpush1.bf16.msra.mxu0 0
    %5229 = vmatprep.subr.bf16.mxu0 0
    %5230 = vmatpush1.bf16.msra.mxu0 0
    %5231 = vmatprep.subr.bf16.mxu0 0
    %5232 = vmatpush1.bf16.msra.mxu0 0
    %5233 = vmatprep.subr.bf16.mxu0 0
    %5234 = vmatpush1.bf16.msra.mxu0 0
    %5235 = vmatprep.subr.bf16.mxu0 0
    %5236 = vmatpush1.bf16.msra.mxu0 0
    %5237 = vmatprep.mubr.bf16.mxu0 0
    %5238 = vmatmul.mubr.bf16.gmra.mrb[0].mxu0 %v4712
    %v5239 = vpop.f32.mrb[0].mxu0
    %v5240 = vadd.f32 0.0, %v5239
    %v5241 = vpop.f32.mrb[0].mxu0
    %v5242 = vpop.f32.mrb[0].mxu0
    %v5243 = vadd.f32 0.0, %v5242
    %v5244 = vpop.f32.mrb[0].mxu0
    %5245 = vdwg.mxu0
    %v5246 = vadd.f32 %v5138, %v5240
    %v5247 = vadd.f32 %v5139, %v5243
    %v5248 = vld [vmem:[%s6] sm:$0x1]
    %v5250 = vlaneseq
    %v5251 = vshrl.u32 %v5250, 7
    %v5252 = vsub.s32 0, %v5251
    %v5253 = vrot.slane %v5248, %v5252
    %v5255 = vadd.f32 %v5246, %v5253
    %v5256 = vadd.f32 %v5247, %v5253
    %v5257 = vmax.f32 %v5255, 0.0
    %v5258 = vmax.f32 %v5256, 0.0
    %v5259 = vpack.c.bf16 %v5258, %v5257
    %v5260 = vld [vmem:[%s7] sm:$0xf]
    %v5261 = vld [vmem:[%s7 + $0x4] sm:$0xf]
    %v5262 = vld [vmem:[%s7 + $0x8] sm:$0xf]
    %v5263 = vld [vmem:[%s7 + $0xc] sm:$0xf]
    %v5264 = vld [vmem:[%s7 + $0x10] sm:$0xf]
    %v5265 = vld [vmem:[%s7 + $0x14] sm:$0xf]
    %v5266 = vld [vmem:[%s7 + $0x18] sm:$0xf]
    %v5267 = vld [vmem:[%s7 + $0x1c] sm:$0xf]
    %v5268 = vld [vmem:[%s7 + $0x20] sm:$0xf]
    %v5269 = vld [vmem:[%s7 + $0x24] sm:$0xf]
    %v5270 = vld [vmem:[%s7 + $0x28] sm:$0xf]
    %v5271 = vld [vmem:[%s7 + $0x2c] sm:$0xf]
    %v5272 = vld [vmem:[%s7 + $0x30] sm:$0xf]
    %v5273 = vld [vmem:[%s7 + $0x34] sm:$0xf]
    %v5274 = vld [vmem:[%s7 + $0x38] sm:$0xf]
    %v5275 = vld [vmem:[%s7 + $0x3c] sm:$0xf]
    %v5276 = vld [vmem:[%s8] sm:$0x1]
    %v5278 = vlaneseq
    %v5279 = vshrl.u32 %v5278, 7
    %v5280 = vsub.s32 0, %v5279
    %v5281 = vrot.slane %v5276, %v5280
    %v5299 = vunpack.c.l.b16 %v5260
    %v5300 = vunpack.c.l.b16 %v5261
    %v5301 = vunpack.c.l.b16 %v5262
    %v5302 = vunpack.c.l.b16 %v5263
    %v5303 = vunpack.c.l.b16 %v5264
    %v5304 = vunpack.c.l.b16 %v5265
    %v5305 = vunpack.c.l.b16 %v5266
    %v5306 = vunpack.c.l.b16 %v5267
    %v5307 = vunpack.c.l.b16 %v5268
    %v5308 = vunpack.c.l.b16 %v5269
    %v5309 = vunpack.c.l.b16 %v5270
    %v5310 = vunpack.c.l.b16 %v5271
    %v5311 = vunpack.c.l.b16 %v5272
    %v5312 = vunpack.c.l.b16 %v5273
    %v5313 = vunpack.c.l.b16 %v5274
    %v5314 = vunpack.c.l.b16 %v5275
    %v5315 = vpack.c.b16 %v5300, %v5299
    %v5316 = vpack.c.b16 %v5302, %v5301
    %v5317 = vpack.c.b16 %v5304, %v5303
    %v5318 = vpack.c.b16 %v5306, %v5305
    %v5319 = vpack.c.b16 %v5308, %v5307
    %v5320 = vpack.c.b16 %v5310, %v5309
    %v5321 = vpack.c.b16 %v5312, %v5311
    %v5322 = vpack.c.b16 %v5314, %v5313
    %5331 = vmatprep.subr.bf16.mxu0 0
    %5332 = vmatpush1.bf16.msra.mxu0 %v5315
    %5333 = vmatprep.subr.bf16.mxu0 0
    %5334 = vmatpush1.bf16.msra.mxu0 %v5316
    %5335 = vmatprep.subr.bf16.mxu0 0
    %5336 = vmatpush1.bf16.msra.mxu0 %v5317
    %5337 = vmatprep.subr.bf16.mxu0 0
    %5338 = vmatpush1.bf16.msra.mxu0 %v5318
    %5339 = vmatprep.subr.bf16.mxu0 0
    %5340 = vmatpush1.bf16.msra.mxu0 %v5319
    %5341 = vmatprep.subr.bf16.mxu0 0
    %5342 = vmatpush1.bf16.msra.mxu0 %v5320
    %5343 = vmatprep.subr.bf16.mxu0 0
    %5344 = vmatpush1.bf16.msra.mxu0 %v5321
    %5345 = vmatprep.subr.bf16.mxu0 0
    %5346 = vmatpush1.bf16.msra.mxu0 %v5322
    %5347 = vmatprep.subr.bf16.mxu0 0
    %5348 = vmatpush1.bf16.msra.mxu0 0
    %5349 = vmatprep.subr.bf16.mxu0 0
    %5350 = vmatpush1.bf16.msra.mxu0 0
    %5351 = vmatprep.subr.bf16.mxu0 0
    %5352 = vmatpush1.bf16.msra.mxu0 0
    %5353 = vmatprep.subr.bf16.mxu0 0
    %5354 = vmatpush1.bf16.msra.mxu0 0
    %5355 = vmatprep.subr.bf16.mxu0 0
    %5356 = vmatpush1.bf16.msra.mxu0 0
    %5357 = vmatprep.subr.bf16.mxu0 0
    %5358 = vmatpush1.bf16.msra.mxu0 0
    %5359 = vmatprep.subr.bf16.mxu0 0
    %5360 = vmatpush1.bf16.msra.mxu0 0
    %5361 = vmatprep.subr.bf16.mxu0 0
    %5362 = vmatpush1.bf16.msra.mxu0 0
    %5363 = vmatprep.mubr.bf16.mxu0 0
    %5364 = vmatmul.mubr.bf16.gmra.mrb[0].mxu0 %v5259
    %v5365 = vpop.f32.mrb[0].mxu0
    %v5366 = vadd.f32 %v5281, %v5365
    %v5367 = vpop.f32.mrb[0].mxu0
    %v5368 = vpop.f32.mrb[0].mxu0
    %v5369 = vadd.f32 %v5281, %v5368
    %v5370 = vpop.f32.mrb[0].mxu0
    %5371 = vdwg.mxu0
    %v5372 = vmax.f32 %v5366, 0.0
    %v5373 = vmax.f32 %v5369, 0.0
    %v5374 = vpack.c.bf16 %v5373, %v5372
    %v5375 = vld [vmem:[%s9] sm:$0xf]
    %v5376 = vld [vmem:[%s9 + $0x4] sm:$0xf]
    %v5377 = vld [vmem:[%s9 + $0x8] sm:$0xf]
    %v5378 = vld [vmem:[%s9 + $0xc] sm:$0xf]
    %v5379 = vld [vmem:[%s9 + $0x10] sm:$0xf]
    %v5380 = vld [vmem:[%s9 + $0x14] sm:$0xf]
    %v5381 = vld [vmem:[%s9 + $0x18] sm:$0xf]
    %v5382 = vld [vmem:[%s9 + $0x1c] sm:$0xf]
    %v5383 = vld [vmem:[%s9 + $0x20] sm:$0xf]
    %v5384 = vld [vmem:[%s9 + $0x24] sm:$0xf]
    %v5385 = vld [vmem:[%s9 + $0x28] sm:$0xf]
    %v5386 = vld [vmem:[%s9 + $0x2c] sm:$0xf]
    %v5387 = vld [vmem:[%s9 + $0x30] sm:$0xf]
    %v5388 = vld [vmem:[%s9 + $0x34] sm:$0xf]
    %v5389 = vld [vmem:[%s9 + $0x38] sm:$0xf]
    %v5390 = vld [vmem:[%s9 + $0x3c] sm:$0xf]
    %v5391 = vld [vmem:[%s10] sm:$0x1]
    %v5393 = vlaneseq
    %v5394 = vshrl.u32 %v5393, 7
    %v5395 = vsub.s32 0, %v5394
    %v5396 = vrot.slane %v5391, %v5395
    %v5414 = vunpack.c.l.b16 %v5375
    %v5415 = vunpack.c.l.b16 %v5376
    %v5416 = vunpack.c.l.b16 %v5377
    %v5417 = vunpack.c.l.b16 %v5378
    %v5418 = vunpack.c.l.b16 %v5379
    %v5419 = vunpack.c.l.b16 %v5380
    %v5420 = vunpack.c.l.b16 %v5381
    %v5421 = vunpack.c.l.b16 %v5382
    %v5422 = vunpack.c.l.b16 %v5383
    %v5423 = vunpack.c.l.b16 %v5384
    %v5424 = vunpack.c.l.b16 %v5385
    %v5425 = vunpack.c.l.b16 %v5386
    %v5426 = vunpack.c.l.b16 %v5387
    %v5427 = vunpack.c.l.b16 %v5388
    %v5428 = vunpack.c.l.b16 %v5389
    %v5429 = vunpack.c.l.b16 %v5390
    %v5430 = vpack.c.b16 %v5415, %v5414
    %v5431 = vpack.c.b16 %v5417, %v5416
    %v5432 = vpack.c.b16 %v5419, %v5418
    %v5433 = vpack.c.b16 %v5421, %v5420
    %v5434 = vpack.c.b16 %v5423, %v5422
    %v5435 = vpack.c.b16 %v5425, %v5424
    %v5436 = vpack.c.b16 %v5427, %v5426
    %v5437 = vpack.c.b16 %v5429, %v5428
    %5446 = vmatprep.subr.bf16.mxu0 0
    %5447 = vmatpush1.bf16.msra.mxu0 %v5430
    %5448 = vmatprep.subr.bf16.mxu0 0
    %5449 = vmatpush1.bf16.msra.mxu0 %v5431
    %5450 = vmatprep.subr.bf16.mxu0 0
    %5451 = vmatpush1.bf16.msra.mxu0 %v5432
    %5452 = vmatprep.subr.bf16.mxu0 0
    %5453 = vmatpush1.bf16.msra.mxu0 %v5433
    %5454 = vmatprep.subr.bf16.mxu0 0
    %5455 = vmatpush1.bf16.msra.mxu0 %v5434
    %5456 = vmatprep.subr.bf16.mxu0 0
    %5457 = vmatpush1.bf16.msra.mxu0 %v5435
    %5458 = vmatprep.subr.bf16.mxu0 0
    %5459 = vmatpush1.bf16.msra.mxu0 %v5436
    %5460 = vmatprep.subr.bf16.mxu0 0
    %5461 = vmatpush1.bf16.msra.mxu0 %v5437
    %5462 = vmatprep.subr.bf16.mxu0 0
    %5463 = vmatpush1.bf16.msra.mxu0 0
    %5464 = vmatprep.subr.bf16.mxu0 0
    %5465 = vmatpush1.bf16.msra.mxu0 0
    %5466 = vmatprep.subr.bf16.mxu0 0
    %5467 = vmatpush1.bf16.msra.mxu0 0
    %5468 = vmatprep.subr.bf16.mxu0 0
    %5469 = vmatpush1.bf16.msra.mxu0 0
    %5470 = vmatprep.subr.bf16.mxu0 0
    %5471 = vmatpush1.bf16.msra.mxu0 0
    %5472 = vmatprep.subr.bf16.mxu0 0
    %5473 = vmatpush1.bf16.msra.mxu0 0
    %5474 = vmatprep.subr.bf16.mxu0 0
    %5475 = vmatpush1.bf16.msra.mxu0 0
    %5476 = vmatprep.subr.bf16.mxu0 0
    %5477 = vmatpush1.bf16.msra.mxu0 0
    %5478 = vmatprep.mubr.bf16.mxu0 0
    %5479 = vmatmul.mubr.bf16.gmra.mrb[0].mxu0 %v5374
    %v5480 = vpop.f32.mrb[0].mxu0
    %v5481 = vadd.f32 %v5396, %v5480
    %v5482 = vpop.f32.mrb[0].mxu0
    %v5483 = vpop.f32.mrb[0].mxu0
    %v5484 = vadd.f32 %v5396, %v5483
    %v5485 = vpop.f32.mrb[0].mxu0
    %5486 = vdwg.mxu0
    %5487 = vst [vmem:[%s11] sm:$0xff] %v5481
    %5488 = vst [vmem:[%s11 + $0x8] sm:$0xff] %v5484
    // Predicated region
    $region54: #{net_forward.1} parent=1 // pred_check
      _
    $region55: #{net_forward.1} parent=1 // pred_check_branch
      %5490 = sbr.rel (0) target = $region57
    $region56: #{net_forward.1} parent=1 // pred_region
      _
    $region57: #{net_forward.1} parent=1 // pred_fallthru
      _
    // Predicated region
    $region58: #{net_forward.1} parent=1 // pred_check
      _
    $region59: #{net_forward.1} parent=1 // pred_check_branch
      %5492 = sbr.rel (0) target = $region61
    $region60: #{net_forward.1} parent=1 // pred_region
      _
    $region61: #{net_forward.1} parent=1 // pred_fallthru
      _
    %5493 = vsyncpa [#allocation3], 1
    %5494 = vsyncpa [#allocation5], 1

</llo_original>
